<compile_context>
chip_gen: v7x
topology: tpu7x:2x2x1
jax: 0.10.0
libtpu: 0.0.40
codegen_flags: <defaults>
</compile_context>

<pallas_src>
import functools

import jax
import jax.numpy as jnp
from jax.experimental import pallas as pl
from jax.experimental.pallas import tpu as pltpu

WORD_DIM = 512
HIDDEN = 256


def prepare_lstm_params(w_ih, w_hh, b_ih, b_hh):
    """One-time (init-time) weight formatting.  Do NOT call per forward pass.

    PyTorch layout: w_ih (4H, D), w_hh (4H, H), b_* (4H,), gate order [i,f,g,o].
    Returns (wih_t, whh_t, bias) in gate order [i,f,o,g]:
      wih_t (D, 4H) bf16, whh_t (H, 4H) bf16, bias (1, 4H) f32 = b_ih + b_hh.
    """
    H = w_hh.shape[1]

    def reorder(w):  # [i, f, g, o] -> [i, f, o, g] along the 4H axis
        return jnp.concatenate([w[:2 * H], w[3 * H:4 * H], w[2 * H:3 * H]], axis=0)

    wih_t = reorder(w_ih).T.astype(jnp.bfloat16)              # (D, 4H)
    whh_t = reorder(w_hh).T.astype(jnp.bfloat16)              # (H, 4H)
    bias = reorder(b_ih + b_hh).reshape(1, 4 * H).astype(jnp.float32)
    return wih_t, whh_t, bias


def _lstm_kernel(x_ref, wih_ref, whh_ref, b_ref, h_out_ref, gx_scr, *, seq_len, rows):
    """Single-invocation LSTM.

    x_ref   : (T*rows, D)  bf16  time-major inputs, rows = batch padded to 8
    wih_ref : (D, 4H)      bf16  W_ih^T, gate order [i, f, o, g]
    whh_ref : (H, 4H)      bf16  W_hh^T, gate order [i, f, o, g]
    b_ref   : (1, 4H)      f32   b_ih + b_hh, gate order [i, f, o, g]
    h_out   : (B, H)             final hidden state
    gx_scr  : (T*rows, 4H) f32   precomputed input projections (VMEM scratch)
    """
    B, H = h_out_ref.shape

    # Input projection for every timestep in one big MXU call; bias added once.
    # Padded batch rows just produce bias-only gates (bounded, sliced off below).
    gx_scr[...] = (
        jnp.dot(x_ref[...], wih_ref[...], preferred_element_type=jnp.float32)
        + b_ref[...]
    )

    def step(gx_t, h_bf, c):
        # gx_t (rows, 4H) f32 ; h_bf (rows, H) bf16 ; c (rows, H) f32.
        # Loop-invariant W_hh RHS stays stationary across the unrolled steps
        # (hoisted by Mosaic); rows=8 << MXU height so each step is latency-bound.
        gates = gx_t + jnp.dot(h_bf, whh_ref[...],
                               preferred_element_type=jnp.float32)   # (rows, 4H)
        # sigmoid(x) = 0.5*tanh(0.5*x) + 0.5 : single EUP pass over [i | f | o].
        sig = 0.5 * jnp.tanh(0.5 * gates[:, :3 * H]) + 0.5
        g = jnp.tanh(gates[:, 3 * H:])                               # [g] slab
        c_new = sig[:, H:2 * H] * c + sig[:, :H] * g                 # f*c + i*g
        h_f32 = sig[:, 2 * H:] * jnp.tanh(c_new)                     # o*tanh(c)
        return h_f32, h_f32.astype(whh_ref.dtype), c_new

    h_f32 = jnp.zeros((rows, H), jnp.float32)
    h_bf = jnp.zeros((rows, H), whh_ref.dtype)
    c = jnp.zeros((rows, H), jnp.float32)

    if seq_len <= 32:
        # Fully unrolled: static slab indices, scheduler overlaps across steps.
        for t in range(seq_len):
            h_f32, h_bf, c = step(gx_scr[t * rows:(t + 1) * rows, :], h_bf, c)
    else:
        # Partial unroll keeps LLO visibility while bounding vregs/compile time.
        def body(t, carry):
            hf, hb, cc = carry
            start = pl.multiple_of(t * rows, 8)
            return step(gx_scr[pl.ds(start, rows), :], hb, cc)

        h_f32, h_bf, c = jax.lax.fori_loop(
            0, seq_len, body, (h_f32, h_bf, c), unroll=4)

    h_out_ref[...] = h_f32[:B, :].astype(h_out_ref.dtype)


def lstm_forward(x, params):
    """x: (B, T, D) batch-first, like the PyTorch module. Returns h_n[-1]: (B, H).

    `params` must come from prepare_lstm_params() (computed once at init).
    """
    wih_t, whh_t, bias = params
    B, T, D = x.shape
    H = whh_t.shape[0]
    rows = max(8, ((B + 7) // 8) * 8)     # pad batch rows to a sublane multiple

    # Per-call input layout only: time-major, batch padded to `rows`, flattened so
    # timestep t owns rows [t*rows, (t+1)*rows).  Tiny compared with weight prep.
    x_tm = jnp.transpose(x, (1, 0, 2))                         # (T, B, D)
    x_pad = jnp.pad(x_tm, ((0, 0), (0, rows - B), (0, 0)))     # (T, rows, D)
    x_flat = x_pad.reshape(T * rows, D).astype(jnp.bfloat16)

    kernel = functools.partial(_lstm_kernel, seq_len=T, rows=rows)

    return pl.pallas_call(
        kernel,
        out_shape=jax.ShapeDtypeStruct((B, H), x.dtype),
        in_specs=[
            pl.BlockSpec(memory_space=pltpu.MemorySpace.VMEM),
            pl.BlockSpec(memory_space=pltpu.MemorySpace.VMEM),
            pl.BlockSpec(memory_space=pltpu.MemorySpace.VMEM),
            pl.BlockSpec(memory_space=pltpu.MemorySpace.VMEM),
        ],
        out_specs=pl.BlockSpec(memory_space=pltpu.MemorySpace.VMEM),
        # gx_scr is 32 KiB per timestep (f32): trivial at small T on all
        # generations.  For very long sequences (T ~ 1000 on v7x's 64 MiB VMEM)
        # store it bf16 / tile the time loop and set vmem_limit_bytes explicitly.
        scratch_shapes=[pltpu.VMEM((T * rows, 4 * H), jnp.float32)],
    )(x_flat, wih_t, whh_t, bias)


def lstm_forward_ref(x, w_ih, w_hh, b_ih, b_hh):
    """Pure-JAX f32 reference matching torch.nn.LSTM semantics (gate order i,f,g,o)."""
    B, T, D = x.shape
    H = w_hh.shape[1]
    bias = b_ih + b_hh

    def step(carry, x_t):
        h, c = carry
        gates = x_t @ w_ih.T + h @ w_hh.T + bias
        i = jax.nn.sigmoid(gates[:, 0 * H:1 * H])
        f = jax.nn.sigmoid(gates[:, 1 * H:2 * H])
        g = jnp.tanh(gates[:, 2 * H:3 * H])
        o = jax.nn.sigmoid(gates[:, 3 * H:4 * H])
        c = f * c + i * g
        h = o * jnp.tanh(c)
        return (h, c), None

    h0 = jnp.zeros((B, H), x.dtype)
    c0 = jnp.zeros((B, H), x.dtype)
    (h_n, _), _ = jax.lax.scan(step, (h0, c0), jnp.transpose(x, (1, 0, 2)))
    return h_n


if __name__ == "__main__":
    B, T, D, H = 2, 8, WORD_DIM, HIDDEN

    key = jax.random.PRNGKey(0)
    kx, k1, k2, k3, k4 = jax.random.split(key, 5)

    # PyTorch-style init: U(-1/sqrt(H), 1/sqrt(H)) for all LSTM params.
    bound = 1.0 / jnp.sqrt(jnp.float32(H))
    x = jax.random.normal(kx, (B, T, D), dtype=jnp.float32)
    w_ih = jax.random.uniform(k1, (4 * H, D), jnp.float32, -bound, bound)
    w_hh = jax.random.uniform(k2, (4 * H, H), jnp.float32, -bound, bound)
    b_ih = jax.random.uniform(k3, (4 * H,), jnp.float32, -bound, bound)
    b_hh = jax.random.uniform(k4, (4 * H,), jnp.float32, -bound, bound)

    # One-time weight formatting (hoisted out of the per-call hot path).
    params = jax.tree_util.tree_map(
        jax.block_until_ready, prepare_lstm_params(w_ih, w_hh, b_ih, b_hh))

    lstm_fn = jax.jit(lstm_forward)
    h_last = jax.block_until_ready(lstm_fn(x, params))
    h_ref = jax.block_until_ready(lstm_forward_ref(x, w_ih, w_hh, b_ih, b_hh))

    assert h_last.shape == (B, H)
    # bf16 matmul operands + bf16 recurrent h (with f32 accumulation and f32 cell
    # state) vs pure-f32 reference: tolerance loosened accordingly.  Long
    # sequences accumulate bf16 quantization of h; keep h f32 if that matters.
    assert jnp.allclose(h_last, h_ref, atol=3e-2, rtol=3e-2), "mismatch vs reference"

    print("KERNEL_OK")
</pallas_src>

<mosaic_0001>
module attributes {stable_mosaic.version = 11 : i64} {
  func.func @_lstm_kernel(%arg0: memref<64x512xbf16, #tpu.memory_space<vmem>>, %arg1: memref<512x1024xbf16, #tpu.memory_space<vmem>>, %arg2: memref<256x1024xbf16, #tpu.memory_space<vmem>>, %arg3: memref<1x1024xf32, #tpu.memory_space<vmem>>, %arg4: memref<2x256xf32, #tpu.memory_space<vmem>>, %arg5: memref<64x1024xf32, #tpu.memory_space<vmem>>) attributes {dimension_semantics = [], scalar_prefetch = 0 : i64, scratch_operands = 1 : i64, tpu.core_type = #tpu.core_type<tc>} {
    %c0 = arith.constant 0 : index
    %c0_0 = arith.constant 0 : index
    %0 = vector.load %arg0[%c0, %c0_0] : memref<64x512xbf16, #tpu.memory_space<vmem>>, vector<64x512xbf16>
    %c0_1 = arith.constant 0 : index
    %c0_2 = arith.constant 0 : index
    %1 = vector.load %arg1[%c0_1, %c0_2] : memref<512x1024xbf16, #tpu.memory_space<vmem>>, vector<512x1024xbf16>
    %cst = arith.constant dense<0.000000e+00> : vector<64x1024xf32>
    %2 = tpu.matmul %0, %1, %cst {dimension_numbers = #tpu.dot_dimension_numbers<[1], [0], [0], [1], [0, 0, 1, 1], [], []>} : vector<64x512xbf16>, vector<512x1024xbf16>, vector<64x1024xf32> -> vector<64x1024xf32>
    %c0_3 = arith.constant 0 : index
    %c0_4 = arith.constant 0 : index
    %3 = vector.load %arg3[%c0_3, %c0_4] : memref<1x1024xf32, #tpu.memory_space<vmem>>, vector<1x1024xf32>
    %4 = vector.broadcast %3 : vector<1x1024xf32> to vector<64x1024xf32>
    %5 = arith.addf %2, %4 : vector<64x1024xf32>
    %c0_5 = arith.constant 0 : index
    %c0_6 = arith.constant 0 : index
    %6 = vector.load %arg5[%c0_5, %c0_6] : memref<64x1024xf32, #tpu.memory_space<vmem>>, vector<64x1024xf32>
    tpu.vector_store %arg5[%c0_5, %c0_6], %5 {strides = array<i32>} : memref<64x1024xf32, #tpu.memory_space<vmem>>, vector<64x1024xf32>,
    %cst_7 = arith.constant 0.000000e+00 : bf16
    %7 = vector.broadcast %cst_7 : bf16 to vector<8x256xbf16>
    %cst_8 = arith.constant 0.000000e+00 : f32
    %8 = vector.broadcast %cst_8 : f32 to vector<8x256xf32>
    %c0_9 = arith.constant 0 : index
    %c0_10 = arith.constant 0 : index
    %9 = vector.load %arg5[%c0_9, %c0_10] : memref<64x1024xf32, #tpu.memory_space<vmem>>, vector<8x1024xf32>
    %c0_11 = arith.constant 0 : index
    %c0_12 = arith.constant 0 : index
    %10 = vector.load %arg2[%c0_11, %c0_12] : memref<256x1024xbf16, #tpu.memory_space<vmem>>, vector<256x1024xbf16>
    %cst_13 = arith.constant dense<0.000000e+00> : vector<8x1024xf32>
    %11 = tpu.matmul %7, %10, %cst_13 {dimension_numbers = #tpu.dot_dimension_numbers<[1], [0], [0], [1], [0, 0, 1, 1], [], []>} : vector<8x256xbf16>, vector<256x1024xbf16>, vector<8x1024xf32> -> vector<8x1024xf32>
    %12 = arith.addf %9, %11 : vector<8x1024xf32>
    %13 = vector.extract_strided_slice %12 {offsets = [0, 0], sizes = [8, 768], strides = [1, 1]} : vector<8x1024xf32> to vector<8x768xf32>
    %cst_14 = arith.constant 5.000000e-01 : f32
    %14 = vector.broadcast %cst_14 : f32 to vector<8x768xf32>
    %15 = arith.mulf %14, %13 : vector<8x768xf32>
    %16 = math.tanh %15 : vector<8x768xf32>
    %cst_15 = arith.constant 5.000000e-01 : f32
    %17 = vector.broadcast %cst_15 : f32 to vector<8x768xf32>
    %18 = arith.mulf %17, %16 : vector<8x768xf32>
    %cst_16 = arith.constant 5.000000e-01 : f32
    %19 = vector.broadcast %cst_16 : f32 to vector<8x768xf32>
    %20 = arith.addf %18, %19 : vector<8x768xf32>
    %21 = vector.extract_strided_slice %12 {offsets = [0, 768], sizes = [8, 256], strides = [1, 1]} : vector<8x1024xf32> to vector<8x256xf32>
    %22 = math.tanh %21 : vector<8x256xf32>
    %23 = vector.extract_strided_slice %20 {offsets = [0, 256], sizes = [8, 256], strides = [1, 1]} : vector<8x768xf32> to vector<8x256xf32>
    %24 = arith.mulf %23, %8 : vector<8x256xf32>
    %25 = vector.extract_strided_slice %20 {offsets = [0, 0], sizes = [8, 256], strides = [1, 1]} : vector<8x768xf32> to vector<8x256xf32>
    %26 = arith.mulf %25, %22 : vector<8x256xf32>
    %27 = arith.addf %24, %26 : vector<8x256xf32>
    %28 = vector.extract_strided_slice %20 {offsets = [0, 512], sizes = [8, 256], strides = [1, 1]} : vector<8x768xf32> to vector<8x256xf32>
    %29 = math.tanh %27 : vector<8x256xf32>
    %30 = arith.mulf %28, %29 : vector<8x256xf32>
    %31 = arith.truncf %30 : vector<8x256xf32> to vector<8x256xbf16>
    %c8 = arith.constant 8 : index
    %c0_17 = arith.constant 0 : index
    %32 = vector.load %arg5[%c8, %c0_17] : memref<64x1024xf32, #tpu.memory_space<vmem>>, vector<8x1024xf32>
    %c0_18 = arith.constant 0 : index
    %c0_19 = arith.constant 0 : index
    %33 = vector.load %arg2[%c0_18, %c0_19] : memref<256x1024xbf16, #tpu.memory_space<vmem>>, vector<256x1024xbf16>
    %cst_20 = arith.constant dense<0.000000e+00> : vector<8x1024xf32>
    %34 = tpu.matmul %31, %33, %cst_20 {dimension_numbers = #tpu.dot_dimension_numbers<[1], [0], [0], [1], [0, 0, 1, 1], [], []>} : vector<8x256xbf16>, vector<256x1024xbf16>, vector<8x1024xf32> -> vector<8x1024xf32>
    %35 = arith.addf %32, %34 : vector<8x1024xf32>
    %36 = vector.extract_strided_slice %35 {offsets = [0, 0], sizes = [8, 768], strides = [1, 1]} : vector<8x1024xf32> to vector<8x768xf32>
    %cst_21 = arith.constant 5.000000e-01 : f32
    %37 = vector.broadcast %cst_21 : f32 to vector<8x768xf32>
    %38 = arith.mulf %37, %36 : vector<8x768xf32>
    %39 = math.tanh %38 : vector<8x768xf32>
    %cst_22 = arith.constant 5.000000e-01 : f32
    %40 = vector.broadcast %cst_22 : f32 to vector<8x768xf32>
    %41 = arith.mulf %40, %39 : vector<8x768xf32>
    %cst_23 = arith.constant 5.000000e-01 : f32
    %42 = vector.broadcast %cst_23 : f32 to vector<8x768xf32>
    %43 = arith.addf %41, %42 : vector<8x768xf32>
    %44 = vector.extract_strided_slice %35 {offsets = [0, 768], sizes = [8, 256], strides = [1, 1]} : vector<8x1024xf32> to vector<8x256xf32>
    %45 = math.tanh %44 : vector<8x256xf32>
    %46 = vector.extract_strided_slice %43 {offsets = [0, 256], sizes = [8, 256], strides = [1, 1]} : vector<8x768xf32> to vector<8x256xf32>
    %47 = arith.mulf %46, %27 : vector<8x256xf32>
    %48 = vector.extract_strided_slice %43 {offsets = [0, 0], sizes = [8, 256], strides = [1, 1]} : vector<8x768xf32> to vector<8x256xf32>
    %49 = arith.mulf %48, %45 : vector<8x256xf32>
    %50 = arith.addf %47, %49 : vector<8x256xf32>
    %51 = vector.extract_strided_slice %43 {offsets = [0, 512], sizes = [8, 256], strides = [1, 1]} : vector<8x768xf32> to vector<8x256xf32>
    %52 = math.tanh %50 : vector<8x256xf32>
    %53 = arith.mulf %51, %52 : vector<8x256xf32>
    %54 = arith.truncf %53 : vector<8x256xf32> to vector<8x256xbf16>
    %c16 = arith.constant 16 : index
    %c0_24 = arith.constant 0 : index
    %55 = vector.load %arg5[%c16, %c0_24] : memref<64x1024xf32, #tpu.memory_space<vmem>>, vector<8x1024xf32>
    %c0_25 = arith.constant 0 : index
    %c0_26 = arith.constant 0 : index
    %56 = vector.load %arg2[%c0_25, %c0_26] : memref<256x1024xbf16, #tpu.memory_space<vmem>>, vector<256x1024xbf16>
    %cst_27 = arith.constant dense<0.000000e+00> : vector<8x1024xf32>
    %57 = tpu.matmul %54, %56, %cst_27 {dimension_numbers = #tpu.dot_dimension_numbers<[1], [0], [0], [1], [0, 0, 1, 1], [], []>} : vector<8x256xbf16>, vector<256x1024xbf16>, vector<8x1024xf32> -> vector<8x1024xf32>
    %58 = arith.addf %55, %57 : vector<8x1024xf32>
    %59 = vector.extract_strided_slice %58 {offsets = [0, 0], sizes = [8, 768], strides = [1, 1]} : vector<8x1024xf32> to vector<8x768xf32>
    %cst_28 = arith.constant 5.000000e-01 : f32
    %60 = vector.broadcast %cst_28 : f32 to vector<8x768xf32>
    %61 = arith.mulf %60, %59 : vector<8x768xf32>
    %62 = math.tanh %61 : vector<8x768xf32>
    %cst_29 = arith.constant 5.000000e-01 : f32
    %63 = vector.broadcast %cst_29 : f32 to vector<8x768xf32>
    %64 = arith.mulf %63, %62 : vector<8x768xf32>
    %cst_30 = arith.constant 5.000000e-01 : f32
    %65 = vector.broadcast %cst_30 : f32 to vector<8x768xf32>
    %66 = arith.addf %64, %65 : vector<8x768xf32>
    %67 = vector.extract_strided_slice %58 {offsets = [0, 768], sizes = [8, 256], strides = [1, 1]} : vector<8x1024xf32> to vector<8x256xf32>
    %68 = math.tanh %67 : vector<8x256xf32>
    %69 = vector.extract_strided_slice %66 {offsets = [0, 256], sizes = [8, 256], strides = [1, 1]} : vector<8x768xf32> to vector<8x256xf32>
    %70 = arith.mulf %69, %50 : vector<8x256xf32>
    %71 = vector.extract_strided_slice %66 {offsets = [0, 0], sizes = [8, 256], strides = [1, 1]} : vector<8x768xf32> to vector<8x256xf32>
    %72 = arith.mulf %71, %68 : vector<8x256xf32>
    %73 = arith.addf %70, %72 : vector<8x256xf32>
    %74 = vector.extract_strided_slice %66 {offsets = [0, 512], sizes = [8, 256], strides = [1, 1]} : vector<8x768xf32> to vector<8x256xf32>
    %75 = math.tanh %73 : vector<8x256xf32>
    %76 = arith.mulf %74, %75 : vector<8x256xf32>
    %77 = arith.truncf %76 : vector<8x256xf32> to vector<8x256xbf16>
    %c24 = arith.constant 24 : index
    %c0_31 = arith.constant 0 : index
    %78 = vector.load %arg5[%c24, %c0_31] : memref<64x1024xf32, #tpu.memory_space<vmem>>, vector<8x1024xf32>
    %c0_32 = arith.constant 0 : index
    %c0_33 = arith.constant 0 : index
    %79 = vector.load %arg2[%c0_32, %c0_33] : memref<256x1024xbf16, #tpu.memory_space<vmem>>, vector<256x1024xbf16>
    %cst_34 = arith.constant dense<0.000000e+00> : vector<8x1024xf32>
    %80 = tpu.matmul %77, %79, %cst_34 {dimension_numbers = #tpu.dot_dimension_numbers<[1], [0], [0], [1], [0, 0, 1, 1], [], []>} : vector<8x256xbf16>, vector<256x1024xbf16>, vector<8x1024xf32> -> vector<8x1024xf32>
    %81 = arith.addf %78, %80 : vector<8x1024xf32>
    %82 = vector.extract_strided_slice %81 {offsets = [0, 0], sizes = [8, 768], strides = [1, 1]} : vector<8x1024xf32> to vector<8x768xf32>
    %cst_35 = arith.constant 5.000000e-01 : f32
    %83 = vector.broadcast %cst_35 : f32 to vector<8x768xf32>
    %84 = arith.mulf %83, %82 : vector<8x768xf32>
    %85 = math.tanh %84 : vector<8x768xf32>
    %cst_36 = arith.constant 5.000000e-01 : f32
    %86 = vector.broadcast %cst_36 : f32 to vector<8x768xf32>
    %87 = arith.mulf %86, %85 : vector<8x768xf32>
    %cst_37 = arith.constant 5.000000e-01 : f32
    %88 = vector.broadcast %cst_37 : f32 to vector<8x768xf32>
    %89 = arith.addf %87, %88 : vector<8x768xf32>
    %90 = vector.extract_strided_slice %81 {offsets = [0, 768], sizes = [8, 256], strides = [1, 1]} : vector<8x1024xf32> to vector<8x256xf32>
    %91 = math.tanh %90 : vector<8x256xf32>
    %92 = vector.extract_strided_slice %89 {offsets = [0, 256], sizes = [8, 256], strides = [1, 1]} : vector<8x768xf32> to vector<8x256xf32>
    %93 = arith.mulf %92, %73 : vector<8x256xf32>
    %94 = vector.extract_strided_slice %89 {offsets = [0, 0], sizes = [8, 256], strides = [1, 1]} : vector<8x768xf32> to vector<8x256xf32>
    %95 = arith.mulf %94, %91 : vector<8x256xf32>
    %96 = arith.addf %93, %95 : vector<8x256xf32>
    %97 = vector.extract_strided_slice %89 {offsets = [0, 512], sizes = [8, 256], strides = [1, 1]} : vector<8x768xf32> to vector<8x256xf32>
    %98 = math.tanh %96 : vector<8x256xf32>
    %99 = arith.mulf %97, %98 : vector<8x256xf32>
    %100 = arith.truncf %99 : vector<8x256xf32> to vector<8x256xbf16>
    %c32 = arith.constant 32 : index
    %c0_38 = arith.constant 0 : index
    %101 = vector.load %arg5[%c32, %c0_38] : memref<64x1024xf32, #tpu.memory_space<vmem>>, vector<8x1024xf32>
    %c0_39 = arith.constant 0 : index
    %c0_40 = arith.constant 0 : index
    %102 = vector.load %arg2[%c0_39, %c0_40] : memref<256x1024xbf16, #tpu.memory_space<vmem>>, vector<256x1024xbf16>
    %cst_41 = arith.constant dense<0.000000e+00> : vector<8x1024xf32>
    %103 = tpu.matmul %100, %102, %cst_41 {dimension_numbers = #tpu.dot_dimension_numbers<[1], [0], [0], [1], [0, 0, 1, 1], [], []>} : vector<8x256xbf16>, vector<256x1024xbf16>, vector<8x1024xf32> -> vector<8x1024xf32>
    %104 = arith.addf %101, %103 : vector<8x1024xf32>
    %105 = vector.extract_strided_slice %104 {offsets = [0, 0], sizes = [8, 768], strides = [1, 1]} : vector<8x1024xf32> to vector<8x768xf32>
    %cst_42 = arith.constant 5.000000e-01 : f32
    %106 = vector.broadcast %cst_42 : f32 to vector<8x768xf32>
    %107 = arith.mulf %106, %105 : vector<8x768xf32>
    %108 = math.tanh %107 : vector<8x768xf32>
    %cst_43 = arith.constant 5.000000e-01 : f32
    %109 = vector.broadcast %cst_43 : f32 to vector<8x768xf32>
    %110 = arith.mulf %109, %108 : vector<8x768xf32>
    %cst_44 = arith.constant 5.000000e-01 : f32
    %111 = vector.broadcast %cst_44 : f32 to vector<8x768xf32>
    %112 = arith.addf %110, %111 : vector<8x768xf32>
    %113 = vector.extract_strided_slice %104 {offsets = [0, 768], sizes = [8, 256], strides = [1, 1]} : vector<8x1024xf32> to vector<8x256xf32>
    %114 = math.tanh %113 : vector<8x256xf32>
    %115 = vector.extract_strided_slice %112 {offsets = [0, 256], sizes = [8, 256], strides = [1, 1]} : vector<8x768xf32> to vector<8x256xf32>
    %116 = arith.mulf %115, %96 : vector<8x256xf32>
    %117 = vector.extract_strided_slice %112 {offsets = [0, 0], sizes = [8, 256], strides = [1, 1]} : vector<8x768xf32> to vector<8x256xf32>
    %118 = arith.mulf %117, %114 : vector<8x256xf32>
    %119 = arith.addf %116, %118 : vector<8x256xf32>
    %120 = vector.extract_strided_slice %112 {offsets = [0, 512], sizes = [8, 256], strides = [1, 1]} : vector<8x768xf32> to vector<8x256xf32>
    %121 = math.tanh %119 : vector<8x256xf32>
    %122 = arith.mulf %120, %121 : vector<8x256xf32>
    %123 = arith.truncf %122 : vector<8x256xf32> to vector<8x256xbf16>
    %c40 = arith.constant 40 : index
    %c0_45 = arith.constant 0 : index
    %124 = vector.load %arg5[%c40, %c0_45] : memref<64x1024xf32, #tpu.memory_space<vmem>>, vector<8x1024xf32>
    %c0_46 = arith.constant 0 : index
    %c0_47 = arith.constant 0 : index
    %125 = vector.load %arg2[%c0_46, %c0_47] : memref<256x1024xbf16, #tpu.memory_space<vmem>>, vector<256x1024xbf16>
    %cst_48 = arith.constant dense<0.000000e+00> : vector<8x1024xf32>
    %126 = tpu.matmul %123, %125, %cst_48 {dimension_numbers = #tpu.dot_dimension_numbers<[1], [0], [0], [1], [0, 0, 1, 1], [], []>} : vector<8x256xbf16>, vector<256x1024xbf16>, vector<8x1024xf32> -> vector<8x1024xf32>
    %127 = arith.addf %124, %126 : vector<8x1024xf32>
    %128 = vector.extract_strided_slice %127 {offsets = [0, 0], sizes = [8, 768], strides = [1, 1]} : vector<8x1024xf32> to vector<8x768xf32>
    %cst_49 = arith.constant 5.000000e-01 : f32
    %129 = vector.broadcast %cst_49 : f32 to vector<8x768xf32>
    %130 = arith.mulf %129, %128 : vector<8x768xf32>
    %131 = math.tanh %130 : vector<8x768xf32>
    %cst_50 = arith.constant 5.000000e-01 : f32
    %132 = vector.broadcast %cst_50 : f32 to vector<8x768xf32>
    %133 = arith.mulf %132, %131 : vector<8x768xf32>
    %cst_51 = arith.constant 5.000000e-01 : f32
    %134 = vector.broadcast %cst_51 : f32 to vector<8x768xf32>
    %135 = arith.addf %133, %134 : vector<8x768xf32>
    %136 = vector.extract_strided_slice %127 {offsets = [0, 768], sizes = [8, 256], strides = [1, 1]} : vector<8x1024xf32> to vector<8x256xf32>
    %137 = math.tanh %136 : vector<8x256xf32>
    %138 = vector.extract_strided_slice %135 {offsets = [0, 256], sizes = [8, 256], strides = [1, 1]} : vector<8x768xf32> to vector<8x256xf32>
    %139 = arith.mulf %138, %119 : vector<8x256xf32>
    %140 = vector.extract_strided_slice %135 {offsets = [0, 0], sizes = [8, 256], strides = [1, 1]} : vector<8x768xf32> to vector<8x256xf32>
    %141 = arith.mulf %140, %137 : vector<8x256xf32>
    %142 = arith.addf %139, %141 : vector<8x256xf32>
    %143 = vector.extract_strided_slice %135 {offsets = [0, 512], sizes = [8, 256], strides = [1, 1]} : vector<8x768xf32> to vector<8x256xf32>
    %144 = math.tanh %142 : vector<8x256xf32>
    %145 = arith.mulf %143, %144 : vector<8x256xf32>
    %146 = arith.truncf %145 : vector<8x256xf32> to vector<8x256xbf16>
    %c48 = arith.constant 48 : index
    %c0_52 = arith.constant 0 : index
    %147 = vector.load %arg5[%c48, %c0_52] : memref<64x1024xf32, #tpu.memory_space<vmem>>, vector<8x1024xf32>
    %c0_53 = arith.constant 0 : index
    %c0_54 = arith.constant 0 : index
    %148 = vector.load %arg2[%c0_53, %c0_54] : memref<256x1024xbf16, #tpu.memory_space<vmem>>, vector<256x1024xbf16>
    %cst_55 = arith.constant dense<0.000000e+00> : vector<8x1024xf32>
    %149 = tpu.matmul %146, %148, %cst_55 {dimension_numbers = #tpu.dot_dimension_numbers<[1], [0], [0], [1], [0, 0, 1, 1], [], []>} : vector<8x256xbf16>, vector<256x1024xbf16>, vector<8x1024xf32> -> vector<8x1024xf32>
    %150 = arith.addf %147, %149 : vector<8x1024xf32>
    %151 = vector.extract_strided_slice %150 {offsets = [0, 0], sizes = [8, 768], strides = [1, 1]} : vector<8x1024xf32> to vector<8x768xf32>
    %cst_56 = arith.constant 5.000000e-01 : f32
    %152 = vector.broadcast %cst_56 : f32 to vector<8x768xf32>
    %153 = arith.mulf %152, %151 : vector<8x768xf32>
    %154 = math.tanh %153 : vector<8x768xf32>
    %cst_57 = arith.constant 5.000000e-01 : f32
    %155 = vector.broadcast %cst_57 : f32 to vector<8x768xf32>
    %156 = arith.mulf %155, %154 : vector<8x768xf32>
    %cst_58 = arith.constant 5.000000e-01 : f32
    %157 = vector.broadcast %cst_58 : f32 to vector<8x768xf32>
    %158 = arith.addf %156, %157 : vector<8x768xf32>
    %159 = vector.extract_strided_slice %150 {offsets = [0, 768], sizes = [8, 256], strides = [1, 1]} : vector<8x1024xf32> to vector<8x256xf32>
    %160 = math.tanh %159 : vector<8x256xf32>
    %161 = vector.extract_strided_slice %158 {offsets = [0, 256], sizes = [8, 256], strides = [1, 1]} : vector<8x768xf32> to vector<8x256xf32>
    %162 = arith.mulf %161, %142 : vector<8x256xf32>
    %163 = vector.extract_strided_slice %158 {offsets = [0, 0], sizes = [8, 256], strides = [1, 1]} : vector<8x768xf32> to vector<8x256xf32>
    %164 = arith.mulf %163, %160 : vector<8x256xf32>
    %165 = arith.addf %162, %164 : vector<8x256xf32>
    %166 = vector.extract_strided_slice %158 {offsets = [0, 512], sizes = [8, 256], strides = [1, 1]} : vector<8x768xf32> to vector<8x256xf32>
    %167 = math.tanh %165 : vector<8x256xf32>
    %168 = arith.mulf %166, %167 : vector<8x256xf32>
    %169 = arith.truncf %168 : vector<8x256xf32> to vector<8x256xbf16>
    %c56 = arith.constant 56 : index
    %c0_59 = arith.constant 0 : index
    %170 = vector.load %arg5[%c56, %c0_59] : memref<64x1024xf32, #tpu.memory_space<vmem>>, vector<8x1024xf32>
    %c0_60 = arith.constant 0 : index
    %c0_61 = arith.constant 0 : index
    %171 = vector.load %arg2[%c0_60, %c0_61] : memref<256x1024xbf16, #tpu.memory_space<vmem>>, vector<256x1024xbf16>
    %cst_62 = arith.constant dense<0.000000e+00> : vector<8x1024xf32>
    %172 = tpu.matmul %169, %171, %cst_62 {dimension_numbers = #tpu.dot_dimension_numbers<[1], [0], [0], [1], [0, 0, 1, 1], [], []>} : vector<8x256xbf16>, vector<256x1024xbf16>, vector<8x1024xf32> -> vector<8x1024xf32>
    %173 = arith.addf %170, %172 : vector<8x1024xf32>
    %174 = vector.extract_strided_slice %173 {offsets = [0, 0], sizes = [8, 768], strides = [1, 1]} : vector<8x1024xf32> to vector<8x768xf32>
    %cst_63 = arith.constant 5.000000e-01 : f32
    %175 = vector.broadcast %cst_63 : f32 to vector<8x768xf32>
    %176 = arith.mulf %175, %174 : vector<8x768xf32>
    %177 = math.tanh %176 : vector<8x768xf32>
    %cst_64 = arith.constant 5.000000e-01 : f32
    %178 = vector.broadcast %cst_64 : f32 to vector<8x768xf32>
    %179 = arith.mulf %178, %177 : vector<8x768xf32>
    %cst_65 = arith.constant 5.000000e-01 : f32
    %180 = vector.broadcast %cst_65 : f32 to vector<8x768xf32>
    %181 = arith.addf %179, %180 : vector<8x768xf32>
    %182 = vector.extract_strided_slice %173 {offsets = [0, 768], sizes = [8, 256], strides = [1, 1]} : vector<8x1024xf32> to vector<8x256xf32>
    %183 = math.tanh %182 : vector<8x256xf32>
    %184 = vector.extract_strided_slice %181 {offsets = [0, 256], sizes = [8, 256], strides = [1, 1]} : vector<8x768xf32> to vector<8x256xf32>
    %185 = arith.mulf %184, %165 : vector<8x256xf32>
    %186 = vector.extract_strided_slice %181 {offsets = [0, 0], sizes = [8, 256], strides = [1, 1]} : vector<8x768xf32> to vector<8x256xf32>
    %187 = arith.mulf %186, %183 : vector<8x256xf32>
    %188 = arith.addf %185, %187 : vector<8x256xf32>
    %189 = vector.extract_strided_slice %181 {offsets = [0, 512], sizes = [8, 256], strides = [1, 1]} : vector<8x768xf32> to vector<8x256xf32>
    %190 = math.tanh %188 : vector<8x256xf32>
    %191 = arith.mulf %189, %190 : vector<8x256xf32>
    %192 = vector.extract_strided_slice %191 {offsets = [0, 0], sizes = [2, 256], strides = [1, 1]} : vector<8x256xf32> to vector<2x256xf32>
    %c0_66 = arith.constant 0 : index
    %c0_67 = arith.constant 0 : index
    %193 = vector.load %arg4[%c0_66, %c0_67] : memref<2x256xf32, #tpu.memory_space<vmem>>, vector<2x256xf32>
    tpu.vector_store %arg4[%c0_66, %c0_67], %192 {strides = array<i32>} : memref<2x256xf32, #tpu.memory_space<vmem>>, vector<2x256xf32>,
    return
  }
}

</mosaic_0001>

<llo_original>
// kernel: lstm_forward.1
$region0: #{lstm_forward.1}
  #allocation0 [shape = 'u32[]', space=smem, size = 0x4, offset = 0x4, fixed_abs, tag = 'smem constant byte address 0x4 - core index']
  #allocation1 [shape = 'u32[144,128]{1,0:T(1,128)}', space=vmem, size = 0x12000, scoped, tag = 'internal scratch']
  #allocation2 [shape = 'f32[64,1024]{1,0:T(8,128)}', space=vmem, size = 0x40000, scoped, tag = 'scratch operand']
  %s0 = inlined_call_operand.vmem [shape: bf16[64,512], index: 0, kind: input, shape index: {}]
  %s1 = inlined_call_operand.hbm [shape: bf16[512,1024], index: 1, kind: input, shape index: {}]
  %s2 = inlined_call_operand.hbm [shape: bf16[256,1024], index: 2, kind: input, shape index: {}]
  %s3 = inlined_call_operand.vmem [shape: f32[1,1024], index: 3, kind: input, shape index: {}]
  %s4 = inlined_call_operand.hbm [shape: f32[2,256], index: 4, kind: output, shape index: {}]
  %s5 = sld [smem:[#allocation0]]
  $region34: #{lstm_forward.1} parent=0
    _
  %s7 = ssub.s32 1, %s5
  %s8 = scalar_select 0, %s7, %s5
  $region1: #{lstm_forward.1} parent=0
    #allocation3 [shape = 'u8[1048576]{0}', space=vmem, size = 0x100000, scoped, tag = 'input window, operand 1, single buffered']
    #allocation4 [shape = 's32[1]{0}', space=sflag, size = 0x4, scoped, tag = 'scoped memory for lstm_forward.1']
    #allocation5 [shape = 's32[1]{0}', space=sflag, size = 0x4, scoped, tag = 'scoped memory for lstm_forward.1']
    #allocation6 [shape = 'u8[524288]{0}', space=vmem, size = 0x80000, scoped, tag = 'input window, operand 2, single buffered']
    #allocation7 [shape = 's32[1]{0}', space=sflag, size = 0x4, scoped, tag = 'scoped memory for lstm_forward.1']
    #allocation8 [shape = 'u8[2048]{0}', space=vmem, size = 0x800, scoped, tag = 'output window, operand 0, single buffered']
    %9 = vsyncpa [#allocation4], 0
    %10 = vsyncpa [#allocation7], 0
    %11 = vsyncpa [#allocation5], 0
    // Predicated region
    $region2: #{lstm_forward.1} parent=1 // pred_check
      _
    $region3: #{lstm_forward.1} parent=1 // pred_check_branch
      %13 = sbr.rel (0) target = $region5
    $region4: #{lstm_forward.1} parent=1 // pred_region
      _
    $region5: #{lstm_forward.1} parent=1 // pred_fallthru
      _
    // Predicated region
    $region6: #{lstm_forward.1} parent=1 // pred_check
      _
    $region7: #{lstm_forward.1} parent=1 // pred_check_branch
      %15 = sbr.rel (0) target = $region9
    $region8: #{lstm_forward.1} parent=1 // pred_region
      %s17 = ssub.s32 32768, 32768
      %18 = vsyncadd [#allocation4], %s17
      %s19 = sshll.u32 [#allocation3], 4
      %s20 = int_to_ptr.vmem [resolvable:$true] %s19
      %25 = dma.hbm_to_vmem [thread:$0]  %s1, 32768, %s20, [#allocation4], 512, 512, 32
    $region9: #{lstm_forward.1} parent=1 // pred_fallthru
      _
    // Predicated region
    $region10: #{lstm_forward.1} parent=1 // pred_check
      _
    $region11: #{lstm_forward.1} parent=1 // pred_check_branch
      %27 = sbr.rel (0) target = $region13
    $region12: #{lstm_forward.1} parent=1 // pred_region
      %s29 = ssub.s32 16384, 16384
      %30 = vsyncadd [#allocation7], %s29
      %s31 = sshll.u32 [#allocation6], 4
      %s32 = int_to_ptr.vmem [resolvable:$true] %s31
      %37 = dma.hbm_to_vmem [thread:$0]  %s2, 16384, %s32, [#allocation7], 512, 512, 32
    $region13: #{lstm_forward.1} parent=1 // pred_fallthru
      _
    // Predicated region
    $region14: #{lstm_forward.1} parent=1 // pred_check
      _
    $region15: #{lstm_forward.1} parent=1 // pred_check_branch
      %39 = sbr.rel (0) target = $region17
    $region16: #{lstm_forward.1} parent=1 // pred_region
      _
    $region17: #{lstm_forward.1} parent=1 // pred_fallthru
      _
    // Predicated region
    $region18: #{lstm_forward.1} parent=1 // pred_check
      _
    $region19: #{lstm_forward.1} parent=1 // pred_check_branch
      %41 = sbr.rel (0) target = $region21
    $region20: #{lstm_forward.1} parent=1 // pred_region
      %42 = dma.done [#allocation4], 32768
    $region21: #{lstm_forward.1} parent=1 // pred_fallthru
      _
    // Predicated region
    $region22: #{lstm_forward.1} parent=1 // pred_check
      _
    $region23: #{lstm_forward.1} parent=1 // pred_check_branch
      %44 = sbr.rel (0) target = $region25
    $region24: #{lstm_forward.1} parent=1 // pred_region
      %45 = dma.done [#allocation7], 16384
    $region25: #{lstm_forward.1} parent=1 // pred_fallthru
      _
    %v47 = vld [vmem:[%s0] sm:$0xff]
    %v48 = vld [vmem:[%s0 + $0x8] sm:$0xff]
    %v49 = vld [vmem:[%s0 + $0x10] sm:$0xff]
    %v50 = vld [vmem:[%s0 + $0x18] sm:$0xff]
    %v51 = vld [vmem:[%s0 + $0x20] sm:$0xff]
    %v52 = vld [vmem:[%s0 + $0x28] sm:$0xff]
    %v53 = vld [vmem:[%s0 + $0x30] sm:$0xff]
    %v54 = vld [vmem:[%s0 + $0x38] sm:$0xff]
    %v55 = vld [vmem:[%s0 + $0x40] sm:$0xff]
    %v56 = vld [vmem:[%s0 + $0x48] sm:$0xff]
    %v57 = vld [vmem:[%s0 + $0x50] sm:$0xff]
    %v58 = vld [vmem:[%s0 + $0x58] sm:$0xff]
    %v59 = vld [vmem:[%s0 + $0x60] sm:$0xff]
    %v60 = vld [vmem:[%s0 + $0x68] sm:$0xff]
    %v61 = vld [vmem:[%s0 + $0x70] sm:$0xff]
    %v62 = vld [vmem:[%s0 + $0x78] sm:$0xff]
    %v63 = vld [vmem:[#allocation3] sm:$0xff]
    %v64 = vld [vmem:[#allocation3 + $0x8] sm:$0xff]
    %v65 = vld [vmem:[#allocation3 + $0x10] sm:$0xff]
    %v66 = vld [vmem:[#allocation3 + $0x18] sm:$0xff]
    %v67 = vld [vmem:[#allocation3 + $0x20] sm:$0xff]
    %v68 = vld [vmem:[#allocation3 + $0x28] sm:$0xff]
    %v69 = vld [vmem:[#allocation3 + $0x30] sm:$0xff]
    %v70 = vld [vmem:[#allocation3 + $0x38] sm:$0xff]
    %v71 = vld [vmem:[#allocation3 + $0x40] sm:$0xff]
    %v72 = vld [vmem:[#allocation3 + $0x48] sm:$0xff]
    %v73 = vld [vmem:[#allocation3 + $0x50] sm:$0xff]
    %v74 = vld [vmem:[#allocation3 + $0x58] sm:$0xff]
    %v75 = vld [vmem:[#allocation3 + $0x60] sm:$0xff]
    %v76 = vld [vmem:[#allocation3 + $0x68] sm:$0xff]
    %v77 = vld [vmem:[#allocation3 + $0x70] sm:$0xff]
    %v78 = vld [vmem:[#allocation3 + $0x78] sm:$0xff]
    %v79 = vld [vmem:[#allocation3 + $0x80] sm:$0xff]
    %v80 = vld [vmem:[#allocation3 + $0x88] sm:$0xff]
    %v81 = vld [vmem:[#allocation3 + $0x90] sm:$0xff]
    %v82 = vld [vmem:[#allocation3 + $0x98] sm:$0xff]
    %v83 = vld [vmem:[#allocation3 + $0xa0] sm:$0xff]
    %v84 = vld [vmem:[#allocation3 + $0xa8] sm:$0xff]
    %v85 = vld [vmem:[#allocation3 + $0xb0] sm:$0xff]
    %v86 = vld [vmem:[#allocation3 + $0xb8] sm:$0xff]
    %v87 = vld [vmem:[#allocation3 + $0xc0] sm:$0xff]
    %v88 = vld [vmem:[#allocation3 + $0xc8] sm:$0xff]
    %v89 = vld [vmem:[#allocation3 + $0xd0] sm:$0xff]
    %v90 = vld [vmem:[#allocation3 + $0xd8] sm:$0xff]
    %v91 = vld [vmem:[#allocation3 + $0xe0] sm:$0xff]
    %v92 = vld [vmem:[#allocation3 + $0xe8] sm:$0xff]
    %v93 = vld [vmem:[#allocation3 + $0xf0] sm:$0xff]
    %v94 = vld [vmem:[#allocation3 + $0xf8] sm:$0xff]
    %v95 = vld [vmem:[#allocation3 + $0x100] sm:$0xff]
    %v96 = vld [vmem:[#allocation3 + $0x108] sm:$0xff]
    %v97 = vld [vmem:[#allocation3 + $0x110] sm:$0xff]
    %v98 = vld [vmem:[#allocation3 + $0x118] sm:$0xff]
    %v99 = vld [vmem:[#allocation3 + $0x120] sm:$0xff]
    %v100 = vld [vmem:[#allocation3 + $0x128] sm:$0xff]
    %v101 = vld [vmem:[#allocation3 + $0x130] sm:$0xff]
    %v102 = vld [vmem:[#allocation3 + $0x138] sm:$0xff]
    %v103 = vld [vmem:[#allocation3 + $0x140] sm:$0xff]
    %v104 = vld [vmem:[#allocation3 + $0x148] sm:$0xff]
    %v105 = vld [vmem:[#allocation3 + $0x150] sm:$0xff]
    %v106 = vld [vmem:[#allocation3 + $0x158] sm:$0xff]
    %v107 = vld [vmem:[#allocation3 + $0x160] sm:$0xff]
    %v108 = vld [vmem:[#allocation3 + $0x168] sm:$0xff]
    %v109 = vld [vmem:[#allocation3 + $0x170] sm:$0xff]
    %v110 = vld [vmem:[#allocation3 + $0x178] sm:$0xff]
    %v111 = vld [vmem:[#allocation3 + $0x180] sm:$0xff]
    %v112 = vld [vmem:[#allocation3 + $0x188] sm:$0xff]
    %v113 = vld [vmem:[#allocation3 + $0x190] sm:$0xff]
    %v114 = vld [vmem:[#allocation3 + $0x198] sm:$0xff]
    %v115 = vld [vmem:[#allocation3 + $0x1a0] sm:$0xff]
    %v116 = vld [vmem:[#allocation3 + $0x1a8] sm:$0xff]
    %v117 = vld [vmem:[#allocation3 + $0x1b0] sm:$0xff]
    %v118 = vld [vmem:[#allocation3 + $0x1b8] sm:$0xff]
    %v119 = vld [vmem:[#allocation3 + $0x1c0] sm:$0xff]
    %v120 = vld [vmem:[#allocation3 + $0x1c8] sm:$0xff]
    %v121 = vld [vmem:[#allocation3 + $0x1d0] sm:$0xff]
    %v122 = vld [vmem:[#allocation3 + $0x1d8] sm:$0xff]
    %v123 = vld [vmem:[#allocation3 + $0x1e0] sm:$0xff]
    %v124 = vld [vmem:[#allocation3 + $0x1e8] sm:$0xff]
    %v125 = vld [vmem:[#allocation3 + $0x1f0] sm:$0xff]
    %v126 = vld [vmem:[#allocation3 + $0x1f8] sm:$0xff]
    %v127 = vld [vmem:[#allocation3 + $0x200] sm:$0xff]
    %v128 = vld [vmem:[#allocation3 + $0x208] sm:$0xff]
    %v129 = vld [vmem:[#allocation3 + $0x210] sm:$0xff]
    %v130 = vld [vmem:[#allocation3 + $0x218] sm:$0xff]
    %v131 = vld [vmem:[#allocation3 + $0x220] sm:$0xff]
    %v132 = vld [vmem:[#allocation3 + $0x228] sm:$0xff]
    %v133 = vld [vmem:[#allocation3 + $0x230] sm:$0xff]
    %v134 = vld [vmem:[#allocation3 + $0x238] sm:$0xff]
    %v135 = vld [vmem:[#allocation3 + $0x240] sm:$0xff]
    %v136 = vld [vmem:[#allocation3 + $0x248] sm:$0xff]
    %v137 = vld [vmem:[#allocation3 + $0x250] sm:$0xff]
    %v138 = vld [vmem:[#allocation3 + $0x258] sm:$0xff]
    %v139 = vld [vmem:[#allocation3 + $0x260] sm:$0xff]
    %v140 = vld [vmem:[#allocation3 + $0x268] sm:$0xff]
    %v141 = vld [vmem:[#allocation3 + $0x270] sm:$0xff]
    %v142 = vld [vmem:[#allocation3 + $0x278] sm:$0xff]
    %v143 = vld [vmem:[#allocation3 + $0x280] sm:$0xff]
    %v144 = vld [vmem:[#allocation3 + $0x288] sm:$0xff]
    %v145 = vld [vmem:[#allocation3 + $0x290] sm:$0xff]
    %v146 = vld [vmem:[#allocation3 + $0x298] sm:$0xff]
    %v147 = vld [vmem:[#allocation3 + $0x2a0] sm:$0xff]
    %v148 = vld [vmem:[#allocation3 + $0x2a8] sm:$0xff]
    %v149 = vld [vmem:[#allocation3 + $0x2b0] sm:$0xff]
    %v150 = vld [vmem:[#allocation3 + $0x2b8] sm:$0xff]
    %v151 = vld [vmem:[#allocation3 + $0x2c0] sm:$0xff]
    %v152 = vld [vmem:[#allocation3 + $0x2c8] sm:$0xff]
    %v153 = vld [vmem:[#allocation3 + $0x2d0] sm:$0xff]
    %v154 = vld [vmem:[#allocation3 + $0x2d8] sm:$0xff]
    %v155 = vld [vmem:[#allocation3 + $0x2e0] sm:$0xff]
    %v156 = vld [vmem:[#allocation3 + $0x2e8] sm:$0xff]
    %v157 = vld [vmem:[#allocation3 + $0x2f0] sm:$0xff]
    %v158 = vld [vmem:[#allocation3 + $0x2f8] sm:$0xff]
    %v159 = vld [vmem:[#allocation3 + $0x300] sm:$0xff]
    %v160 = vld [vmem:[#allocation3 + $0x308] sm:$0xff]
    %v161 = vld [vmem:[#allocation3 + $0x310] sm:$0xff]
    %v162 = vld [vmem:[#allocation3 + $0x318] sm:$0xff]
    %v163 = vld [vmem:[#allocation3 + $0x320] sm:$0xff]
    %v164 = vld [vmem:[#allocation3 + $0x328] sm:$0xff]
    %v165 = vld [vmem:[#allocation3 + $0x330] sm:$0xff]
    %v166 = vld [vmem:[#allocation3 + $0x338] sm:$0xff]
    %v167 = vld [vmem:[#allocation3 + $0x340] sm:$0xff]
    %v168 = vld [vmem:[#allocation3 + $0x348] sm:$0xff]
    %v169 = vld [vmem:[#allocation3 + $0x350] sm:$0xff]
    %v170 = vld [vmem:[#allocation3 + $0x358] sm:$0xff]
    %v171 = vld [vmem:[#allocation3 + $0x360] sm:$0xff]
    %v172 = vld [vmem:[#allocation3 + $0x368] sm:$0xff]
    %v173 = vld [vmem:[#allocation3 + $0x370] sm:$0xff]
    %v174 = vld [vmem:[#allocation3 + $0x378] sm:$0xff]
    %v175 = vld [vmem:[#allocation3 + $0x380] sm:$0xff]
    %v176 = vld [vmem:[#allocation3 + $0x388] sm:$0xff]
    %v177 = vld [vmem:[#allocation3 + $0x390] sm:$0xff]
    %v178 = vld [vmem:[#allocation3 + $0x398] sm:$0xff]
    %v179 = vld [vmem:[#allocation3 + $0x3a0] sm:$0xff]
    %v180 = vld [vmem:[#allocation3 + $0x3a8] sm:$0xff]
    %v181 = vld [vmem:[#allocation3 + $0x3b0] sm:$0xff]
    %v182 = vld [vmem:[#allocation3 + $0x3b8] sm:$0xff]
    %v183 = vld [vmem:[#allocation3 + $0x3c0] sm:$0xff]
    %v184 = vld [vmem:[#allocation3 + $0x3c8] sm:$0xff]
    %v185 = vld [vmem:[#allocation3 + $0x3d0] sm:$0xff]
    %v186 = vld [vmem:[#allocation3 + $0x3d8] sm:$0xff]
    %v187 = vld [vmem:[#allocation3 + $0x3e0] sm:$0xff]
    %v188 = vld [vmem:[#allocation3 + $0x3e8] sm:$0xff]
    %v189 = vld [vmem:[#allocation3 + $0x3f0] sm:$0xff]
    %v190 = vld [vmem:[#allocation3 + $0x3f8] sm:$0xff]
    %v191 = vld [vmem:[#allocation3 + $0x400] sm:$0xff]
    %v192 = vld [vmem:[#allocation3 + $0x408] sm:$0xff]
    %v193 = vld [vmem:[#allocation3 + $0x410] sm:$0xff]
    %v194 = vld [vmem:[#allocation3 + $0x418] sm:$0xff]
    %v195 = vld [vmem:[#allocation3 + $0x420] sm:$0xff]
    %v196 = vld [vmem:[#allocation3 + $0x428] sm:$0xff]
    %v197 = vld [vmem:[#allocation3 + $0x430] sm:$0xff]
    %v198 = vld [vmem:[#allocation3 + $0x438] sm:$0xff]
    %v199 = vld [vmem:[#allocation3 + $0x440] sm:$0xff]
    %v200 = vld [vmem:[#allocation3 + $0x448] sm:$0xff]
    %v201 = vld [vmem:[#allocation3 + $0x450] sm:$0xff]
    %v202 = vld [vmem:[#allocation3 + $0x458] sm:$0xff]
    %v203 = vld [vmem:[#allocation3 + $0x460] sm:$0xff]
    %v204 = vld [vmem:[#allocation3 + $0x468] sm:$0xff]
    %v205 = vld [vmem:[#allocation3 + $0x470] sm:$0xff]
    %v206 = vld [vmem:[#allocation3 + $0x478] sm:$0xff]
    %v207 = vld [vmem:[#allocation3 + $0x480] sm:$0xff]
    %v208 = vld [vmem:[#allocation3 + $0x488] sm:$0xff]
    %v209 = vld [vmem:[#allocation3 + $0x490] sm:$0xff]
    %v210 = vld [vmem:[#allocation3 + $0x498] sm:$0xff]
    %v211 = vld [vmem:[#allocation3 + $0x4a0] sm:$0xff]
    %v212 = vld [vmem:[#allocation3 + $0x4a8] sm:$0xff]
    %v213 = vld [vmem:[#allocation3 + $0x4b0] sm:$0xff]
    %v214 = vld [vmem:[#allocation3 + $0x4b8] sm:$0xff]
    %v215 = vld [vmem:[#allocation3 + $0x4c0] sm:$0xff]
    %v216 = vld [vmem:[#allocation3 + $0x4c8] sm:$0xff]
    %v217 = vld [vmem:[#allocation3 + $0x4d0] sm:$0xff]
    %v218 = vld [vmem:[#allocation3 + $0x4d8] sm:$0xff]
    %v219 = vld [vmem:[#allocation3 + $0x4e0] sm:$0xff]
    %v220 = vld [vmem:[#allocation3 + $0x4e8] sm:$0xff]
    %v221 = vld [vmem:[#allocation3 + $0x4f0] sm:$0xff]
    %v222 = vld [vmem:[#allocation3 + $0x4f8] sm:$0xff]
    %v223 = vld [vmem:[#allocation3 + $0x500] sm:$0xff]
    %v224 = vld [vmem:[#allocation3 + $0x508] sm:$0xff]
    %v225 = vld [vmem:[#allocation3 + $0x510] sm:$0xff]
    %v226 = vld [vmem:[#allocation3 + $0x518] sm:$0xff]
    %v227 = vld [vmem:[#allocation3 + $0x520] sm:$0xff]
    %v228 = vld [vmem:[#allocation3 + $0x528] sm:$0xff]
    %v229 = vld [vmem:[#allocation3 + $0x530] sm:$0xff]
    %v230 = vld [vmem:[#allocation3 + $0x538] sm:$0xff]
    %v231 = vld [vmem:[#allocation3 + $0x540] sm:$0xff]
    %v232 = vld [vmem:[#allocation3 + $0x548] sm:$0xff]
    %v233 = vld [vmem:[#allocation3 + $0x550] sm:$0xff]
    %v234 = vld [vmem:[#allocation3 + $0x558] sm:$0xff]
    %v235 = vld [vmem:[#allocation3 + $0x560] sm:$0xff]
    %v236 = vld [vmem:[#allocation3 + $0x568] sm:$0xff]
    %v237 = vld [vmem:[#allocation3 + $0x570] sm:$0xff]
    %v238 = vld [vmem:[#allocation3 + $0x578] sm:$0xff]
    %v239 = vld [vmem:[#allocation3 + $0x580] sm:$0xff]
    %v240 = vld [vmem:[#allocation3 + $0x588] sm:$0xff]
    %v241 = vld [vmem:[#allocation3 + $0x590] sm:$0xff]
    %v242 = vld [vmem:[#allocation3 + $0x598] sm:$0xff]
    %v243 = vld [vmem:[#allocation3 + $0x5a0] sm:$0xff]
    %v244 = vld [vmem:[#allocation3 + $0x5a8] sm:$0xff]
    %v245 = vld [vmem:[#allocation3 + $0x5b0] sm:$0xff]
    %v246 = vld [vmem:[#allocation3 + $0x5b8] sm:$0xff]
    %v247 = vld [vmem:[#allocation3 + $0x5c0] sm:$0xff]
    %v248 = vld [vmem:[#allocation3 + $0x5c8] sm:$0xff]
    %v249 = vld [vmem:[#allocation3 + $0x5d0] sm:$0xff]
    %v250 = vld [vmem:[#allocation3 + $0x5d8] sm:$0xff]
    %v251 = vld [vmem:[#allocation3 + $0x5e0] sm:$0xff]
    %v252 = vld [vmem:[#allocation3 + $0x5e8] sm:$0xff]
    %v253 = vld [vmem:[#allocation3 + $0x5f0] sm:$0xff]
    %v254 = vld [vmem:[#allocation3 + $0x5f8] sm:$0xff]
    %v255 = vld [vmem:[#allocation3 + $0x600] sm:$0xff]
    %v256 = vld [vmem:[#allocation3 + $0x608] sm:$0xff]
    %v257 = vld [vmem:[#allocation3 + $0x610] sm:$0xff]
    %v258 = vld [vmem:[#allocation3 + $0x618] sm:$0xff]
    %v259 = vld [vmem:[#allocation3 + $0x620] sm:$0xff]
    %v260 = vld [vmem:[#allocation3 + $0x628] sm:$0xff]
    %v261 = vld [vmem:[#allocation3 + $0x630] sm:$0xff]
    %v262 = vld [vmem:[#allocation3 + $0x638] sm:$0xff]
    %v263 = vld [vmem:[#allocation3 + $0x640] sm:$0xff]
    %v264 = vld [vmem:[#allocation3 + $0x648] sm:$0xff]
    %v265 = vld [vmem:[#allocation3 + $0x650] sm:$0xff]
    %v266 = vld [vmem:[#allocation3 + $0x658] sm:$0xff]
    %v267 = vld [vmem:[#allocation3 + $0x660] sm:$0xff]
    %v268 = vld [vmem:[#allocation3 + $0x668] sm:$0xff]
    %v269 = vld [vmem:[#allocation3 + $0x670] sm:$0xff]
    %v270 = vld [vmem:[#allocation3 + $0x678] sm:$0xff]
    %v271 = vld [vmem:[#allocation3 + $0x680] sm:$0xff]
    %v272 = vld [vmem:[#allocation3 + $0x688] sm:$0xff]
    %v273 = vld [vmem:[#allocation3 + $0x690] sm:$0xff]
    %v274 = vld [vmem:[#allocation3 + $0x698] sm:$0xff]
    %v275 = vld [vmem:[#allocation3 + $0x6a0] sm:$0xff]
    %v276 = vld [vmem:[#allocation3 + $0x6a8] sm:$0xff]
    %v277 = vld [vmem:[#allocation3 + $0x6b0] sm:$0xff]
    %v278 = vld [vmem:[#allocation3 + $0x6b8] sm:$0xff]
    %v279 = vld [vmem:[#allocation3 + $0x6c0] sm:$0xff]
    %v280 = vld [vmem:[#allocation3 + $0x6c8] sm:$0xff]
    %v281 = vld [vmem:[#allocation3 + $0x6d0] sm:$0xff]
    %v282 = vld [vmem:[#allocation3 + $0x6d8] sm:$0xff]
    %v283 = vld [vmem:[#allocation3 + $0x6e0] sm:$0xff]
    %v284 = vld [vmem:[#allocation3 + $0x6e8] sm:$0xff]
    %v285 = vld [vmem:[#allocation3 + $0x6f0] sm:$0xff]
    %v286 = vld [vmem:[#allocation3 + $0x6f8] sm:$0xff]
    %v287 = vld [vmem:[#allocation3 + $0x700] sm:$0xff]
    %v288 = vld [vmem:[#allocation3 + $0x708] sm:$0xff]
    %v289 = vld [vmem:[#allocation3 + $0x710] sm:$0xff]
    %v290 = vld [vmem:[#allocation3 + $0x718] sm:$0xff]
    %v291 = vld [vmem:[#allocation3 + $0x720] sm:$0xff]
    %v292 = vld [vmem:[#allocation3 + $0x728] sm:$0xff]
    %v293 = vld [vmem:[#allocation3 + $0x730] sm:$0xff]
    %v294 = vld [vmem:[#allocation3 + $0x738] sm:$0xff]
    %v295 = vld [vmem:[#allocation3 + $0x740] sm:$0xff]
    %v296 = vld [vmem:[#allocation3 + $0x748] sm:$0xff]
    %v297 = vld [vmem:[#allocation3 + $0x750] sm:$0xff]
    %v298 = vld [vmem:[#allocation3 + $0x758] sm:$0xff]
    %v299 = vld [vmem:[#allocation3 + $0x760] sm:$0xff]
    %v300 = vld [vmem:[#allocation3 + $0x768] sm:$0xff]
    %v301 = vld [vmem:[#allocation3 + $0x770] sm:$0xff]
    %v302 = vld [vmem:[#allocation3 + $0x778] sm:$0xff]
    %v303 = vld [vmem:[#allocation3 + $0x780] sm:$0xff]
    %v304 = vld [vmem:[#allocation3 + $0x788] sm:$0xff]
    %v305 = vld [vmem:[#allocation3 + $0x790] sm:$0xff]
    %v306 = vld [vmem:[#allocation3 + $0x798] sm:$0xff]
    %v307 = vld [vmem:[#allocation3 + $0x7a0] sm:$0xff]
    %v308 = vld [vmem:[#allocation3 + $0x7a8] sm:$0xff]
    %v309 = vld [vmem:[#allocation3 + $0x7b0] sm:$0xff]
    %v310 = vld [vmem:[#allocation3 + $0x7b8] sm:$0xff]
    %v311 = vld [vmem:[#allocation3 + $0x7c0] sm:$0xff]
    %v312 = vld [vmem:[#allocation3 + $0x7c8] sm:$0xff]
    %v313 = vld [vmem:[#allocation3 + $0x7d0] sm:$0xff]
    %v314 = vld [vmem:[#allocation3 + $0x7d8] sm:$0xff]
    %v315 = vld [vmem:[#allocation3 + $0x7e0] sm:$0xff]
    %v316 = vld [vmem:[#allocation3 + $0x7e8] sm:$0xff]
    %v317 = vld [vmem:[#allocation3 + $0x7f0] sm:$0xff]
    %v318 = vld [vmem:[#allocation3 + $0x7f8] sm:$0xff]
    %v319 = vld [vmem:[%s3] sm:$0xff]
    %v321 = vlaneseq
    %v322 = vshrl.u32 %v321, 7
    %v323 = vsub.s32 0, %v322
    %v324 = vrot.slane %v319, %v323
    %v325 = vlaneseq
    %v326 = vshrl.u32 %v325, 7
    %v327 = vsub.s32 1, %v326
    %v328 = vrot.slane %v319, %v327
    %v329 = vlaneseq
    %v330 = vshrl.u32 %v329, 7
    %v331 = vsub.s32 2, %v330
    %v332 = vrot.slane %v319, %v331
    %v333 = vlaneseq
    %v334 = vshrl.u32 %v333, 7
    %v335 = vsub.s32 3, %v334
    %v336 = vrot.slane %v319, %v335
    %v337 = vlaneseq
    %v338 = vshrl.u32 %v337, 7
    %v339 = vsub.s32 4, %v338
    %v340 = vrot.slane %v319, %v339
    %v341 = vlaneseq
    %v342 = vshrl.u32 %v341, 7
    %v343 = vsub.s32 5, %v342
    %v344 = vrot.slane %v319, %v343
    %v345 = vlaneseq
    %v346 = vshrl.u32 %v345, 7
    %v347 = vsub.s32 6, %v346
    %v348 = vrot.slane %v319, %v347
    %v349 = vlaneseq
    %v350 = vshrl.u32 %v349, 7
    %v351 = vsub.s32 7, %v350
    %v352 = vrot.slane %v319, %v351
    %v377 = vunpack.c.l.b16 %v47
    %v378 = vunpack.c.h.b16 %v47
    %v379 = vunpack.c.l.b16 %v48
    %v380 = vunpack.c.h.b16 %v48
    %v381 = vunpack.c.l.b16 %v49
    %v382 = vunpack.c.h.b16 %v49
    %v383 = vunpack.c.l.b16 %v50
    %v384 = vunpack.c.h.b16 %v50
    %v385 = vunpack.c.l.b16 %v51
    %v386 = vunpack.c.h.b16 %v51
    %v387 = vunpack.c.l.b16 %v52
    %v388 = vunpack.c.h.b16 %v52
    %v389 = vunpack.c.l.b16 %v53
    %v390 = vunpack.c.h.b16 %v53
    %v391 = vunpack.c.l.b16 %v54
    %v392 = vunpack.c.h.b16 %v54
    %v393 = vunpack.c.l.b16 %v55
    %v394 = vunpack.c.h.b16 %v55
    %v395 = vunpack.c.l.b16 %v56
    %v396 = vunpack.c.h.b16 %v56
    %v397 = vunpack.c.l.b16 %v57
    %v398 = vunpack.c.h.b16 %v57
    %v399 = vunpack.c.l.b16 %v58
    %v400 = vunpack.c.h.b16 %v58
    %v401 = vunpack.c.l.b16 %v59
    %v402 = vunpack.c.h.b16 %v59
    %v403 = vunpack.c.l.b16 %v60
    %v404 = vunpack.c.h.b16 %v60
    %v405 = vunpack.c.l.b16 %v61
    %v406 = vunpack.c.h.b16 %v61
    %v407 = vunpack.c.l.b16 %v62
    %v408 = vunpack.c.h.b16 %v62
    %v409 = vpack.c.b16 %v381, %v377
    %v410 = vpack.c.b16 %v382, %v378
    %v411 = vpack.c.b16 %v383, %v379
    %v412 = vpack.c.b16 %v384, %v380
    %v413 = vpack.c.b16 %v389, %v385
    %v414 = vpack.c.b16 %v390, %v386
    %v415 = vpack.c.b16 %v391, %v387
    %v416 = vpack.c.b16 %v392, %v388
    %v417 = vpack.c.b16 %v397, %v393
    %v418 = vpack.c.b16 %v398, %v394
    %v419 = vpack.c.b16 %v399, %v395
    %v420 = vpack.c.b16 %v400, %v396
    %v421 = vpack.c.b16 %v405, %v401
    %v422 = vpack.c.b16 %v406, %v402
    %v423 = vpack.c.b16 %v407, %v403
    %v424 = vpack.c.b16 %v408, %v404
    %v697 = vunpack.c.l.b16 %v63
    %v698 = vunpack.c.h.b16 %v63
    %v699 = vunpack.c.l.b16 %v64
    %v700 = vunpack.c.h.b16 %v64
    %v701 = vunpack.c.l.b16 %v65
    %v702 = vunpack.c.h.b16 %v65
    %v703 = vunpack.c.l.b16 %v66
    %v704 = vunpack.c.h.b16 %v66
    %v705 = vunpack.c.l.b16 %v67
    %v706 = vunpack.c.h.b16 %v67
    %v707 = vunpack.c.l.b16 %v68
    %v708 = vunpack.c.h.b16 %v68
    %v709 = vunpack.c.l.b16 %v69
    %v710 = vunpack.c.h.b16 %v69
    %v711 = vunpack.c.l.b16 %v70
    %v712 = vunpack.c.h.b16 %v70
    %v713 = vunpack.c.l.b16 %v71
    %v714 = vunpack.c.h.b16 %v71
    %v715 = vunpack.c.l.b16 %v72
    %v716 = vunpack.c.h.b16 %v72
    %v717 = vunpack.c.l.b16 %v73
    %v718 = vunpack.c.h.b16 %v73
    %v719 = vunpack.c.l.b16 %v74
    %v720 = vunpack.c.h.b16 %v74
    %v721 = vunpack.c.l.b16 %v75
    %v722 = vunpack.c.h.b16 %v75
    %v723 = vunpack.c.l.b16 %v76
    %v724 = vunpack.c.h.b16 %v76
    %v725 = vunpack.c.l.b16 %v77
    %v726 = vunpack.c.h.b16 %v77
    %v727 = vunpack.c.l.b16 %v78
    %v728 = vunpack.c.h.b16 %v78
    %v729 = vunpack.c.l.b16 %v79
    %v730 = vunpack.c.h.b16 %v79
    %v731 = vunpack.c.l.b16 %v80
    %v732 = vunpack.c.h.b16 %v80
    %v733 = vunpack.c.l.b16 %v81
    %v734 = vunpack.c.h.b16 %v81
    %v735 = vunpack.c.l.b16 %v82
    %v736 = vunpack.c.h.b16 %v82
    %v737 = vunpack.c.l.b16 %v83
    %v738 = vunpack.c.h.b16 %v83
    %v739 = vunpack.c.l.b16 %v84
    %v740 = vunpack.c.h.b16 %v84
    %v741 = vunpack.c.l.b16 %v85
    %v742 = vunpack.c.h.b16 %v85
    %v743 = vunpack.c.l.b16 %v86
    %v744 = vunpack.c.h.b16 %v86
    %v745 = vunpack.c.l.b16 %v87
    %v746 = vunpack.c.h.b16 %v87
    %v747 = vunpack.c.l.b16 %v88
    %v748 = vunpack.c.h.b16 %v88
    %v749 = vunpack.c.l.b16 %v89
    %v750 = vunpack.c.h.b16 %v89
    %v751 = vunpack.c.l.b16 %v90
    %v752 = vunpack.c.h.b16 %v90
    %v753 = vunpack.c.l.b16 %v91
    %v754 = vunpack.c.h.b16 %v91
    %v755 = vunpack.c.l.b16 %v92
    %v756 = vunpack.c.h.b16 %v92
    %v757 = vunpack.c.l.b16 %v93
    %v758 = vunpack.c.h.b16 %v93
    %v759 = vunpack.c.l.b16 %v94
    %v760 = vunpack.c.h.b16 %v94
    %v761 = vunpack.c.l.b16 %v95
    %v762 = vunpack.c.h.b16 %v95
    %v763 = vunpack.c.l.b16 %v96
    %v764 = vunpack.c.h.b16 %v96
    %v765 = vunpack.c.l.b16 %v97
    %v766 = vunpack.c.h.b16 %v97
    %v767 = vunpack.c.l.b16 %v98
    %v768 = vunpack.c.h.b16 %v98
    %v769 = vunpack.c.l.b16 %v99
    %v770 = vunpack.c.h.b16 %v99
    %v771 = vunpack.c.l.b16 %v100
    %v772 = vunpack.c.h.b16 %v100
    %v773 = vunpack.c.l.b16 %v101
    %v774 = vunpack.c.h.b16 %v101
    %v775 = vunpack.c.l.b16 %v102
    %v776 = vunpack.c.h.b16 %v102
    %v777 = vunpack.c.l.b16 %v103
    %v778 = vunpack.c.h.b16 %v103
    %v779 = vunpack.c.l.b16 %v104
    %v780 = vunpack.c.h.b16 %v104
    %v781 = vunpack.c.l.b16 %v105
    %v782 = vunpack.c.h.b16 %v105
    %v783 = vunpack.c.l.b16 %v106
    %v784 = vunpack.c.h.b16 %v106
    %v785 = vunpack.c.l.b16 %v107
    %v786 = vunpack.c.h.b16 %v107
    %v787 = vunpack.c.l.b16 %v108
    %v788 = vunpack.c.h.b16 %v108
    %v789 = vunpack.c.l.b16 %v109
    %v790 = vunpack.c.h.b16 %v109
    %v791 = vunpack.c.l.b16 %v110
    %v792 = vunpack.c.h.b16 %v110
    %v793 = vunpack.c.l.b16 %v111
    %v794 = vunpack.c.h.b16 %v111
    %v795 = vunpack.c.l.b16 %v112
    %v796 = vunpack.c.h.b16 %v112
    %v797 = vunpack.c.l.b16 %v113
    %v798 = vunpack.c.h.b16 %v113
    %v799 = vunpack.c.l.b16 %v114
    %v800 = vunpack.c.h.b16 %v114
    %v801 = vunpack.c.l.b16 %v115
    %v802 = vunpack.c.h.b16 %v115
    %v803 = vunpack.c.l.b16 %v116
    %v804 = vunpack.c.h.b16 %v116
    %v805 = vunpack.c.l.b16 %v117
    %v806 = vunpack.c.h.b16 %v117
    %v807 = vunpack.c.l.b16 %v118
    %v808 = vunpack.c.h.b16 %v118
    %v809 = vunpack.c.l.b16 %v119
    %v810 = vunpack.c.h.b16 %v119
    %v811 = vunpack.c.l.b16 %v120
    %v812 = vunpack.c.h.b16 %v120
    %v813 = vunpack.c.l.b16 %v121
    %v814 = vunpack.c.h.b16 %v121
    %v815 = vunpack.c.l.b16 %v122
    %v816 = vunpack.c.h.b16 %v122
    %v817 = vunpack.c.l.b16 %v123
    %v818 = vunpack.c.h.b16 %v123
    %v819 = vunpack.c.l.b16 %v124
    %v820 = vunpack.c.h.b16 %v124
    %v821 = vunpack.c.l.b16 %v125
    %v822 = vunpack.c.h.b16 %v125
    %v823 = vunpack.c.l.b16 %v126
    %v824 = vunpack.c.h.b16 %v126
    %v825 = vunpack.c.l.b16 %v127
    %v826 = vunpack.c.h.b16 %v127
    %v827 = vunpack.c.l.b16 %v128
    %v828 = vunpack.c.h.b16 %v128
    %v829 = vunpack.c.l.b16 %v129
    %v830 = vunpack.c.h.b16 %v129
    %v831 = vunpack.c.l.b16 %v130
    %v832 = vunpack.c.h.b16 %v130
    %v833 = vunpack.c.l.b16 %v131
    %v834 = vunpack.c.h.b16 %v131
    %v835 = vunpack.c.l.b16 %v132
    %v836 = vunpack.c.h.b16 %v132
    %v837 = vunpack.c.l.b16 %v133
    %v838 = vunpack.c.h.b16 %v133
    %v839 = vunpack.c.l.b16 %v134
    %v840 = vunpack.c.h.b16 %v134
    %v841 = vunpack.c.l.b16 %v135
    %v842 = vunpack.c.h.b16 %v135
    %v843 = vunpack.c.l.b16 %v136
    %v844 = vunpack.c.h.b16 %v136
    %v845 = vunpack.c.l.b16 %v137
    %v846 = vunpack.c.h.b16 %v137
    %v847 = vunpack.c.l.b16 %v138
    %v848 = vunpack.c.h.b16 %v138
    %v849 = vunpack.c.l.b16 %v139
    %v850 = vunpack.c.h.b16 %v139
    %v851 = vunpack.c.l.b16 %v140
    %v852 = vunpack.c.h.b16 %v140
    %v853 = vunpack.c.l.b16 %v141
    %v854 = vunpack.c.h.b16 %v141
    %v855 = vunpack.c.l.b16 %v142
    %v856 = vunpack.c.h.b16 %v142
    %v857 = vunpack.c.l.b16 %v143
    %v858 = vunpack.c.h.b16 %v143
    %v859 = vunpack.c.l.b16 %v144
    %v860 = vunpack.c.h.b16 %v144
    %v861 = vunpack.c.l.b16 %v145
    %v862 = vunpack.c.h.b16 %v145
    %v863 = vunpack.c.l.b16 %v146
    %v864 = vunpack.c.h.b16 %v146
    %v865 = vunpack.c.l.b16 %v147
    %v866 = vunpack.c.h.b16 %v147
    %v867 = vunpack.c.l.b16 %v148
    %v868 = vunpack.c.h.b16 %v148
    %v869 = vunpack.c.l.b16 %v149
    %v870 = vunpack.c.h.b16 %v149
    %v871 = vunpack.c.l.b16 %v150
    %v872 = vunpack.c.h.b16 %v150
    %v873 = vunpack.c.l.b16 %v151
    %v874 = vunpack.c.h.b16 %v151
    %v875 = vunpack.c.l.b16 %v152
    %v876 = vunpack.c.h.b16 %v152
    %v877 = vunpack.c.l.b16 %v153
    %v878 = vunpack.c.h.b16 %v153
    %v879 = vunpack.c.l.b16 %v154
    %v880 = vunpack.c.h.b16 %v154
    %v881 = vunpack.c.l.b16 %v155
    %v882 = vunpack.c.h.b16 %v155
    %v883 = vunpack.c.l.b16 %v156
    %v884 = vunpack.c.h.b16 %v156
    %v885 = vunpack.c.l.b16 %v157
    %v886 = vunpack.c.h.b16 %v157
    %v887 = vunpack.c.l.b16 %v158
    %v888 = vunpack.c.h.b16 %v158
    %v889 = vunpack.c.l.b16 %v159
    %v890 = vunpack.c.h.b16 %v159
    %v891 = vunpack.c.l.b16 %v160
    %v892 = vunpack.c.h.b16 %v160
    %v893 = vunpack.c.l.b16 %v161
    %v894 = vunpack.c.h.b16 %v161
    %v895 = vunpack.c.l.b16 %v162
    %v896 = vunpack.c.h.b16 %v162
    %v897 = vunpack.c.l.b16 %v163
    %v898 = vunpack.c.h.b16 %v163
    %v899 = vunpack.c.l.b16 %v164
    %v900 = vunpack.c.h.b16 %v164
    %v901 = vunpack.c.l.b16 %v165
    %v902 = vunpack.c.h.b16 %v165
    %v903 = vunpack.c.l.b16 %v166
    %v904 = vunpack.c.h.b16 %v166
    %v905 = vunpack.c.l.b16 %v167
    %v906 = vunpack.c.h.b16 %v167
    %v907 = vunpack.c.l.b16 %v168
    %v908 = vunpack.c.h.b16 %v168
    %v909 = vunpack.c.l.b16 %v169
    %v910 = vunpack.c.h.b16 %v169
    %v911 = vunpack.c.l.b16 %v170
    %v912 = vunpack.c.h.b16 %v170
    %v913 = vunpack.c.l.b16 %v171
    %v914 = vunpack.c.h.b16 %v171
    %v915 = vunpack.c.l.b16 %v172
    %v916 = vunpack.c.h.b16 %v172
    %v917 = vunpack.c.l.b16 %v173
    %v918 = vunpack.c.h.b16 %v173
    %v919 = vunpack.c.l.b16 %v174
    %v920 = vunpack.c.h.b16 %v174
    %v921 = vunpack.c.l.b16 %v175
    %v922 = vunpack.c.h.b16 %v175
    %v923 = vunpack.c.l.b16 %v176
    %v924 = vunpack.c.h.b16 %v176
    %v925 = vunpack.c.l.b16 %v177
    %v926 = vunpack.c.h.b16 %v177
    %v927 = vunpack.c.l.b16 %v178
    %v928 = vunpack.c.h.b16 %v178
    %v929 = vunpack.c.l.b16 %v179
    %v930 = vunpack.c.h.b16 %v179
    %v931 = vunpack.c.l.b16 %v180
    %v932 = vunpack.c.h.b16 %v180
    %v933 = vunpack.c.l.b16 %v181
    %v934 = vunpack.c.h.b16 %v181
    %v935 = vunpack.c.l.b16 %v182
    %v936 = vunpack.c.h.b16 %v182
    %v937 = vunpack.c.l.b16 %v183
    %v938 = vunpack.c.h.b16 %v183
    %v939 = vunpack.c.l.b16 %v184
    %v940 = vunpack.c.h.b16 %v184
    %v941 = vunpack.c.l.b16 %v185
    %v942 = vunpack.c.h.b16 %v185
    %v943 = vunpack.c.l.b16 %v186
    %v944 = vunpack.c.h.b16 %v186
    %v945 = vunpack.c.l.b16 %v187
    %v946 = vunpack.c.h.b16 %v187
    %v947 = vunpack.c.l.b16 %v188
    %v948 = vunpack.c.h.b16 %v188
    %v949 = vunpack.c.l.b16 %v189
    %v950 = vunpack.c.h.b16 %v189
    %v951 = vunpack.c.l.b16 %v190
    %v952 = vunpack.c.h.b16 %v190
    %v953 = vunpack.c.l.b16 %v191
    %v954 = vunpack.c.h.b16 %v191
    %v955 = vunpack.c.l.b16 %v192
    %v956 = vunpack.c.h.b16 %v192
    %v957 = vunpack.c.l.b16 %v193
    %v958 = vunpack.c.h.b16 %v193
    %v959 = vunpack.c.l.b16 %v194
    %v960 = vunpack.c.h.b16 %v194
    %v961 = vunpack.c.l.b16 %v195
    %v962 = vunpack.c.h.b16 %v195
    %v963 = vunpack.c.l.b16 %v196
    %v964 = vunpack.c.h.b16 %v196
    %v965 = vunpack.c.l.b16 %v197
    %v966 = vunpack.c.h.b16 %v197
    %v967 = vunpack.c.l.b16 %v198
    %v968 = vunpack.c.h.b16 %v198
    %v969 = vunpack.c.l.b16 %v199
    %v970 = vunpack.c.h.b16 %v199
    %v971 = vunpack.c.l.b16 %v200
    %v972 = vunpack.c.h.b16 %v200
    %v973 = vunpack.c.l.b16 %v201
    %v974 = vunpack.c.h.b16 %v201
    %v975 = vunpack.c.l.b16 %v202
    %v976 = vunpack.c.h.b16 %v202
    %v977 = vunpack.c.l.b16 %v203
    %v978 = vunpack.c.h.b16 %v203
    %v979 = vunpack.c.l.b16 %v204
    %v980 = vunpack.c.h.b16 %v204
    %v981 = vunpack.c.l.b16 %v205
    %v982 = vunpack.c.h.b16 %v205
    %v983 = vunpack.c.l.b16 %v206
    %v984 = vunpack.c.h.b16 %v206
    %v985 = vunpack.c.l.b16 %v207
    %v986 = vunpack.c.h.b16 %v207
    %v987 = vunpack.c.l.b16 %v208
    %v988 = vunpack.c.h.b16 %v208
    %v989 = vunpack.c.l.b16 %v209
    %v990 = vunpack.c.h.b16 %v209
    %v991 = vunpack.c.l.b16 %v210
    %v992 = vunpack.c.h.b16 %v210
    %v993 = vunpack.c.l.b16 %v211
    %v994 = vunpack.c.h.b16 %v211
    %v995 = vunpack.c.l.b16 %v212
    %v996 = vunpack.c.h.b16 %v212
    %v997 = vunpack.c.l.b16 %v213
    %v998 = vunpack.c.h.b16 %v213
    %v999 = vunpack.c.l.b16 %v214
    %v1000 = vunpack.c.h.b16 %v214
    %v1001 = vunpack.c.l.b16 %v215
    %v1002 = vunpack.c.h.b16 %v215
    %v1003 = vunpack.c.l.b16 %v216
    %v1004 = vunpack.c.h.b16 %v216
    %v1005 = vunpack.c.l.b16 %v217
    %v1006 = vunpack.c.h.b16 %v217
    %v1007 = vunpack.c.l.b16 %v218
    %v1008 = vunpack.c.h.b16 %v218
    %v1009 = vunpack.c.l.b16 %v219
    %v1010 = vunpack.c.h.b16 %v219
    %v1011 = vunpack.c.l.b16 %v220
    %v1012 = vunpack.c.h.b16 %v220
    %v1013 = vunpack.c.l.b16 %v221
    %v1014 = vunpack.c.h.b16 %v221
    %v1015 = vunpack.c.l.b16 %v222
    %v1016 = vunpack.c.h.b16 %v222
    %v1017 = vunpack.c.l.b16 %v223
    %v1018 = vunpack.c.h.b16 %v223
    %v1019 = vunpack.c.l.b16 %v224
    %v1020 = vunpack.c.h.b16 %v224
    %v1021 = vunpack.c.l.b16 %v225
    %v1022 = vunpack.c.h.b16 %v225
    %v1023 = vunpack.c.l.b16 %v226
    %v1024 = vunpack.c.h.b16 %v226
    %v1025 = vunpack.c.l.b16 %v227
    %v1026 = vunpack.c.h.b16 %v227
    %v1027 = vunpack.c.l.b16 %v228
    %v1028 = vunpack.c.h.b16 %v228
    %v1029 = vunpack.c.l.b16 %v229
    %v1030 = vunpack.c.h.b16 %v229
    %v1031 = vunpack.c.l.b16 %v230
    %v1032 = vunpack.c.h.b16 %v230
    %v1033 = vunpack.c.l.b16 %v231
    %v1034 = vunpack.c.h.b16 %v231
    %v1035 = vunpack.c.l.b16 %v232
    %v1036 = vunpack.c.h.b16 %v232
    %v1037 = vunpack.c.l.b16 %v233
    %v1038 = vunpack.c.h.b16 %v233
    %v1039 = vunpack.c.l.b16 %v234
    %v1040 = vunpack.c.h.b16 %v234
    %v1041 = vunpack.c.l.b16 %v235
    %v1042 = vunpack.c.h.b16 %v235
    %v1043 = vunpack.c.l.b16 %v236
    %v1044 = vunpack.c.h.b16 %v236
    %v1045 = vunpack.c.l.b16 %v237
    %v1046 = vunpack.c.h.b16 %v237
    %v1047 = vunpack.c.l.b16 %v238
    %v1048 = vunpack.c.h.b16 %v238
    %v1049 = vunpack.c.l.b16 %v239
    %v1050 = vunpack.c.h.b16 %v239
    %v1051 = vunpack.c.l.b16 %v240
    %v1052 = vunpack.c.h.b16 %v240
    %v1053 = vunpack.c.l.b16 %v241
    %v1054 = vunpack.c.h.b16 %v241
    %v1055 = vunpack.c.l.b16 %v242
    %v1056 = vunpack.c.h.b16 %v242
    %v1057 = vunpack.c.l.b16 %v243
    %v1058 = vunpack.c.h.b16 %v243
    %v1059 = vunpack.c.l.b16 %v244
    %v1060 = vunpack.c.h.b16 %v244
    %v1061 = vunpack.c.l.b16 %v245
    %v1062 = vunpack.c.h.b16 %v245
    %v1063 = vunpack.c.l.b16 %v246
    %v1064 = vunpack.c.h.b16 %v246
    %v1065 = vunpack.c.l.b16 %v247
    %v1066 = vunpack.c.h.b16 %v247
    %v1067 = vunpack.c.l.b16 %v248
    %v1068 = vunpack.c.h.b16 %v248
    %v1069 = vunpack.c.l.b16 %v249
    %v1070 = vunpack.c.h.b16 %v249
    %v1071 = vunpack.c.l.b16 %v250
    %v1072 = vunpack.c.h.b16 %v250
    %v1073 = vunpack.c.l.b16 %v251
    %v1074 = vunpack.c.h.b16 %v251
    %v1075 = vunpack.c.l.b16 %v252
    %v1076 = vunpack.c.h.b16 %v252
    %v1077 = vunpack.c.l.b16 %v253
    %v1078 = vunpack.c.h.b16 %v253
    %v1079 = vunpack.c.l.b16 %v254
    %v1080 = vunpack.c.h.b16 %v254
    %v1081 = vunpack.c.l.b16 %v255
    %v1082 = vunpack.c.h.b16 %v255
    %v1083 = vunpack.c.l.b16 %v256
    %v1084 = vunpack.c.h.b16 %v256
    %v1085 = vunpack.c.l.b16 %v257
    %v1086 = vunpack.c.h.b16 %v257
    %v1087 = vunpack.c.l.b16 %v258
    %v1088 = vunpack.c.h.b16 %v258
    %v1089 = vunpack.c.l.b16 %v259
    %v1090 = vunpack.c.h.b16 %v259
    %v1091 = vunpack.c.l.b16 %v260
    %v1092 = vunpack.c.h.b16 %v260
    %v1093 = vunpack.c.l.b16 %v261
    %v1094 = vunpack.c.h.b16 %v261
    %v1095 = vunpack.c.l.b16 %v262
    %v1096 = vunpack.c.h.b16 %v262
    %v1097 = vunpack.c.l.b16 %v263
    %v1098 = vunpack.c.h.b16 %v263
    %v1099 = vunpack.c.l.b16 %v264
    %v1100 = vunpack.c.h.b16 %v264
    %v1101 = vunpack.c.l.b16 %v265
    %v1102 = vunpack.c.h.b16 %v265
    %v1103 = vunpack.c.l.b16 %v266
    %v1104 = vunpack.c.h.b16 %v266
    %v1105 = vunpack.c.l.b16 %v267
    %v1106 = vunpack.c.h.b16 %v267
    %v1107 = vunpack.c.l.b16 %v268
    %v1108 = vunpack.c.h.b16 %v268
    %v1109 = vunpack.c.l.b16 %v269
    %v1110 = vunpack.c.h.b16 %v269
    %v1111 = vunpack.c.l.b16 %v270
    %v1112 = vunpack.c.h.b16 %v270
    %v1113 = vunpack.c.l.b16 %v271
    %v1114 = vunpack.c.h.b16 %v271
    %v1115 = vunpack.c.l.b16 %v272
    %v1116 = vunpack.c.h.b16 %v272
    %v1117 = vunpack.c.l.b16 %v273
    %v1118 = vunpack.c.h.b16 %v273
    %v1119 = vunpack.c.l.b16 %v274
    %v1120 = vunpack.c.h.b16 %v274
    %v1121 = vunpack.c.l.b16 %v275
    %v1122 = vunpack.c.h.b16 %v275
    %v1123 = vunpack.c.l.b16 %v276
    %v1124 = vunpack.c.h.b16 %v276
    %v1125 = vunpack.c.l.b16 %v277
    %v1126 = vunpack.c.h.b16 %v277
    %v1127 = vunpack.c.l.b16 %v278
    %v1128 = vunpack.c.h.b16 %v278
    %v1129 = vunpack.c.l.b16 %v279
    %v1130 = vunpack.c.h.b16 %v279
    %v1131 = vunpack.c.l.b16 %v280
    %v1132 = vunpack.c.h.b16 %v280
    %v1133 = vunpack.c.l.b16 %v281
    %v1134 = vunpack.c.h.b16 %v281
    %v1135 = vunpack.c.l.b16 %v282
    %v1136 = vunpack.c.h.b16 %v282
    %v1137 = vunpack.c.l.b16 %v283
    %v1138 = vunpack.c.h.b16 %v283
    %v1139 = vunpack.c.l.b16 %v284
    %v1140 = vunpack.c.h.b16 %v284
    %v1141 = vunpack.c.l.b16 %v285
    %v1142 = vunpack.c.h.b16 %v285
    %v1143 = vunpack.c.l.b16 %v286
    %v1144 = vunpack.c.h.b16 %v286
    %v1145 = vunpack.c.l.b16 %v287
    %v1146 = vunpack.c.h.b16 %v287
    %v1147 = vunpack.c.l.b16 %v288
    %v1148 = vunpack.c.h.b16 %v288
    %v1149 = vunpack.c.l.b16 %v289
    %v1150 = vunpack.c.h.b16 %v289
    %v1151 = vunpack.c.l.b16 %v290
    %v1152 = vunpack.c.h.b16 %v290
    %v1153 = vunpack.c.l.b16 %v291
    %v1154 = vunpack.c.h.b16 %v291
    %v1155 = vunpack.c.l.b16 %v292
    %v1156 = vunpack.c.h.b16 %v292
    %v1157 = vunpack.c.l.b16 %v293
    %v1158 = vunpack.c.h.b16 %v293
    %v1159 = vunpack.c.l.b16 %v294
    %v1160 = vunpack.c.h.b16 %v294
    %v1161 = vunpack.c.l.b16 %v295
    %v1162 = vunpack.c.h.b16 %v295
    %v1163 = vunpack.c.l.b16 %v296
    %v1164 = vunpack.c.h.b16 %v296
    %v1165 = vunpack.c.l.b16 %v297
    %v1166 = vunpack.c.h.b16 %v297
    %v1167 = vunpack.c.l.b16 %v298
    %v1168 = vunpack.c.h.b16 %v298
    %v1169 = vunpack.c.l.b16 %v299
    %v1170 = vunpack.c.h.b16 %v299
    %v1171 = vunpack.c.l.b16 %v300
    %v1172 = vunpack.c.h.b16 %v300
    %v1173 = vunpack.c.l.b16 %v301
    %v1174 = vunpack.c.h.b16 %v301
    %v1175 = vunpack.c.l.b16 %v302
    %v1176 = vunpack.c.h.b16 %v302
    %v1177 = vunpack.c.l.b16 %v303
    %v1178 = vunpack.c.h.b16 %v303
    %v1179 = vunpack.c.l.b16 %v304
    %v1180 = vunpack.c.h.b16 %v304
    %v1181 = vunpack.c.l.b16 %v305
    %v1182 = vunpack.c.h.b16 %v305
    %v1183 = vunpack.c.l.b16 %v306
    %v1184 = vunpack.c.h.b16 %v306
    %v1185 = vunpack.c.l.b16 %v307
    %v1186 = vunpack.c.h.b16 %v307
    %v1187 = vunpack.c.l.b16 %v308
    %v1188 = vunpack.c.h.b16 %v308
    %v1189 = vunpack.c.l.b16 %v309
    %v1190 = vunpack.c.h.b16 %v309
    %v1191 = vunpack.c.l.b16 %v310
    %v1192 = vunpack.c.h.b16 %v310
    %v1193 = vunpack.c.l.b16 %v311
    %v1194 = vunpack.c.h.b16 %v311
    %v1195 = vunpack.c.l.b16 %v312
    %v1196 = vunpack.c.h.b16 %v312
    %v1197 = vunpack.c.l.b16 %v313
    %v1198 = vunpack.c.h.b16 %v313
    %v1199 = vunpack.c.l.b16 %v314
    %v1200 = vunpack.c.h.b16 %v314
    %v1201 = vunpack.c.l.b16 %v315
    %v1202 = vunpack.c.h.b16 %v315
    %v1203 = vunpack.c.l.b16 %v316
    %v1204 = vunpack.c.h.b16 %v316
    %v1205 = vunpack.c.l.b16 %v317
    %v1206 = vunpack.c.h.b16 %v317
    %v1207 = vunpack.c.l.b16 %v318
    %v1208 = vunpack.c.h.b16 %v318
    %v1209 = vpack.c.b16 %v705, %v697
    %v1210 = vpack.c.b16 %v706, %v698
    %v1211 = vpack.c.b16 %v707, %v699
    %v1212 = vpack.c.b16 %v708, %v700
    %v1213 = vpack.c.b16 %v709, %v701
    %v1214 = vpack.c.b16 %v710, %v702
    %v1215 = vpack.c.b16 %v711, %v703
    %v1216 = vpack.c.b16 %v712, %v704
    %v1217 = vpack.c.b16 %v721, %v713
    %v1218 = vpack.c.b16 %v722, %v714
    %v1219 = vpack.c.b16 %v723, %v715
    %v1220 = vpack.c.b16 %v724, %v716
    %v1221 = vpack.c.b16 %v725, %v717
    %v1222 = vpack.c.b16 %v726, %v718
    %v1223 = vpack.c.b16 %v727, %v719
    %v1224 = vpack.c.b16 %v728, %v720
    %v1225 = vpack.c.b16 %v737, %v729
    %v1226 = vpack.c.b16 %v738, %v730
    %v1227 = vpack.c.b16 %v739, %v731
    %v1228 = vpack.c.b16 %v740, %v732
    %v1229 = vpack.c.b16 %v741, %v733
    %v1230 = vpack.c.b16 %v742, %v734
    %v1231 = vpack.c.b16 %v743, %v735
    %v1232 = vpack.c.b16 %v744, %v736
    %v1233 = vpack.c.b16 %v753, %v745
    %v1234 = vpack.c.b16 %v754, %v746
    %v1235 = vpack.c.b16 %v755, %v747
    %v1236 = vpack.c.b16 %v756, %v748
    %v1237 = vpack.c.b16 %v757, %v749
    %v1238 = vpack.c.b16 %v758, %v750
    %v1239 = vpack.c.b16 %v759, %v751
    %v1240 = vpack.c.b16 %v760, %v752
    %v1241 = vpack.c.b16 %v769, %v761
    %v1242 = vpack.c.b16 %v770, %v762
    %v1243 = vpack.c.b16 %v771, %v763
    %v1244 = vpack.c.b16 %v772, %v764
    %v1245 = vpack.c.b16 %v773, %v765
    %v1246 = vpack.c.b16 %v774, %v766
    %v1247 = vpack.c.b16 %v775, %v767
    %v1248 = vpack.c.b16 %v776, %v768
    %v1249 = vpack.c.b16 %v785, %v777
    %v1250 = vpack.c.b16 %v786, %v778
    %v1251 = vpack.c.b16 %v787, %v779
    %v1252 = vpack.c.b16 %v788, %v780
    %v1253 = vpack.c.b16 %v789, %v781
    %v1254 = vpack.c.b16 %v790, %v782
    %v1255 = vpack.c.b16 %v791, %v783
    %v1256 = vpack.c.b16 %v792, %v784
    %v1257 = vpack.c.b16 %v801, %v793
    %v1258 = vpack.c.b16 %v802, %v794
    %v1259 = vpack.c.b16 %v803, %v795
    %v1260 = vpack.c.b16 %v804, %v796
    %v1261 = vpack.c.b16 %v805, %v797
    %v1262 = vpack.c.b16 %v806, %v798
    %v1263 = vpack.c.b16 %v807, %v799
    %v1264 = vpack.c.b16 %v808, %v800
    %v1265 = vpack.c.b16 %v817, %v809
    %v1266 = vpack.c.b16 %v818, %v810
    %v1267 = vpack.c.b16 %v819, %v811
    %v1268 = vpack.c.b16 %v820, %v812
    %v1269 = vpack.c.b16 %v821, %v813
    %v1270 = vpack.c.b16 %v822, %v814
    %v1271 = vpack.c.b16 %v823, %v815
    %v1272 = vpack.c.b16 %v824, %v816
    %v1273 = vpack.c.b16 %v833, %v825
    %v1274 = vpack.c.b16 %v834, %v826
    %v1275 = vpack.c.b16 %v835, %v827
    %v1276 = vpack.c.b16 %v836, %v828
    %v1277 = vpack.c.b16 %v837, %v829
    %v1278 = vpack.c.b16 %v838, %v830
    %v1279 = vpack.c.b16 %v839, %v831
    %v1280 = vpack.c.b16 %v840, %v832
    %v1281 = vpack.c.b16 %v849, %v841
    %v1282 = vpack.c.b16 %v850, %v842
    %v1283 = vpack.c.b16 %v851, %v843
    %v1284 = vpack.c.b16 %v852, %v844
    %v1285 = vpack.c.b16 %v853, %v845
    %v1286 = vpack.c.b16 %v854, %v846
    %v1287 = vpack.c.b16 %v855, %v847
    %v1288 = vpack.c.b16 %v856, %v848
    %v1289 = vpack.c.b16 %v865, %v857
    %v1290 = vpack.c.b16 %v866, %v858
    %v1291 = vpack.c.b16 %v867, %v859
    %v1292 = vpack.c.b16 %v868, %v860
    %v1293 = vpack.c.b16 %v869, %v861
    %v1294 = vpack.c.b16 %v870, %v862
    %v1295 = vpack.c.b16 %v871, %v863
    %v1296 = vpack.c.b16 %v872, %v864
    %v1297 = vpack.c.b16 %v881, %v873
    %v1298 = vpack.c.b16 %v882, %v874
    %v1299 = vpack.c.b16 %v883, %v875
    %v1300 = vpack.c.b16 %v884, %v876
    %v1301 = vpack.c.b16 %v885, %v877
    %v1302 = vpack.c.b16 %v886, %v878
    %v1303 = vpack.c.b16 %v887, %v879
    %v1304 = vpack.c.b16 %v888, %v880
    %v1305 = vpack.c.b16 %v897, %v889
    %v1306 = vpack.c.b16 %v898, %v890
    %v1307 = vpack.c.b16 %v899, %v891
    %v1308 = vpack.c.b16 %v900, %v892
    %v1309 = vpack.c.b16 %v901, %v893
    %v1310 = vpack.c.b16 %v902, %v894
    %v1311 = vpack.c.b16 %v903, %v895
    %v1312 = vpack.c.b16 %v904, %v896
    %v1313 = vpack.c.b16 %v913, %v905
    %v1314 = vpack.c.b16 %v914, %v906
    %v1315 = vpack.c.b16 %v915, %v907
    %v1316 = vpack.c.b16 %v916, %v908
    %v1317 = vpack.c.b16 %v917, %v909
    %v1318 = vpack.c.b16 %v918, %v910
    %v1319 = vpack.c.b16 %v919, %v911
    %v1320 = vpack.c.b16 %v920, %v912
    %v1321 = vpack.c.b16 %v929, %v921
    %v1322 = vpack.c.b16 %v930, %v922
    %v1323 = vpack.c.b16 %v931, %v923
    %v1324 = vpack.c.b16 %v932, %v924
    %v1325 = vpack.c.b16 %v933, %v925
    %v1326 = vpack.c.b16 %v934, %v926
    %v1327 = vpack.c.b16 %v935, %v927
    %v1328 = vpack.c.b16 %v936, %v928
    %v1329 = vpack.c.b16 %v945, %v937
    %v1330 = vpack.c.b16 %v946, %v938
    %v1331 = vpack.c.b16 %v947, %v939
    %v1332 = vpack.c.b16 %v948, %v940
    %v1333 = vpack.c.b16 %v949, %v941
    %v1334 = vpack.c.b16 %v950, %v942
    %v1335 = vpack.c.b16 %v951, %v943
    %v1336 = vpack.c.b16 %v952, %v944
    %v1337 = vpack.c.b16 %v961, %v953
    %v1338 = vpack.c.b16 %v962, %v954
    %v1339 = vpack.c.b16 %v963, %v955
    %v1340 = vpack.c.b16 %v964, %v956
    %v1341 = vpack.c.b16 %v965, %v957
    %v1342 = vpack.c.b16 %v966, %v958
    %v1343 = vpack.c.b16 %v967, %v959
    %v1344 = vpack.c.b16 %v968, %v960
    %v1345 = vpack.c.b16 %v977, %v969
    %v1346 = vpack.c.b16 %v978, %v970
    %v1347 = vpack.c.b16 %v979, %v971
    %v1348 = vpack.c.b16 %v980, %v972
    %v1349 = vpack.c.b16 %v981, %v973
    %v1350 = vpack.c.b16 %v982, %v974
    %v1351 = vpack.c.b16 %v983, %v975
    %v1352 = vpack.c.b16 %v984, %v976
    %v1353 = vpack.c.b16 %v993, %v985
    %v1354 = vpack.c.b16 %v994, %v986
    %v1355 = vpack.c.b16 %v995, %v987
    %v1356 = vpack.c.b16 %v996, %v988
    %v1357 = vpack.c.b16 %v997, %v989
    %v1358 = vpack.c.b16 %v998, %v990
    %v1359 = vpack.c.b16 %v999, %v991
    %v1360 = vpack.c.b16 %v1000, %v992
    %v1361 = vpack.c.b16 %v1009, %v1001
    %v1362 = vpack.c.b16 %v1010, %v1002
    %v1363 = vpack.c.b16 %v1011, %v1003
    %v1364 = vpack.c.b16 %v1012, %v1004
    %v1365 = vpack.c.b16 %v1013, %v1005
    %v1366 = vpack.c.b16 %v1014, %v1006
    %v1367 = vpack.c.b16 %v1015, %v1007
    %v1368 = vpack.c.b16 %v1016, %v1008
    %v1369 = vpack.c.b16 %v1025, %v1017
    %v1370 = vpack.c.b16 %v1026, %v1018
    %v1371 = vpack.c.b16 %v1027, %v1019
    %v1372 = vpack.c.b16 %v1028, %v1020
    %v1373 = vpack.c.b16 %v1029, %v1021
    %v1374 = vpack.c.b16 %v1030, %v1022
    %v1375 = vpack.c.b16 %v1031, %v1023
    %v1376 = vpack.c.b16 %v1032, %v1024
    %v1377 = vpack.c.b16 %v1041, %v1033
    %v1378 = vpack.c.b16 %v1042, %v1034
    %v1379 = vpack.c.b16 %v1043, %v1035
    %v1380 = vpack.c.b16 %v1044, %v1036
    %v1381 = vpack.c.b16 %v1045, %v1037
    %v1382 = vpack.c.b16 %v1046, %v1038
    %v1383 = vpack.c.b16 %v1047, %v1039
    %v1384 = vpack.c.b16 %v1048, %v1040
    %v1385 = vpack.c.b16 %v1057, %v1049
    %v1386 = vpack.c.b16 %v1058, %v1050
    %v1387 = vpack.c.b16 %v1059, %v1051
    %v1388 = vpack.c.b16 %v1060, %v1052
    %v1389 = vpack.c.b16 %v1061, %v1053
    %v1390 = vpack.c.b16 %v1062, %v1054
    %v1391 = vpack.c.b16 %v1063, %v1055
    %v1392 = vpack.c.b16 %v1064, %v1056
    %v1393 = vpack.c.b16 %v1073, %v1065
    %v1394 = vpack.c.b16 %v1074, %v1066
    %v1395 = vpack.c.b16 %v1075, %v1067
    %v1396 = vpack.c.b16 %v1076, %v1068
    %v1397 = vpack.c.b16 %v1077, %v1069
    %v1398 = vpack.c.b16 %v1078, %v1070
    %v1399 = vpack.c.b16 %v1079, %v1071
    %v1400 = vpack.c.b16 %v1080, %v1072
    %v1401 = vpack.c.b16 %v1089, %v1081
    %v1402 = vpack.c.b16 %v1090, %v1082
    %v1403 = vpack.c.b16 %v1091, %v1083
    %v1404 = vpack.c.b16 %v1092, %v1084
    %v1405 = vpack.c.b16 %v1093, %v1085
    %v1406 = vpack.c.b16 %v1094, %v1086
    %v1407 = vpack.c.b16 %v1095, %v1087
    %v1408 = vpack.c.b16 %v1096, %v1088
    %v1409 = vpack.c.b16 %v1105, %v1097
    %v1410 = vpack.c.b16 %v1106, %v1098
    %v1411 = vpack.c.b16 %v1107, %v1099
    %v1412 = vpack.c.b16 %v1108, %v1100
    %v1413 = vpack.c.b16 %v1109, %v1101
    %v1414 = vpack.c.b16 %v1110, %v1102
    %v1415 = vpack.c.b16 %v1111, %v1103
    %v1416 = vpack.c.b16 %v1112, %v1104
    %v1417 = vpack.c.b16 %v1121, %v1113
    %v1418 = vpack.c.b16 %v1122, %v1114
    %v1419 = vpack.c.b16 %v1123, %v1115
    %v1420 = vpack.c.b16 %v1124, %v1116
    %v1421 = vpack.c.b16 %v1125, %v1117
    %v1422 = vpack.c.b16 %v1126, %v1118
    %v1423 = vpack.c.b16 %v1127, %v1119
    %v1424 = vpack.c.b16 %v1128, %v1120
    %v1425 = vpack.c.b16 %v1137, %v1129
    %v1426 = vpack.c.b16 %v1138, %v1130
    %v1427 = vpack.c.b16 %v1139, %v1131
    %v1428 = vpack.c.b16 %v1140, %v1132
    %v1429 = vpack.c.b16 %v1141, %v1133
    %v1430 = vpack.c.b16 %v1142, %v1134
    %v1431 = vpack.c.b16 %v1143, %v1135
    %v1432 = vpack.c.b16 %v1144, %v1136
    %v1433 = vpack.c.b16 %v1153, %v1145
    %v1434 = vpack.c.b16 %v1154, %v1146
    %v1435 = vpack.c.b16 %v1155, %v1147
    %v1436 = vpack.c.b16 %v1156, %v1148
    %v1437 = vpack.c.b16 %v1157, %v1149
    %v1438 = vpack.c.b16 %v1158, %v1150
    %v1439 = vpack.c.b16 %v1159, %v1151
    %v1440 = vpack.c.b16 %v1160, %v1152
    %v1441 = vpack.c.b16 %v1169, %v1161
    %v1442 = vpack.c.b16 %v1170, %v1162
    %v1443 = vpack.c.b16 %v1171, %v1163
    %v1444 = vpack.c.b16 %v1172, %v1164
    %v1445 = vpack.c.b16 %v1173, %v1165
    %v1446 = vpack.c.b16 %v1174, %v1166
    %v1447 = vpack.c.b16 %v1175, %v1167
    %v1448 = vpack.c.b16 %v1176, %v1168
    %v1449 = vpack.c.b16 %v1185, %v1177
    %v1450 = vpack.c.b16 %v1186, %v1178
    %v1451 = vpack.c.b16 %v1187, %v1179
    %v1452 = vpack.c.b16 %v1188, %v1180
    %v1453 = vpack.c.b16 %v1189, %v1181
    %v1454 = vpack.c.b16 %v1190, %v1182
    %v1455 = vpack.c.b16 %v1191, %v1183
    %v1456 = vpack.c.b16 %v1192, %v1184
    %v1457 = vpack.c.b16 %v1201, %v1193
    %v1458 = vpack.c.b16 %v1202, %v1194
    %v1459 = vpack.c.b16 %v1203, %v1195
    %v1460 = vpack.c.b16 %v1204, %v1196
    %v1461 = vpack.c.b16 %v1205, %v1197
    %v1462 = vpack.c.b16 %v1206, %v1198
    %v1463 = vpack.c.b16 %v1207, %v1199
    %v1464 = vpack.c.b16 %v1208, %v1200
    %1721 = vmatprep.subr.bf16.mxu0 %v1210
    %1722 = vmatpush1.bf16.msra.mxu0 %v1209
    %1723 = vmatprep.subr.bf16.mxu0 %v1218
    %1724 = vmatpush1.bf16.msra.mxu0 %v1217
    %1725 = vmatprep.subr.bf16.mxu0 %v1226
    %1726 = vmatpush1.bf16.msra.mxu0 %v1225
    %1727 = vmatprep.subr.bf16.mxu0 %v1234
    %1728 = vmatpush1.bf16.msra.mxu0 %v1233
    %1729 = vmatprep.subr.bf16.mxu0 %v1242
    %1730 = vmatpush1.bf16.msra.mxu0 %v1241
    %1731 = vmatprep.subr.bf16.mxu0 %v1250
    %1732 = vmatpush1.bf16.msra.mxu0 %v1249
    %1733 = vmatprep.subr.bf16.mxu0 %v1258
    %1734 = vmatpush1.bf16.msra.mxu0 %v1257
    %1735 = vmatprep.subr.bf16.mxu0 %v1266
    %1736 = vmatpush1.bf16.msra.mxu0 %v1265
    %1737 = vmatprep.subr.bf16.mxu0 %v1274
    %1738 = vmatpush1.bf16.msra.mxu0 %v1273
    %1739 = vmatprep.subr.bf16.mxu0 %v1282
    %1740 = vmatpush1.bf16.msra.mxu0 %v1281
    %1741 = vmatprep.subr.bf16.mxu0 %v1290
    %1742 = vmatpush1.bf16.msra.mxu0 %v1289
    %1743 = vmatprep.subr.bf16.mxu0 %v1298
    %1744 = vmatpush1.bf16.msra.mxu0 %v1297
    %1745 = vmatprep.subr.bf16.mxu0 %v1306
    %1746 = vmatpush1.bf16.msra.mxu0 %v1305
    %1747 = vmatprep.subr.bf16.mxu0 %v1314
    %1748 = vmatpush1.bf16.msra.mxu0 %v1313
    %1749 = vmatprep.subr.bf16.mxu0 %v1322
    %1750 = vmatpush1.bf16.msra.mxu0 %v1321
    %1751 = vmatprep.subr.bf16.mxu0 %v1330
    %1752 = vmatpush1.bf16.msra.mxu0 %v1329
    %1753 = vmatprep.mubr.bf16.mxu0 %v410
    %1754 = vmatmul.mubr.bf16.gmra.mrb[0].mxu0 %v409
    %v1755 = vpop.f32.mrb[0].mxu0
    %v1756 = vadd.f32 %v324, %v1755
    %v1757 = vpop.f32.mrb[0].mxu0
    %v1758 = vadd.f32 %v328, %v1757
    %v1759 = vpop.f32.mrb[0].mxu0
    %v1760 = vadd.f32 %v324, %v1759
    %v1761 = vpop.f32.mrb[0].mxu0
    %v1762 = vadd.f32 %v328, %v1761
    %1763 = vmatprep.mubr.bf16.mxu0 %v414
    %1764 = vmatmul.mubr.bf16.gmra.mrb[0].mxu0 %v413
    %v1765 = vpop.f32.mrb[0].mxu0
    %v1766 = vadd.f32 %v324, %v1765
    %v1767 = vpop.f32.mrb[0].mxu0
    %v1768 = vadd.f32 %v328, %v1767
    %v1769 = vpop.f32.mrb[0].mxu0
    %v1770 = vadd.f32 %v324, %v1769
    %v1771 = vpop.f32.mrb[0].mxu0
    %v1772 = vadd.f32 %v328, %v1771
    %1773 = vmatprep.mubr.bf16.mxu0 %v418
    %1774 = vmatmul.mubr.bf16.gmra.mrb[0].mxu0 %v417
    %v1775 = vpop.f32.mrb[0].mxu0
    %v1776 = vadd.f32 %v324, %v1775
    %v1777 = vpop.f32.mrb[0].mxu0
    %v1778 = vadd.f32 %v328, %v1777
    %v1779 = vpop.f32.mrb[0].mxu0
    %v1780 = vadd.f32 %v324, %v1779
    %v1781 = vpop.f32.mrb[0].mxu0
    %v1782 = vadd.f32 %v328, %v1781
    %1783 = vmatprep.mubr.bf16.mxu0 %v422
    %1784 = vmatmul.mubr.bf16.gmra.mrb[0].mxu0 %v421
    %v1785 = vpop.f32.mrb[0].mxu0
    %v1786 = vadd.f32 %v324, %v1785
    %v1787 = vpop.f32.mrb[0].mxu0
    %v1788 = vadd.f32 %v328, %v1787
    %v1789 = vpop.f32.mrb[0].mxu0
    %v1790 = vadd.f32 %v324, %v1789
    %v1791 = vpop.f32.mrb[0].mxu0
    %v1792 = vadd.f32 %v328, %v1791
    %1793 = vdwg.mxu0
    %1794 = vmatprep.subr.bf16.mxu0 %v1338
    %1795 = vmatpush1.bf16.msra.mxu0 %v1337
    %1796 = vmatprep.subr.bf16.mxu0 %v1346
    %1797 = vmatpush1.bf16.msra.mxu0 %v1345
    %1798 = vmatprep.subr.bf16.mxu0 %v1354
    %1799 = vmatpush1.bf16.msra.mxu0 %v1353
    %1800 = vmatprep.subr.bf16.mxu0 %v1362
    %1801 = vmatpush1.bf16.msra.mxu0 %v1361
    %1802 = vmatprep.subr.bf16.mxu0 %v1370
    %1803 = vmatpush1.bf16.msra.mxu0 %v1369
    %1804 = vmatprep.subr.bf16.mxu0 %v1378
    %1805 = vmatpush1.bf16.msra.mxu0 %v1377
    %1806 = vmatprep.subr.bf16.mxu0 %v1386
    %1807 = vmatpush1.bf16.msra.mxu0 %v1385
    %1808 = vmatprep.subr.bf16.mxu0 %v1394
    %1809 = vmatpush1.bf16.msra.mxu0 %v1393
    %1810 = vmatprep.subr.bf16.mxu0 %v1402
    %1811 = vmatpush1.bf16.msra.mxu0 %v1401
    %1812 = vmatprep.subr.bf16.mxu0 %v1410
    %1813 = vmatpush1.bf16.msra.mxu0 %v1409
    %1814 = vmatprep.subr.bf16.mxu0 %v1418
    %1815 = vmatpush1.bf16.msra.mxu0 %v1417
    %1816 = vmatprep.subr.bf16.mxu0 %v1426
    %1817 = vmatpush1.bf16.msra.mxu0 %v1425
    %1818 = vmatprep.subr.bf16.mxu0 %v1434
    %1819 = vmatpush1.bf16.msra.mxu0 %v1433
    %1820 = vmatprep.subr.bf16.mxu0 %v1442
    %1821 = vmatpush1.bf16.msra.mxu0 %v1441
    %1822 = vmatprep.subr.bf16.mxu0 %v1450
    %1823 = vmatpush1.bf16.msra.mxu0 %v1449
    %1824 = vmatprep.subr.bf16.mxu0 %v1458
    %1825 = vmatpush1.bf16.msra.mxu0 %v1457
    %1826 = vmatprep.mubr.bf16.mxu0 %v412
    %1827 = vmatmul.mubr.bf16.gmra.mrb[0].mxu0 %v411
    %v1828 = vpop.f32.mrb[0].mxu0
    %v1829 = vadd.f32 %v1756, %v1828
    %v1830 = vpop.f32.mrb[0].mxu0
    %v1831 = vadd.f32 %v1758, %v1830
    %v1832 = vpop.f32.mrb[0].mxu0
    %v1833 = vadd.f32 %v1760, %v1832
    %v1834 = vpop.f32.mrb[0].mxu0
    %v1835 = vadd.f32 %v1762, %v1834
    %1836 = vmatprep.mubr.bf16.mxu0 %v416
    %1837 = vmatmul.mubr.bf16.gmra.mrb[0].mxu0 %v415
    %v1838 = vpop.f32.mrb[0].mxu0
    %v1839 = vadd.f32 %v1766, %v1838
    %v1840 = vpop.f32.mrb[0].mxu0
    %v1841 = vadd.f32 %v1768, %v1840
    %v1842 = vpop.f32.mrb[0].mxu0
    %v1843 = vadd.f32 %v1770, %v1842
    %v1844 = vpop.f32.mrb[0].mxu0
    %v1845 = vadd.f32 %v1772, %v1844
    %1846 = vmatprep.mubr.bf16.mxu0 %v420
    %1847 = vmatmul.mubr.bf16.gmra.mrb[0].mxu0 %v419
    %v1848 = vpop.f32.mrb[0].mxu0
    %v1849 = vadd.f32 %v1776, %v1848
    %v1850 = vpop.f32.mrb[0].mxu0
    %v1851 = vadd.f32 %v1778, %v1850
    %v1852 = vpop.f32.mrb[0].mxu0
    %v1853 = vadd.f32 %v1780, %v1852
    %v1854 = vpop.f32.mrb[0].mxu0
    %v1855 = vadd.f32 %v1782, %v1854
    %1856 = vmatprep.mubr.bf16.mxu0 %v424
    %1857 = vmatmul.mubr.bf16.gmra.mrb[0].mxu0 %v423
    %v1858 = vpop.f32.mrb[0].mxu0
    %v1859 = vadd.f32 %v1786, %v1858
    %v1860 = vpop.f32.mrb[0].mxu0
    %v1861 = vadd.f32 %v1788, %v1860
    %v1862 = vpop.f32.mrb[0].mxu0
    %v1863 = vadd.f32 %v1790, %v1862
    %v1864 = vpop.f32.mrb[0].mxu0
    %v1865 = vadd.f32 %v1792, %v1864
    %1866 = vdwg.mxu0
    %1867 = vmatprep.subr.bf16.mxu0 %v1212
    %1868 = vmatpush1.bf16.msra.mxu0 %v1211
    %1869 = vmatprep.subr.bf16.mxu0 %v1220
    %1870 = vmatpush1.bf16.msra.mxu0 %v1219
    %1871 = vmatprep.subr.bf16.mxu0 %v1228
    %1872 = vmatpush1.bf16.msra.mxu0 %v1227
    %1873 = vmatprep.subr.bf16.mxu0 %v1236
    %1874 = vmatpush1.bf16.msra.mxu0 %v1235
    %1875 = vmatprep.subr.bf16.mxu0 %v1244
    %1876 = vmatpush1.bf16.msra.mxu0 %v1243
    %1877 = vmatprep.subr.bf16.mxu0 %v1252
    %1878 = vmatpush1.bf16.msra.mxu0 %v1251
    %1879 = vmatprep.subr.bf16.mxu0 %v1260
    %1880 = vmatpush1.bf16.msra.mxu0 %v1259
    %1881 = vmatprep.subr.bf16.mxu0 %v1268
    %1882 = vmatpush1.bf16.msra.mxu0 %v1267
    %1883 = vmatprep.subr.bf16.mxu0 %v1276
    %1884 = vmatpush1.bf16.msra.mxu0 %v1275
    %1885 = vmatprep.subr.bf16.mxu0 %v1284
    %1886 = vmatpush1.bf16.msra.mxu0 %v1283
    %1887 = vmatprep.subr.bf16.mxu0 %v1292
    %1888 = vmatpush1.bf16.msra.mxu0 %v1291
    %1889 = vmatprep.subr.bf16.mxu0 %v1300
    %1890 = vmatpush1.bf16.msra.mxu0 %v1299
    %1891 = vmatprep.subr.bf16.mxu0 %v1308
    %1892 = vmatpush1.bf16.msra.mxu0 %v1307
    %1893 = vmatprep.subr.bf16.mxu0 %v1316
    %1894 = vmatpush1.bf16.msra.mxu0 %v1315
    %1895 = vmatprep.subr.bf16.mxu0 %v1324
    %1896 = vmatpush1.bf16.msra.mxu0 %v1323
    %1897 = vmatprep.subr.bf16.mxu0 %v1332
    %1898 = vmatpush1.bf16.msra.mxu0 %v1331
    %1899 = vmatprep.mubr.bf16.mxu0 %v410
    %1900 = vmatmul.mubr.bf16.gmra.mrb[0].mxu0 %v409
    %v1901 = vpop.f32.mrb[0].mxu0
    %v1902 = vadd.f32 %v332, %v1901
    %v1903 = vpop.f32.mrb[0].mxu0
    %v1904 = vadd.f32 %v336, %v1903
    %v1905 = vpop.f32.mrb[0].mxu0
    %v1906 = vadd.f32 %v332, %v1905
    %v1907 = vpop.f32.mrb[0].mxu0
    %v1908 = vadd.f32 %v336, %v1907
    %1909 = vmatprep.mubr.bf16.mxu0 %v414
    %1910 = vmatmul.mubr.bf16.gmra.mrb[0].mxu0 %v413
    %v1911 = vpop.f32.mrb[0].mxu0
    %v1912 = vadd.f32 %v332, %v1911
    %v1913 = vpop.f32.mrb[0].mxu0
    %v1914 = vadd.f32 %v336, %v1913
    %v1915 = vpop.f32.mrb[0].mxu0
    %v1916 = vadd.f32 %v332, %v1915
    %v1917 = vpop.f32.mrb[0].mxu0
    %v1918 = vadd.f32 %v336, %v1917
    %1919 = vmatprep.mubr.bf16.mxu0 %v418
    %1920 = vmatmul.mubr.bf16.gmra.mrb[0].mxu0 %v417
    %v1921 = vpop.f32.mrb[0].mxu0
    %v1922 = vadd.f32 %v332, %v1921
    %v1923 = vpop.f32.mrb[0].mxu0
    %v1924 = vadd.f32 %v336, %v1923
    %v1925 = vpop.f32.mrb[0].mxu0
    %v1926 = vadd.f32 %v332, %v1925
    %v1927 = vpop.f32.mrb[0].mxu0
    %v1928 = vadd.f32 %v336, %v1927
    %1929 = vmatprep.mubr.bf16.mxu0 %v422
    %1930 = vmatmul.mubr.bf16.gmra.mrb[0].mxu0 %v421
    %v1931 = vpop.f32.mrb[0].mxu0
    %v1932 = vadd.f32 %v332, %v1931
    %v1933 = vpop.f32.mrb[0].mxu0
    %v1934 = vadd.f32 %v336, %v1933
    %v1935 = vpop.f32.mrb[0].mxu0
    %v1936 = vadd.f32 %v332, %v1935
    %v1937 = vpop.f32.mrb[0].mxu0
    %v1938 = vadd.f32 %v336, %v1937
    %1939 = vdwg.mxu0
    %1940 = vmatprep.subr.bf16.mxu0 %v1340
    %1941 = vmatpush1.bf16.msra.mxu0 %v1339
    %1942 = vmatprep.subr.bf16.mxu0 %v1348
    %1943 = vmatpush1.bf16.msra.mxu0 %v1347
    %1944 = vmatprep.subr.bf16.mxu0 %v1356
    %1945 = vmatpush1.bf16.msra.mxu0 %v1355
    %1946 = vmatprep.subr.bf16.mxu0 %v1364
    %1947 = vmatpush1.bf16.msra.mxu0 %v1363
    %1948 = vmatprep.subr.bf16.mxu0 %v1372
    %1949 = vmatpush1.bf16.msra.mxu0 %v1371
    %1950 = vmatprep.subr.bf16.mxu0 %v1380
    %1951 = vmatpush1.bf16.msra.mxu0 %v1379
    %1952 = vmatprep.subr.bf16.mxu0 %v1388
    %1953 = vmatpush1.bf16.msra.mxu0 %v1387
    %1954 = vmatprep.subr.bf16.mxu0 %v1396
    %1955 = vmatpush1.bf16.msra.mxu0 %v1395
    %1956 = vmatprep.subr.bf16.mxu0 %v1404
    %1957 = vmatpush1.bf16.msra.mxu0 %v1403
    %1958 = vmatprep.subr.bf16.mxu0 %v1412
    %1959 = vmatpush1.bf16.msra.mxu0 %v1411
    %1960 = vmatprep.subr.bf16.mxu0 %v1420
    %1961 = vmatpush1.bf16.msra.mxu0 %v1419
    %1962 = vmatprep.subr.bf16.mxu0 %v1428
    %1963 = vmatpush1.bf16.msra.mxu0 %v1427
    %1964 = vmatprep.subr.bf16.mxu0 %v1436
    %1965 = vmatpush1.bf16.msra.mxu0 %v1435
    %1966 = vmatprep.subr.bf16.mxu0 %v1444
    %1967 = vmatpush1.bf16.msra.mxu0 %v1443
    %1968 = vmatprep.subr.bf16.mxu0 %v1452
    %1969 = vmatpush1.bf16.msra.mxu0 %v1451
    %1970 = vmatprep.subr.bf16.mxu0 %v1460
    %1971 = vmatpush1.bf16.msra.mxu0 %v1459
    %1972 = vmatprep.mubr.bf16.mxu0 %v412
    %1973 = vmatmul.mubr.bf16.gmra.mrb[0].mxu0 %v411
    %v1974 = vpop.f32.mrb[0].mxu0
    %v1975 = vadd.f32 %v1902, %v1974
    %v1976 = vpop.f32.mrb[0].mxu0
    %v1977 = vadd.f32 %v1904, %v1976
    %v1978 = vpop.f32.mrb[0].mxu0
    %v1979 = vadd.f32 %v1906, %v1978
    %v1980 = vpop.f32.mrb[0].mxu0
    %v1981 = vadd.f32 %v1908, %v1980
    %1982 = vmatprep.mubr.bf16.mxu0 %v416
    %1983 = vmatmul.mubr.bf16.gmra.mrb[0].mxu0 %v415
    %v1984 = vpop.f32.mrb[0].mxu0
    %v1985 = vadd.f32 %v1912, %v1984
    %v1986 = vpop.f32.mrb[0].mxu0
    %v1987 = vadd.f32 %v1914, %v1986
    %v1988 = vpop.f32.mrb[0].mxu0
    %v1989 = vadd.f32 %v1916, %v1988
    %v1990 = vpop.f32.mrb[0].mxu0
    %v1991 = vadd.f32 %v1918, %v1990
    %1992 = vmatprep.mubr.bf16.mxu0 %v420
    %1993 = vmatmul.mubr.bf16.gmra.mrb[0].mxu0 %v419
    %v1994 = vpop.f32.mrb[0].mxu0
    %v1995 = vadd.f32 %v1922, %v1994
    %v1996 = vpop.f32.mrb[0].mxu0
    %v1997 = vadd.f32 %v1924, %v1996
    %v1998 = vpop.f32.mrb[0].mxu0
    %v1999 = vadd.f32 %v1926, %v1998
    %v2000 = vpop.f32.mrb[0].mxu0
    %v2001 = vadd.f32 %v1928, %v2000
    %2002 = vmatprep.mubr.bf16.mxu0 %v424
    %2003 = vmatmul.mubr.bf16.gmra.mrb[0].mxu0 %v423
    %v2004 = vpop.f32.mrb[0].mxu0
    %v2005 = vadd.f32 %v1932, %v2004
    %v2006 = vpop.f32.mrb[0].mxu0
    %v2007 = vadd.f32 %v1934, %v2006
    %v2008 = vpop.f32.mrb[0].mxu0
    %v2009 = vadd.f32 %v1936, %v2008
    %v2010 = vpop.f32.mrb[0].mxu0
    %v2011 = vadd.f32 %v1938, %v2010
    %2012 = vdwg.mxu0
    %2013 = vmatprep.subr.bf16.mxu0 %v1214
    %2014 = vmatpush1.bf16.msra.mxu0 %v1213
    %2015 = vmatprep.subr.bf16.mxu0 %v1222
    %2016 = vmatpush1.bf16.msra.mxu0 %v1221
    %2017 = vmatprep.subr.bf16.mxu0 %v1230
    %2018 = vmatpush1.bf16.msra.mxu0 %v1229
    %2019 = vmatprep.subr.bf16.mxu0 %v1238
    %2020 = vmatpush1.bf16.msra.mxu0 %v1237
    %2021 = vmatprep.subr.bf16.mxu0 %v1246
    %2022 = vmatpush1.bf16.msra.mxu0 %v1245
    %2023 = vmatprep.subr.bf16.mxu0 %v1254
    %2024 = vmatpush1.bf16.msra.mxu0 %v1253
    %2025 = vmatprep.subr.bf16.mxu0 %v1262
    %2026 = vmatpush1.bf16.msra.mxu0 %v1261
    %2027 = vmatprep.subr.bf16.mxu0 %v1270
    %2028 = vmatpush1.bf16.msra.mxu0 %v1269
    %2029 = vmatprep.subr.bf16.mxu0 %v1278
    %2030 = vmatpush1.bf16.msra.mxu0 %v1277
    %2031 = vmatprep.subr.bf16.mxu0 %v1286
    %2032 = vmatpush1.bf16.msra.mxu0 %v1285
    %2033 = vmatprep.subr.bf16.mxu0 %v1294
    %2034 = vmatpush1.bf16.msra.mxu0 %v1293
    %2035 = vmatprep.subr.bf16.mxu0 %v1302
    %2036 = vmatpush1.bf16.msra.mxu0 %v1301
    %2037 = vmatprep.subr.bf16.mxu0 %v1310
    %2038 = vmatpush1.bf16.msra.mxu0 %v1309
    %2039 = vmatprep.subr.bf16.mxu0 %v1318
    %2040 = vmatpush1.bf16.msra.mxu0 %v1317
    %2041 = vmatprep.subr.bf16.mxu0 %v1326
    %2042 = vmatpush1.bf16.msra.mxu0 %v1325
    %2043 = vmatprep.subr.bf16.mxu0 %v1334
    %2044 = vmatpush1.bf16.msra.mxu0 %v1333
    %2045 = vmatprep.mubr.bf16.mxu0 %v410
    %2046 = vmatmul.mubr.bf16.gmra.mrb[0].mxu0 %v409
    %v2047 = vpop.f32.mrb[0].mxu0
    %v2048 = vadd.f32 %v340, %v2047
    %v2049 = vpop.f32.mrb[0].mxu0
    %v2050 = vadd.f32 %v344, %v2049
    %v2051 = vpop.f32.mrb[0].mxu0
    %v2052 = vadd.f32 %v340, %v2051
    %v2053 = vpop.f32.mrb[0].mxu0
    %v2054 = vadd.f32 %v344, %v2053
    %2055 = vmatprep.mubr.bf16.mxu0 %v414
    %2056 = vmatmul.mubr.bf16.gmra.mrb[0].mxu0 %v413
    %v2057 = vpop.f32.mrb[0].mxu0
    %v2058 = vadd.f32 %v340, %v2057
    %v2059 = vpop.f32.mrb[0].mxu0
    %v2060 = vadd.f32 %v344, %v2059
    %v2061 = vpop.f32.mrb[0].mxu0
    %v2062 = vadd.f32 %v340, %v2061
    %v2063 = vpop.f32.mrb[0].mxu0
    %v2064 = vadd.f32 %v344, %v2063
    %2065 = vmatprep.mubr.bf16.mxu0 %v418
    %2066 = vmatmul.mubr.bf16.gmra.mrb[0].mxu0 %v417
    %v2067 = vpop.f32.mrb[0].mxu0
    %v2068 = vadd.f32 %v340, %v2067
    %v2069 = vpop.f32.mrb[0].mxu0
    %v2070 = vadd.f32 %v344, %v2069
    %v2071 = vpop.f32.mrb[0].mxu0
    %v2072 = vadd.f32 %v340, %v2071
    %v2073 = vpop.f32.mrb[0].mxu0
    %v2074 = vadd.f32 %v344, %v2073
    %2075 = vmatprep.mubr.bf16.mxu0 %v422
    %2076 = vmatmul.mubr.bf16.gmra.mrb[0].mxu0 %v421
    %v2077 = vpop.f32.mrb[0].mxu0
    %v2078 = vadd.f32 %v340, %v2077
    %v2079 = vpop.f32.mrb[0].mxu0
    %v2080 = vadd.f32 %v344, %v2079
    %v2081 = vpop.f32.mrb[0].mxu0
    %v2082 = vadd.f32 %v340, %v2081
    %v2083 = vpop.f32.mrb[0].mxu0
    %v2084 = vadd.f32 %v344, %v2083
    %2085 = vdwg.mxu0
    %2086 = vmatprep.subr.bf16.mxu0 %v1342
    %2087 = vmatpush1.bf16.msra.mxu0 %v1341
    %2088 = vmatprep.subr.bf16.mxu0 %v1350
    %2089 = vmatpush1.bf16.msra.mxu0 %v1349
    %2090 = vmatprep.subr.bf16.mxu0 %v1358
    %2091 = vmatpush1.bf16.msra.mxu0 %v1357
    %2092 = vmatprep.subr.bf16.mxu0 %v1366
    %2093 = vmatpush1.bf16.msra.mxu0 %v1365
    %2094 = vmatprep.subr.bf16.mxu0 %v1374
    %2095 = vmatpush1.bf16.msra.mxu0 %v1373
    %2096 = vmatprep.subr.bf16.mxu0 %v1382
    %2097 = vmatpush1.bf16.msra.mxu0 %v1381
    %2098 = vmatprep.subr.bf16.mxu0 %v1390
    %2099 = vmatpush1.bf16.msra.mxu0 %v1389
    %2100 = vmatprep.subr.bf16.mxu0 %v1398
    %2101 = vmatpush1.bf16.msra.mxu0 %v1397
    %2102 = vmatprep.subr.bf16.mxu0 %v1406
    %2103 = vmatpush1.bf16.msra.mxu0 %v1405
    %2104 = vmatprep.subr.bf16.mxu0 %v1414
    %2105 = vmatpush1.bf16.msra.mxu0 %v1413
    %2106 = vmatprep.subr.bf16.mxu0 %v1422
    %2107 = vmatpush1.bf16.msra.mxu0 %v1421
    %2108 = vmatprep.subr.bf16.mxu0 %v1430
    %2109 = vmatpush1.bf16.msra.mxu0 %v1429
    %2110 = vmatprep.subr.bf16.mxu0 %v1438
    %2111 = vmatpush1.bf16.msra.mxu0 %v1437
    %2112 = vmatprep.subr.bf16.mxu0 %v1446
    %2113 = vmatpush1.bf16.msra.mxu0 %v1445
    %2114 = vmatprep.subr.bf16.mxu0 %v1454
    %2115 = vmatpush1.bf16.msra.mxu0 %v1453
    %2116 = vmatprep.subr.bf16.mxu0 %v1462
    %2117 = vmatpush1.bf16.msra.mxu0 %v1461
    %2118 = vmatprep.mubr.bf16.mxu0 %v412
    %2119 = vmatmul.mubr.bf16.gmra.mrb[0].mxu0 %v411
    %v2120 = vpop.f32.mrb[0].mxu0
    %v2121 = vadd.f32 %v2048, %v2120
    %v2122 = vpop.f32.mrb[0].mxu0
    %v2123 = vadd.f32 %v2050, %v2122
    %v2124 = vpop.f32.mrb[0].mxu0
    %v2125 = vadd.f32 %v2052, %v2124
    %v2126 = vpop.f32.mrb[0].mxu0
    %v2127 = vadd.f32 %v2054, %v2126
    %2128 = vmatprep.mubr.bf16.mxu0 %v416
    %2129 = vmatmul.mubr.bf16.gmra.mrb[0].mxu0 %v415
    %v2130 = vpop.f32.mrb[0].mxu0
    %v2131 = vadd.f32 %v2058, %v2130
    %v2132 = vpop.f32.mrb[0].mxu0
    %v2133 = vadd.f32 %v2060, %v2132
    %v2134 = vpop.f32.mrb[0].mxu0
    %v2135 = vadd.f32 %v2062, %v2134
    %v2136 = vpop.f32.mrb[0].mxu0
    %v2137 = vadd.f32 %v2064, %v2136
    %2138 = vmatprep.mubr.bf16.mxu0 %v420
    %2139 = vmatmul.mubr.bf16.gmra.mrb[0].mxu0 %v419
    %v2140 = vpop.f32.mrb[0].mxu0
    %v2141 = vadd.f32 %v2068, %v2140
    %v2142 = vpop.f32.mrb[0].mxu0
    %v2143 = vadd.f32 %v2070, %v2142
    %v2144 = vpop.f32.mrb[0].mxu0
    %v2145 = vadd.f32 %v2072, %v2144
    %v2146 = vpop.f32.mrb[0].mxu0
    %v2147 = vadd.f32 %v2074, %v2146
    %2148 = vmatprep.mubr.bf16.mxu0 %v424
    %2149 = vmatmul.mubr.bf16.gmra.mrb[0].mxu0 %v423
    %v2150 = vpop.f32.mrb[0].mxu0
    %v2151 = vadd.f32 %v2078, %v2150
    %v2152 = vpop.f32.mrb[0].mxu0
    %v2153 = vadd.f32 %v2080, %v2152
    %v2154 = vpop.f32.mrb[0].mxu0
    %v2155 = vadd.f32 %v2082, %v2154
    %v2156 = vpop.f32.mrb[0].mxu0
    %v2157 = vadd.f32 %v2084, %v2156
    %2158 = vdwg.mxu0
    %2159 = vmatprep.subr.bf16.mxu0 %v1216
    %2160 = vmatpush1.bf16.msra.mxu0 %v1215
    %2161 = vmatprep.subr.bf16.mxu0 %v1224
    %2162 = vmatpush1.bf16.msra.mxu0 %v1223
    %2163 = vmatprep.subr.bf16.mxu0 %v1232
    %2164 = vmatpush1.bf16.msra.mxu0 %v1231
    %2165 = vmatprep.subr.bf16.mxu0 %v1240
    %2166 = vmatpush1.bf16.msra.mxu0 %v1239
    %2167 = vmatprep.subr.bf16.mxu0 %v1248
    %2168 = vmatpush1.bf16.msra.mxu0 %v1247
    %2169 = vmatprep.subr.bf16.mxu0 %v1256
    %2170 = vmatpush1.bf16.msra.mxu0 %v1255
    %2171 = vmatprep.subr.bf16.mxu0 %v1264
    %2172 = vmatpush1.bf16.msra.mxu0 %v1263
    %2173 = vmatprep.subr.bf16.mxu0 %v1272
    %2174 = vmatpush1.bf16.msra.mxu0 %v1271
    %2175 = vmatprep.subr.bf16.mxu0 %v1280
    %2176 = vmatpush1.bf16.msra.mxu0 %v1279
    %2177 = vmatprep.subr.bf16.mxu0 %v1288
    %2178 = vmatpush1.bf16.msra.mxu0 %v1287
    %2179 = vmatprep.subr.bf16.mxu0 %v1296
    %2180 = vmatpush1.bf16.msra.mxu0 %v1295
    %2181 = vmatprep.subr.bf16.mxu0 %v1304
    %2182 = vmatpush1.bf16.msra.mxu0 %v1303
    %2183 = vmatprep.subr.bf16.mxu0 %v1312
    %2184 = vmatpush1.bf16.msra.mxu0 %v1311
    %2185 = vmatprep.subr.bf16.mxu0 %v1320
    %2186 = vmatpush1.bf16.msra.mxu0 %v1319
    %2187 = vmatprep.subr.bf16.mxu0 %v1328
    %2188 = vmatpush1.bf16.msra.mxu0 %v1327
    %2189 = vmatprep.subr.bf16.mxu0 %v1336
    %2190 = vmatpush1.bf16.msra.mxu0 %v1335
    %2191 = vmatprep.mubr.bf16.mxu0 %v410
    %2192 = vmatmul.mubr.bf16.gmra.mrb[0].mxu0 %v409
    %v2193 = vpop.f32.mrb[0].mxu0
    %v2194 = vadd.f32 %v348, %v2193
    %v2195 = vpop.f32.mrb[0].mxu0
    %v2196 = vadd.f32 %v352, %v2195
    %v2197 = vpop.f32.mrb[0].mxu0
    %v2198 = vadd.f32 %v348, %v2197
    %v2199 = vpop.f32.mrb[0].mxu0
    %v2200 = vadd.f32 %v352, %v2199
    %2201 = vmatprep.mubr.bf16.mxu0 %v414
    %2202 = vmatmul.mubr.bf16.gmra.mrb[0].mxu0 %v413
    %v2203 = vpop.f32.mrb[0].mxu0
    %v2204 = vadd.f32 %v348, %v2203
    %v2205 = vpop.f32.mrb[0].mxu0
    %v2206 = vadd.f32 %v352, %v2205
    %v2207 = vpop.f32.mrb[0].mxu0
    %v2208 = vadd.f32 %v348, %v2207
    %v2209 = vpop.f32.mrb[0].mxu0
    %v2210 = vadd.f32 %v352, %v2209
    %2211 = vmatprep.mubr.bf16.mxu0 %v418
    %2212 = vmatmul.mubr.bf16.gmra.mrb[0].mxu0 %v417
    %v2213 = vpop.f32.mrb[0].mxu0
    %v2214 = vadd.f32 %v348, %v2213
    %v2215 = vpop.f32.mrb[0].mxu0
    %v2216 = vadd.f32 %v352, %v2215
    %v2217 = vpop.f32.mrb[0].mxu0
    %v2218 = vadd.f32 %v348, %v2217
    %v2219 = vpop.f32.mrb[0].mxu0
    %v2220 = vadd.f32 %v352, %v2219
    %2221 = vmatprep.mubr.bf16.mxu0 %v422
    %2222 = vmatmul.mubr.bf16.gmra.mrb[0].mxu0 %v421
    %v2223 = vpop.f32.mrb[0].mxu0
    %v2224 = vadd.f32 %v348, %v2223
    %v2225 = vpop.f32.mrb[0].mxu0
    %v2226 = vadd.f32 %v352, %v2225
    %v2227 = vpop.f32.mrb[0].mxu0
    %v2228 = vadd.f32 %v348, %v2227
    %v2229 = vpop.f32.mrb[0].mxu0
    %v2230 = vadd.f32 %v352, %v2229
    %2231 = vdwg.mxu0
    %2232 = vmatprep.subr.bf16.mxu0 %v1344
    %2233 = vmatpush1.bf16.msra.mxu0 %v1343
    %2234 = vmatprep.subr.bf16.mxu0 %v1352
    %2235 = vmatpush1.bf16.msra.mxu0 %v1351
    %2236 = vmatprep.subr.bf16.mxu0 %v1360
    %2237 = vmatpush1.bf16.msra.mxu0 %v1359
    %2238 = vmatprep.subr.bf16.mxu0 %v1368
    %2239 = vmatpush1.bf16.msra.mxu0 %v1367
    %2240 = vmatprep.subr.bf16.mxu0 %v1376
    %2241 = vmatpush1.bf16.msra.mxu0 %v1375
    %2242 = vmatprep.subr.bf16.mxu0 %v1384
    %2243 = vmatpush1.bf16.msra.mxu0 %v1383
    %2244 = vmatprep.subr.bf16.mxu0 %v1392
    %2245 = vmatpush1.bf16.msra.mxu0 %v1391
    %2246 = vmatprep.subr.bf16.mxu0 %v1400
    %2247 = vmatpush1.bf16.msra.mxu0 %v1399
    %2248 = vmatprep.subr.bf16.mxu0 %v1408
    %2249 = vmatpush1.bf16.msra.mxu0 %v1407
    %2250 = vmatprep.subr.bf16.mxu0 %v1416
    %2251 = vmatpush1.bf16.msra.mxu0 %v1415
    %2252 = vmatprep.subr.bf16.mxu0 %v1424
    %2253 = vmatpush1.bf16.msra.mxu0 %v1423
    %2254 = vmatprep.subr.bf16.mxu0 %v1432
    %2255 = vmatpush1.bf16.msra.mxu0 %v1431
    %2256 = vmatprep.subr.bf16.mxu0 %v1440
    %2257 = vmatpush1.bf16.msra.mxu0 %v1439
    %2258 = vmatprep.subr.bf16.mxu0 %v1448
    %2259 = vmatpush1.bf16.msra.mxu0 %v1447
    %2260 = vmatprep.subr.bf16.mxu0 %v1456
    %2261 = vmatpush1.bf16.msra.mxu0 %v1455
    %2262 = vmatprep.subr.bf16.mxu0 %v1464
    %2263 = vmatpush1.bf16.msra.mxu0 %v1463
    %2264 = vmatprep.mubr.bf16.mxu0 %v412
    %2265 = vmatmul.mubr.bf16.gmra.mrb[0].mxu0 %v411
    %v2266 = vpop.f32.mrb[0].mxu0
    %v2267 = vadd.f32 %v2194, %v2266
    %v2268 = vpop.f32.mrb[0].mxu0
    %v2269 = vadd.f32 %v2196, %v2268
    %v2270 = vpop.f32.mrb[0].mxu0
    %v2271 = vadd.f32 %v2198, %v2270
    %v2272 = vpop.f32.mrb[0].mxu0
    %v2273 = vadd.f32 %v2200, %v2272
    %2274 = vmatprep.mubr.bf16.mxu0 %v416
    %2275 = vmatmul.mubr.bf16.gmra.mrb[0].mxu0 %v415
    %v2276 = vpop.f32.mrb[0].mxu0
    %v2277 = vadd.f32 %v2204, %v2276
    %v2278 = vpop.f32.mrb[0].mxu0
    %v2279 = vadd.f32 %v2206, %v2278
    %v2280 = vpop.f32.mrb[0].mxu0
    %v2281 = vadd.f32 %v2208, %v2280
    %v2282 = vpop.f32.mrb[0].mxu0
    %v2283 = vadd.f32 %v2210, %v2282
    %2284 = vmatprep.mubr.bf16.mxu0 %v420
    %2285 = vmatmul.mubr.bf16.gmra.mrb[0].mxu0 %v419
    %v2286 = vpop.f32.mrb[0].mxu0
    %v2287 = vadd.f32 %v2214, %v2286
    %v2288 = vpop.f32.mrb[0].mxu0
    %v2289 = vadd.f32 %v2216, %v2288
    %v2290 = vpop.f32.mrb[0].mxu0
    %v2291 = vadd.f32 %v2218, %v2290
    %v2292 = vpop.f32.mrb[0].mxu0
    %v2293 = vadd.f32 %v2220, %v2292
    %2294 = vmatprep.mubr.bf16.mxu0 %v424
    %2295 = vmatmul.mubr.bf16.gmra.mrb[0].mxu0 %v423
    %v2296 = vpop.f32.mrb[0].mxu0
    %v2297 = vadd.f32 %v2224, %v2296
    %v2298 = vpop.f32.mrb[0].mxu0
    %v2299 = vadd.f32 %v2226, %v2298
    %v2300 = vpop.f32.mrb[0].mxu0
    %v2301 = vadd.f32 %v2228, %v2300
    %v2302 = vpop.f32.mrb[0].mxu0
    %v2303 = vadd.f32 %v2230, %v2302
    %2304 = vdwg.mxu0
    %2305 = vst [vmem:[#allocation2] sm:$0xff] %v1829
    %2306 = vst [vmem:[#allocation2 + $0x8] sm:$0xff] %v1831
    %2307 = vst [vmem:[#allocation2 + $0x10] sm:$0xff] %v1975
    %2308 = vst [vmem:[#allocation2 + $0x18] sm:$0xff] %v1977
    %2309 = vst [vmem:[#allocation2 + $0x20] sm:$0xff] %v2121
    %2310 = vst [vmem:[#allocation2 + $0x28] sm:$0xff] %v2123
    %2311 = vst [vmem:[#allocation2 + $0x30] sm:$0xff] %v2267
    %2312 = vst [vmem:[#allocation2 + $0x38] sm:$0xff] %v2269
    %2313 = vst [vmem:[#allocation2 + $0x40] sm:$0xff] %v1833
    %2314 = vst [vmem:[#allocation2 + $0x48] sm:$0xff] %v1835
    %2315 = vst [vmem:[#allocation2 + $0x50] sm:$0xff] %v1979
    %2316 = vst [vmem:[#allocation2 + $0x58] sm:$0xff] %v1981
    %2317 = vst [vmem:[#allocation2 + $0x60] sm:$0xff] %v2125
    %2318 = vst [vmem:[#allocation2 + $0x68] sm:$0xff] %v2127
    %2319 = vst [vmem:[#allocation2 + $0x70] sm:$0xff] %v2271
    %2320 = vst [vmem:[#allocation2 + $0x78] sm:$0xff] %v2273
    %2321 = vst [vmem:[#allocation2 + $0x80] sm:$0xff] %v1839
    %2322 = vst [vmem:[#allocation2 + $0x88] sm:$0xff] %v1841
    %2323 = vst [vmem:[#allocation2 + $0x90] sm:$0xff] %v1985
    %2324 = vst [vmem:[#allocation2 + $0x98] sm:$0xff] %v1987
    %2325 = vst [vmem:[#allocation2 + $0xa0] sm:$0xff] %v2131
    %2326 = vst [vmem:[#allocation2 + $0xa8] sm:$0xff] %v2133
    %2327 = vst [vmem:[#allocation2 + $0xb0] sm:$0xff] %v2277
    %2328 = vst [vmem:[#allocation2 + $0xb8] sm:$0xff] %v2279
    %2329 = vst [vmem:[#allocation2 + $0xc0] sm:$0xff] %v1843
    %2330 = vst [vmem:[#allocation2 + $0xc8] sm:$0xff] %v1845
    %2331 = vst [vmem:[#allocation2 + $0xd0] sm:$0xff] %v1989
    %2332 = vst [vmem:[#allocation2 + $0xd8] sm:$0xff] %v1991
    %2333 = vst [vmem:[#allocation2 + $0xe0] sm:$0xff] %v2135
    %2334 = vst [vmem:[#allocation2 + $0xe8] sm:$0xff] %v2137
    %2335 = vst [vmem:[#allocation2 + $0xf0] sm:$0xff] %v2281
    %2336 = vst [vmem:[#allocation2 + $0xf8] sm:$0xff] %v2283
    %2337 = vst [vmem:[#allocation2 + $0x100] sm:$0xff] %v1849
    %2338 = vst [vmem:[#allocation2 + $0x108] sm:$0xff] %v1851
    %2339 = vst [vmem:[#allocation2 + $0x110] sm:$0xff] %v1995
    %2340 = vst [vmem:[#allocation2 + $0x118] sm:$0xff] %v1997
    %2341 = vst [vmem:[#allocation2 + $0x120] sm:$0xff] %v2141
    %2342 = vst [vmem:[#allocation2 + $0x128] sm:$0xff] %v2143
    %2343 = vst [vmem:[#allocation2 + $0x130] sm:$0xff] %v2287
    %2344 = vst [vmem:[#allocation2 + $0x138] sm:$0xff] %v2289
    %2345 = vst [vmem:[#allocation2 + $0x140] sm:$0xff] %v1853
    %2346 = vst [vmem:[#allocation2 + $0x148] sm:$0xff] %v1855
    %2347 = vst [vmem:[#allocation2 + $0x150] sm:$0xff] %v1999
    %2348 = vst [vmem:[#allocation2 + $0x158] sm:$0xff] %v2001
    %2349 = vst [vmem:[#allocation2 + $0x160] sm:$0xff] %v2145
    %2350 = vst [vmem:[#allocation2 + $0x168] sm:$0xff] %v2147
    %2351 = vst [vmem:[#allocation2 + $0x170] sm:$0xff] %v2291
    %2352 = vst [vmem:[#allocation2 + $0x178] sm:$0xff] %v2293
    %2353 = vst [vmem:[#allocation2 + $0x180] sm:$0xff] %v1859
    %2354 = vst [vmem:[#allocation2 + $0x188] sm:$0xff] %v1861
    %2355 = vst [vmem:[#allocation2 + $0x190] sm:$0xff] %v2005
    %2356 = vst [vmem:[#allocation2 + $0x198] sm:$0xff] %v2007
    %2357 = vst [vmem:[#allocation2 + $0x1a0] sm:$0xff] %v2151
    %2358 = vst [vmem:[#allocation2 + $0x1a8] sm:$0xff] %v2153
    %2359 = vst [vmem:[#allocation2 + $0x1b0] sm:$0xff] %v2297
    %2360 = vst [vmem:[#allocation2 + $0x1b8] sm:$0xff] %v2299
    %2361 = vst [vmem:[#allocation2 + $0x1c0] sm:$0xff] %v1863
    %2362 = vst [vmem:[#allocation2 + $0x1c8] sm:$0xff] %v1865
    %2363 = vst [vmem:[#allocation2 + $0x1d0] sm:$0xff] %v2009
    %2364 = vst [vmem:[#allocation2 + $0x1d8] sm:$0xff] %v2011
    %2365 = vst [vmem:[#allocation2 + $0x1e0] sm:$0xff] %v2155
    %2366 = vst [vmem:[#allocation2 + $0x1e8] sm:$0xff] %v2157
    %2367 = vst [vmem:[#allocation2 + $0x1f0] sm:$0xff] %v2301
    %2368 = vst [vmem:[#allocation2 + $0x1f8] sm:$0xff] %v2303
    %v2369 = vld [vmem:[#allocation2] sm:$0xff]
    %v2370 = vld [vmem:[#allocation2 + $0x8] sm:$0xff]
    %v2371 = vld [vmem:[#allocation2 + $0x10] sm:$0xff]
    %v2372 = vld [vmem:[#allocation2 + $0x18] sm:$0xff]
    %v2373 = vld [vmem:[#allocation2 + $0x20] sm:$0xff]
    %v2374 = vld [vmem:[#allocation2 + $0x28] sm:$0xff]
    %v2375 = vld [vmem:[#allocation2 + $0x30] sm:$0xff]
    %v2376 = vld [vmem:[#allocation2 + $0x38] sm:$0xff]
    %v2377 = vld [vmem:[#allocation6] sm:$0xff]
    %v2378 = vld [vmem:[#allocation6 + $0x8] sm:$0xff]
    %v2379 = vld [vmem:[#allocation6 + $0x10] sm:$0xff]
    %v2380 = vld [vmem:[#allocation6 + $0x18] sm:$0xff]
    %v2381 = vld [vmem:[#allocation6 + $0x20] sm:$0xff]
    %v2382 = vld [vmem:[#allocation6 + $0x28] sm:$0xff]
    %v2383 = vld [vmem:[#allocation6 + $0x30] sm:$0xff]
    %v2384 = vld [vmem:[#allocation6 + $0x38] sm:$0xff]
    %v2385 = vld [vmem:[#allocation6 + $0x40] sm:$0xff]
    %v2386 = vld [vmem:[#allocation6 + $0x48] sm:$0xff]
    %v2387 = vld [vmem:[#allocation6 + $0x50] sm:$0xff]
    %v2388 = vld [vmem:[#allocation6 + $0x58] sm:$0xff]
    %v2389 = vld [vmem:[#allocation6 + $0x60] sm:$0xff]
    %v2390 = vld [vmem:[#allocation6 + $0x68] sm:$0xff]
    %v2391 = vld [vmem:[#allocation6 + $0x70] sm:$0xff]
    %v2392 = vld [vmem:[#allocation6 + $0x78] sm:$0xff]
    %v2393 = vld [vmem:[#allocation6 + $0x80] sm:$0xff]
    %v2394 = vld [vmem:[#allocation6 + $0x88] sm:$0xff]
    %v2395 = vld [vmem:[#allocation6 + $0x90] sm:$0xff]
    %v2396 = vld [vmem:[#allocation6 + $0x98] sm:$0xff]
    %v2397 = vld [vmem:[#allocation6 + $0xa0] sm:$0xff]
    %v2398 = vld [vmem:[#allocation6 + $0xa8] sm:$0xff]
    %v2399 = vld [vmem:[#allocation6 + $0xb0] sm:$0xff]
    %v2400 = vld [vmem:[#allocation6 + $0xb8] sm:$0xff]
    %v2401 = vld [vmem:[#allocation6 + $0xc0] sm:$0xff]
    %v2402 = vld [vmem:[#allocation6 + $0xc8] sm:$0xff]
    %v2403 = vld [vmem:[#allocation6 + $0xd0] sm:$0xff]
    %v2404 = vld [vmem:[#allocation6 + $0xd8] sm:$0xff]
    %v2405 = vld [vmem:[#allocation6 + $0xe0] sm:$0xff]
    %v2406 = vld [vmem:[#allocation6 + $0xe8] sm:$0xff]
    %v2407 = vld [vmem:[#allocation6 + $0xf0] sm:$0xff]
    %v2408 = vld [vmem:[#allocation6 + $0xf8] sm:$0xff]
    %v2409 = vld [vmem:[#allocation6 + $0x100] sm:$0xff]
    %v2410 = vld [vmem:[#allocation6 + $0x108] sm:$0xff]
    %v2411 = vld [vmem:[#allocation6 + $0x110] sm:$0xff]
    %v2412 = vld [vmem:[#allocation6 + $0x118] sm:$0xff]
    %v2413 = vld [vmem:[#allocation6 + $0x120] sm:$0xff]
    %v2414 = vld [vmem:[#allocation6 + $0x128] sm:$0xff]
    %v2415 = vld [vmem:[#allocation6 + $0x130] sm:$0xff]
    %v2416 = vld [vmem:[#allocation6 + $0x138] sm:$0xff]
    %v2417 = vld [vmem:[#allocation6 + $0x140] sm:$0xff]
    %v2418 = vld [vmem:[#allocation6 + $0x148] sm:$0xff]
    %v2419 = vld [vmem:[#allocation6 + $0x150] sm:$0xff]
    %v2420 = vld [vmem:[#allocation6 + $0x158] sm:$0xff]
    %v2421 = vld [vmem:[#allocation6 + $0x160] sm:$0xff]
    %v2422 = vld [vmem:[#allocation6 + $0x168] sm:$0xff]
    %v2423 = vld [vmem:[#allocation6 + $0x170] sm:$0xff]
    %v2424 = vld [vmem:[#allocation6 + $0x178] sm:$0xff]
    %v2425 = vld [vmem:[#allocation6 + $0x180] sm:$0xff]
    %v2426 = vld [vmem:[#allocation6 + $0x188] sm:$0xff]
    %v2427 = vld [vmem:[#allocation6 + $0x190] sm:$0xff]
    %v2428 = vld [vmem:[#allocation6 + $0x198] sm:$0xff]
    %v2429 = vld [vmem:[#allocation6 + $0x1a0] sm:$0xff]
    %v2430 = vld [vmem:[#allocation6 + $0x1a8] sm:$0xff]
    %v2431 = vld [vmem:[#allocation6 + $0x1b0] sm:$0xff]
    %v2432 = vld [vmem:[#allocation6 + $0x1b8] sm:$0xff]
    %v2433 = vld [vmem:[#allocation6 + $0x1c0] sm:$0xff]
    %v2434 = vld [vmem:[#allocation6 + $0x1c8] sm:$0xff]
    %v2435 = vld [vmem:[#allocation6 + $0x1d0] sm:$0xff]
    %v2436 = vld [vmem:[#allocation6 + $0x1d8] sm:$0xff]
    %v2437 = vld [vmem:[#allocation6 + $0x1e0] sm:$0xff]
    %v2438 = vld [vmem:[#allocation6 + $0x1e8] sm:$0xff]
    %v2439 = vld [vmem:[#allocation6 + $0x1f0] sm:$0xff]
    %v2440 = vld [vmem:[#allocation6 + $0x1f8] sm:$0xff]
    %v2441 = vld [vmem:[#allocation6 + $0x200] sm:$0xff]
    %v2442 = vld [vmem:[#allocation6 + $0x208] sm:$0xff]
    %v2443 = vld [vmem:[#allocation6 + $0x210] sm:$0xff]
    %v2444 = vld [vmem:[#allocation6 + $0x218] sm:$0xff]
    %v2445 = vld [vmem:[#allocation6 + $0x220] sm:$0xff]
    %v2446 = vld [vmem:[#allocation6 + $0x228] sm:$0xff]
    %v2447 = vld [vmem:[#allocation6 + $0x230] sm:$0xff]
    %v2448 = vld [vmem:[#allocation6 + $0x238] sm:$0xff]
    %v2449 = vld [vmem:[#allocation6 + $0x240] sm:$0xff]
    %v2450 = vld [vmem:[#allocation6 + $0x248] sm:$0xff]
    %v2451 = vld [vmem:[#allocation6 + $0x250] sm:$0xff]
    %v2452 = vld [vmem:[#allocation6 + $0x258] sm:$0xff]
    %v2453 = vld [vmem:[#allocation6 + $0x260] sm:$0xff]
    %v2454 = vld [vmem:[#allocation6 + $0x268] sm:$0xff]
    %v2455 = vld [vmem:[#allocation6 + $0x270] sm:$0xff]
    %v2456 = vld [vmem:[#allocation6 + $0x278] sm:$0xff]
    %v2457 = vld [vmem:[#allocation6 + $0x280] sm:$0xff]
    %v2458 = vld [vmem:[#allocation6 + $0x288] sm:$0xff]
    %v2459 = vld [vmem:[#allocation6 + $0x290] sm:$0xff]
    %v2460 = vld [vmem:[#allocation6 + $0x298] sm:$0xff]
    %v2461 = vld [vmem:[#allocation6 + $0x2a0] sm:$0xff]
    %v2462 = vld [vmem:[#allocation6 + $0x2a8] sm:$0xff]
    %v2463 = vld [vmem:[#allocation6 + $0x2b0] sm:$0xff]
    %v2464 = vld [vmem:[#allocation6 + $0x2b8] sm:$0xff]
    %v2465 = vld [vmem:[#allocation6 + $0x2c0] sm:$0xff]
    %v2466 = vld [vmem:[#allocation6 + $0x2c8] sm:$0xff]
    %v2467 = vld [vmem:[#allocation6 + $0x2d0] sm:$0xff]
    %v2468 = vld [vmem:[#allocation6 + $0x2d8] sm:$0xff]
    %v2469 = vld [vmem:[#allocation6 + $0x2e0] sm:$0xff]
    %v2470 = vld [vmem:[#allocation6 + $0x2e8] sm:$0xff]
    %v2471 = vld [vmem:[#allocation6 + $0x2f0] sm:$0xff]
    %v2472 = vld [vmem:[#allocation6 + $0x2f8] sm:$0xff]
    %v2473 = vld [vmem:[#allocation6 + $0x300] sm:$0xff]
    %v2474 = vld [vmem:[#allocation6 + $0x308] sm:$0xff]
    %v2475 = vld [vmem:[#allocation6 + $0x310] sm:$0xff]
    %v2476 = vld [vmem:[#allocation6 + $0x318] sm:$0xff]
    %v2477 = vld [vmem:[#allocation6 + $0x320] sm:$0xff]
    %v2478 = vld [vmem:[#allocation6 + $0x328] sm:$0xff]
    %v2479 = vld [vmem:[#allocation6 + $0x330] sm:$0xff]
    %v2480 = vld [vmem:[#allocation6 + $0x338] sm:$0xff]
    %v2481 = vld [vmem:[#allocation6 + $0x340] sm:$0xff]
    %v2482 = vld [vmem:[#allocation6 + $0x348] sm:$0xff]
    %v2483 = vld [vmem:[#allocation6 + $0x350] sm:$0xff]
    %v2484 = vld [vmem:[#allocation6 + $0x358] sm:$0xff]
    %v2485 = vld [vmem:[#allocation6 + $0x360] sm:$0xff]
    %v2486 = vld [vmem:[#allocation6 + $0x368] sm:$0xff]
    %v2487 = vld [vmem:[#allocation6 + $0x370] sm:$0xff]
    %v2488 = vld [vmem:[#allocation6 + $0x378] sm:$0xff]
    %v2489 = vld [vmem:[#allocation6 + $0x380] sm:$0xff]
    %v2490 = vld [vmem:[#allocation6 + $0x388] sm:$0xff]
    %v2491 = vld [vmem:[#allocation6 + $0x390] sm:$0xff]
    %v2492 = vld [vmem:[#allocation6 + $0x398] sm:$0xff]
    %v2493 = vld [vmem:[#allocation6 + $0x3a0] sm:$0xff]
    %v2494 = vld [vmem:[#allocation6 + $0x3a8] sm:$0xff]
    %v2495 = vld [vmem:[#allocation6 + $0x3b0] sm:$0xff]
    %v2496 = vld [vmem:[#allocation6 + $0x3b8] sm:$0xff]
    %v2497 = vld [vmem:[#allocation6 + $0x3c0] sm:$0xff]
    %v2498 = vld [vmem:[#allocation6 + $0x3c8] sm:$0xff]
    %v2499 = vld [vmem:[#allocation6 + $0x3d0] sm:$0xff]
    %v2500 = vld [vmem:[#allocation6 + $0x3d8] sm:$0xff]
    %v2501 = vld [vmem:[#allocation6 + $0x3e0] sm:$0xff]
    %v2502 = vld [vmem:[#allocation6 + $0x3e8] sm:$0xff]
    %v2503 = vld [vmem:[#allocation6 + $0x3f0] sm:$0xff]
    %v2504 = vld [vmem:[#allocation6 + $0x3f8] sm:$0xff]
    %v2633 = vunpack.c.l.b16 %v2377
    %v2634 = vunpack.c.h.b16 %v2377
    %v2635 = vunpack.c.l.b16 %v2378
    %v2636 = vunpack.c.h.b16 %v2378
    %v2637 = vunpack.c.l.b16 %v2379
    %v2638 = vunpack.c.h.b16 %v2379
    %v2639 = vunpack.c.l.b16 %v2380
    %v2640 = vunpack.c.h.b16 %v2380
    %v2641 = vunpack.c.l.b16 %v2381
    %v2642 = vunpack.c.h.b16 %v2381
    %v2643 = vunpack.c.l.b16 %v2382
    %v2644 = vunpack.c.h.b16 %v2382
    %v2645 = vunpack.c.l.b16 %v2383
    %v2646 = vunpack.c.h.b16 %v2383
    %v2647 = vunpack.c.l.b16 %v2384
    %v2648 = vunpack.c.h.b16 %v2384
    %v2649 = vunpack.c.l.b16 %v2385
    %v2650 = vunpack.c.h.b16 %v2385
    %v2651 = vunpack.c.l.b16 %v2386
    %v2652 = vunpack.c.h.b16 %v2386
    %v2653 = vunpack.c.l.b16 %v2387
    %v2654 = vunpack.c.h.b16 %v2387
    %v2655 = vunpack.c.l.b16 %v2388
    %v2656 = vunpack.c.h.b16 %v2388
    %v2657 = vunpack.c.l.b16 %v2389
    %v2658 = vunpack.c.h.b16 %v2389
    %v2659 = vunpack.c.l.b16 %v2390
    %v2660 = vunpack.c.h.b16 %v2390
    %v2661 = vunpack.c.l.b16 %v2391
    %v2662 = vunpack.c.h.b16 %v2391
    %v2663 = vunpack.c.l.b16 %v2392
    %v2664 = vunpack.c.h.b16 %v2392
    %v2665 = vunpack.c.l.b16 %v2393
    %v2666 = vunpack.c.h.b16 %v2393
    %v2667 = vunpack.c.l.b16 %v2394
    %v2668 = vunpack.c.h.b16 %v2394
    %v2669 = vunpack.c.l.b16 %v2395
    %v2670 = vunpack.c.h.b16 %v2395
    %v2671 = vunpack.c.l.b16 %v2396
    %v2672 = vunpack.c.h.b16 %v2396
    %v2673 = vunpack.c.l.b16 %v2397
    %v2674 = vunpack.c.h.b16 %v2397
    %v2675 = vunpack.c.l.b16 %v2398
    %v2676 = vunpack.c.h.b16 %v2398
    %v2677 = vunpack.c.l.b16 %v2399
    %v2678 = vunpack.c.h.b16 %v2399
    %v2679 = vunpack.c.l.b16 %v2400
    %v2680 = vunpack.c.h.b16 %v2400
    %v2681 = vunpack.c.l.b16 %v2401
    %v2682 = vunpack.c.h.b16 %v2401
    %v2683 = vunpack.c.l.b16 %v2402
    %v2684 = vunpack.c.h.b16 %v2402
    %v2685 = vunpack.c.l.b16 %v2403
    %v2686 = vunpack.c.h.b16 %v2403
    %v2687 = vunpack.c.l.b16 %v2404
    %v2688 = vunpack.c.h.b16 %v2404
    %v2689 = vunpack.c.l.b16 %v2405
    %v2690 = vunpack.c.h.b16 %v2405
    %v2691 = vunpack.c.l.b16 %v2406
    %v2692 = vunpack.c.h.b16 %v2406
    %v2693 = vunpack.c.l.b16 %v2407
    %v2694 = vunpack.c.h.b16 %v2407
    %v2695 = vunpack.c.l.b16 %v2408
    %v2696 = vunpack.c.h.b16 %v2408
    %v2697 = vunpack.c.l.b16 %v2409
    %v2698 = vunpack.c.h.b16 %v2409
    %v2699 = vunpack.c.l.b16 %v2410
    %v2700 = vunpack.c.h.b16 %v2410
    %v2701 = vunpack.c.l.b16 %v2411
    %v2702 = vunpack.c.h.b16 %v2411
    %v2703 = vunpack.c.l.b16 %v2412
    %v2704 = vunpack.c.h.b16 %v2412
    %v2705 = vunpack.c.l.b16 %v2413
    %v2706 = vunpack.c.h.b16 %v2413
    %v2707 = vunpack.c.l.b16 %v2414
    %v2708 = vunpack.c.h.b16 %v2414
    %v2709 = vunpack.c.l.b16 %v2415
    %v2710 = vunpack.c.h.b16 %v2415
    %v2711 = vunpack.c.l.b16 %v2416
    %v2712 = vunpack.c.h.b16 %v2416
    %v2713 = vunpack.c.l.b16 %v2417
    %v2714 = vunpack.c.h.b16 %v2417
    %v2715 = vunpack.c.l.b16 %v2418
    %v2716 = vunpack.c.h.b16 %v2418
    %v2717 = vunpack.c.l.b16 %v2419
    %v2718 = vunpack.c.h.b16 %v2419
    %v2719 = vunpack.c.l.b16 %v2420
    %v2720 = vunpack.c.h.b16 %v2420
    %v2721 = vunpack.c.l.b16 %v2421
    %v2722 = vunpack.c.h.b16 %v2421
    %v2723 = vunpack.c.l.b16 %v2422
    %v2724 = vunpack.c.h.b16 %v2422
    %v2725 = vunpack.c.l.b16 %v2423
    %v2726 = vunpack.c.h.b16 %v2423
    %v2727 = vunpack.c.l.b16 %v2424
    %v2728 = vunpack.c.h.b16 %v2424
    %v2729 = vunpack.c.l.b16 %v2425
    %v2730 = vunpack.c.h.b16 %v2425
    %v2731 = vunpack.c.l.b16 %v2426
    %v2732 = vunpack.c.h.b16 %v2426
    %v2733 = vunpack.c.l.b16 %v2427
    %v2734 = vunpack.c.h.b16 %v2427
    %v2735 = vunpack.c.l.b16 %v2428
    %v2736 = vunpack.c.h.b16 %v2428
    %v2737 = vunpack.c.l.b16 %v2429
    %v2738 = vunpack.c.h.b16 %v2429
    %v2739 = vunpack.c.l.b16 %v2430
    %v2740 = vunpack.c.h.b16 %v2430
    %v2741 = vunpack.c.l.b16 %v2431
    %v2742 = vunpack.c.h.b16 %v2431
    %v2743 = vunpack.c.l.b16 %v2432
    %v2744 = vunpack.c.h.b16 %v2432
    %v2745 = vunpack.c.l.b16 %v2433
    %v2746 = vunpack.c.h.b16 %v2433
    %v2747 = vunpack.c.l.b16 %v2434
    %v2748 = vunpack.c.h.b16 %v2434
    %v2749 = vunpack.c.l.b16 %v2435
    %v2750 = vunpack.c.h.b16 %v2435
    %v2751 = vunpack.c.l.b16 %v2436
    %v2752 = vunpack.c.h.b16 %v2436
    %v2753 = vunpack.c.l.b16 %v2437
    %v2754 = vunpack.c.h.b16 %v2437
    %v2755 = vunpack.c.l.b16 %v2438
    %v2756 = vunpack.c.h.b16 %v2438
    %v2757 = vunpack.c.l.b16 %v2439
    %v2758 = vunpack.c.h.b16 %v2439
    %v2759 = vunpack.c.l.b16 %v2440
    %v2760 = vunpack.c.h.b16 %v2440
    %v2761 = vunpack.c.l.b16 %v2441
    %v2762 = vunpack.c.h.b16 %v2441
    %v2763 = vunpack.c.l.b16 %v2442
    %v2764 = vunpack.c.h.b16 %v2442
    %v2765 = vunpack.c.l.b16 %v2443
    %v2766 = vunpack.c.h.b16 %v2443
    %v2767 = vunpack.c.l.b16 %v2444
    %v2768 = vunpack.c.h.b16 %v2444
    %v2769 = vunpack.c.l.b16 %v2445
    %v2770 = vunpack.c.h.b16 %v2445
    %v2771 = vunpack.c.l.b16 %v2446
    %v2772 = vunpack.c.h.b16 %v2446
    %v2773 = vunpack.c.l.b16 %v2447
    %v2774 = vunpack.c.h.b16 %v2447
    %v2775 = vunpack.c.l.b16 %v2448
    %v2776 = vunpack.c.h.b16 %v2448
    %v2777 = vunpack.c.l.b16 %v2449
    %v2778 = vunpack.c.h.b16 %v2449
    %v2779 = vunpack.c.l.b16 %v2450
    %v2780 = vunpack.c.h.b16 %v2450
    %v2781 = vunpack.c.l.b16 %v2451
    %v2782 = vunpack.c.h.b16 %v2451
    %v2783 = vunpack.c.l.b16 %v2452
    %v2784 = vunpack.c.h.b16 %v2452
    %v2785 = vunpack.c.l.b16 %v2453
    %v2786 = vunpack.c.h.b16 %v2453
    %v2787 = vunpack.c.l.b16 %v2454
    %v2788 = vunpack.c.h.b16 %v2454
    %v2789 = vunpack.c.l.b16 %v2455
    %v2790 = vunpack.c.h.b16 %v2455
    %v2791 = vunpack.c.l.b16 %v2456
    %v2792 = vunpack.c.h.b16 %v2456
    %v2793 = vunpack.c.l.b16 %v2457
    %v2794 = vunpack.c.h.b16 %v2457
    %v2795 = vunpack.c.l.b16 %v2458
    %v2796 = vunpack.c.h.b16 %v2458
    %v2797 = vunpack.c.l.b16 %v2459
    %v2798 = vunpack.c.h.b16 %v2459
    %v2799 = vunpack.c.l.b16 %v2460
    %v2800 = vunpack.c.h.b16 %v2460
    %v2801 = vunpack.c.l.b16 %v2461
    %v2802 = vunpack.c.h.b16 %v2461
    %v2803 = vunpack.c.l.b16 %v2462
    %v2804 = vunpack.c.h.b16 %v2462
    %v2805 = vunpack.c.l.b16 %v2463
    %v2806 = vunpack.c.h.b16 %v2463
    %v2807 = vunpack.c.l.b16 %v2464
    %v2808 = vunpack.c.h.b16 %v2464
    %v2809 = vunpack.c.l.b16 %v2465
    %v2810 = vunpack.c.h.b16 %v2465
    %v2811 = vunpack.c.l.b16 %v2466
    %v2812 = vunpack.c.h.b16 %v2466
    %v2813 = vunpack.c.l.b16 %v2467
    %v2814 = vunpack.c.h.b16 %v2467
    %v2815 = vunpack.c.l.b16 %v2468
    %v2816 = vunpack.c.h.b16 %v2468
    %v2817 = vunpack.c.l.b16 %v2469
    %v2818 = vunpack.c.h.b16 %v2469
    %v2819 = vunpack.c.l.b16 %v2470
    %v2820 = vunpack.c.h.b16 %v2470
    %v2821 = vunpack.c.l.b16 %v2471
    %v2822 = vunpack.c.h.b16 %v2471
    %v2823 = vunpack.c.l.b16 %v2472
    %v2824 = vunpack.c.h.b16 %v2472
    %v2825 = vunpack.c.l.b16 %v2473
    %v2826 = vunpack.c.h.b16 %v2473
    %v2827 = vunpack.c.l.b16 %v2474
    %v2828 = vunpack.c.h.b16 %v2474
    %v2829 = vunpack.c.l.b16 %v2475
    %v2830 = vunpack.c.h.b16 %v2475
    %v2831 = vunpack.c.l.b16 %v2476
    %v2832 = vunpack.c.h.b16 %v2476
    %v2833 = vunpack.c.l.b16 %v2477
    %v2834 = vunpack.c.h.b16 %v2477
    %v2835 = vunpack.c.l.b16 %v2478
    %v2836 = vunpack.c.h.b16 %v2478
    %v2837 = vunpack.c.l.b16 %v2479
    %v2838 = vunpack.c.h.b16 %v2479
    %v2839 = vunpack.c.l.b16 %v2480
    %v2840 = vunpack.c.h.b16 %v2480
    %v2841 = vunpack.c.l.b16 %v2481
    %v2842 = vunpack.c.h.b16 %v2481
    %v2843 = vunpack.c.l.b16 %v2482
    %v2844 = vunpack.c.h.b16 %v2482
    %v2845 = vunpack.c.l.b16 %v2483
    %v2846 = vunpack.c.h.b16 %v2483
    %v2847 = vunpack.c.l.b16 %v2484
    %v2848 = vunpack.c.h.b16 %v2484
    %v2849 = vunpack.c.l.b16 %v2485
    %v2850 = vunpack.c.h.b16 %v2485
    %v2851 = vunpack.c.l.b16 %v2486
    %v2852 = vunpack.c.h.b16 %v2486
    %v2853 = vunpack.c.l.b16 %v2487
    %v2854 = vunpack.c.h.b16 %v2487
    %v2855 = vunpack.c.l.b16 %v2488
    %v2856 = vunpack.c.h.b16 %v2488
    %v2857 = vunpack.c.l.b16 %v2489
    %v2858 = vunpack.c.h.b16 %v2489
    %v2859 = vunpack.c.l.b16 %v2490
    %v2860 = vunpack.c.h.b16 %v2490
    %v2861 = vunpack.c.l.b16 %v2491
    %v2862 = vunpack.c.h.b16 %v2491
    %v2863 = vunpack.c.l.b16 %v2492
    %v2864 = vunpack.c.h.b16 %v2492
    %v2865 = vunpack.c.l.b16 %v2493
    %v2866 = vunpack.c.h.b16 %v2493
    %v2867 = vunpack.c.l.b16 %v2494
    %v2868 = vunpack.c.h.b16 %v2494
    %v2869 = vunpack.c.l.b16 %v2495
    %v2870 = vunpack.c.h.b16 %v2495
    %v2871 = vunpack.c.l.b16 %v2496
    %v2872 = vunpack.c.h.b16 %v2496
    %v2873 = vunpack.c.l.b16 %v2497
    %v2874 = vunpack.c.h.b16 %v2497
    %v2875 = vunpack.c.l.b16 %v2498
    %v2876 = vunpack.c.h.b16 %v2498
    %v2877 = vunpack.c.l.b16 %v2499
    %v2878 = vunpack.c.h.b16 %v2499
    %v2879 = vunpack.c.l.b16 %v2500
    %v2880 = vunpack.c.h.b16 %v2500
    %v2881 = vunpack.c.l.b16 %v2501
    %v2882 = vunpack.c.h.b16 %v2501
    %v2883 = vunpack.c.l.b16 %v2502
    %v2884 = vunpack.c.h.b16 %v2502
    %v2885 = vunpack.c.l.b16 %v2503
    %v2886 = vunpack.c.h.b16 %v2503
    %v2887 = vunpack.c.l.b16 %v2504
    %v2888 = vunpack.c.h.b16 %v2504
    %v2889 = vpack.c.b16 %v2641, %v2633
    %v2890 = vpack.c.b16 %v2642, %v2634
    %v2891 = vpack.c.b16 %v2643, %v2635
    %v2892 = vpack.c.b16 %v2644, %v2636
    %v2893 = vpack.c.b16 %v2645, %v2637
    %v2894 = vpack.c.b16 %v2646, %v2638
    %v2895 = vpack.c.b16 %v2647, %v2639
    %v2896 = vpack.c.b16 %v2648, %v2640
    %v2897 = vpack.c.b16 %v2657, %v2649
    %v2898 = vpack.c.b16 %v2658, %v2650
    %v2899 = vpack.c.b16 %v2659, %v2651
    %v2900 = vpack.c.b16 %v2660, %v2652
    %v2901 = vpack.c.b16 %v2661, %v2653
    %v2902 = vpack.c.b16 %v2662, %v2654
    %v2903 = vpack.c.b16 %v2663, %v2655
    %v2904 = vpack.c.b16 %v2664, %v2656
    %v2905 = vpack.c.b16 %v2673, %v2665
    %v2906 = vpack.c.b16 %v2674, %v2666
    %v2907 = vpack.c.b16 %v2675, %v2667
    %v2908 = vpack.c.b16 %v2676, %v2668
    %v2909 = vpack.c.b16 %v2677, %v2669
    %v2910 = vpack.c.b16 %v2678, %v2670
    %v2911 = vpack.c.b16 %v2679, %v2671
    %v2912 = vpack.c.b16 %v2680, %v2672
    %v2913 = vpack.c.b16 %v2689, %v2681
    %v2914 = vpack.c.b16 %v2690, %v2682
    %v2915 = vpack.c.b16 %v2691, %v2683
    %v2916 = vpack.c.b16 %v2692, %v2684
    %v2917 = vpack.c.b16 %v2693, %v2685
    %v2918 = vpack.c.b16 %v2694, %v2686
    %v2919 = vpack.c.b16 %v2695, %v2687
    %v2920 = vpack.c.b16 %v2696, %v2688
    %v2921 = vpack.c.b16 %v2705, %v2697
    %v2922 = vpack.c.b16 %v2706, %v2698
    %v2923 = vpack.c.b16 %v2707, %v2699
    %v2924 = vpack.c.b16 %v2708, %v2700
    %v2925 = vpack.c.b16 %v2709, %v2701
    %v2926 = vpack.c.b16 %v2710, %v2702
    %v2927 = vpack.c.b16 %v2711, %v2703
    %v2928 = vpack.c.b16 %v2712, %v2704
    %v2929 = vpack.c.b16 %v2721, %v2713
    %v2930 = vpack.c.b16 %v2722, %v2714
    %v2931 = vpack.c.b16 %v2723, %v2715
    %v2932 = vpack.c.b16 %v2724, %v2716
    %v2933 = vpack.c.b16 %v2725, %v2717
    %v2934 = vpack.c.b16 %v2726, %v2718
    %v2935 = vpack.c.b16 %v2727, %v2719
    %v2936 = vpack.c.b16 %v2728, %v2720
    %v2937 = vpack.c.b16 %v2737, %v2729
    %v2938 = vpack.c.b16 %v2738, %v2730
    %v2939 = vpack.c.b16 %v2739, %v2731
    %v2940 = vpack.c.b16 %v2740, %v2732
    %v2941 = vpack.c.b16 %v2741, %v2733
    %v2942 = vpack.c.b16 %v2742, %v2734
    %v2943 = vpack.c.b16 %v2743, %v2735
    %v2944 = vpack.c.b16 %v2744, %v2736
    %v2945 = vpack.c.b16 %v2753, %v2745
    %v2946 = vpack.c.b16 %v2754, %v2746
    %v2947 = vpack.c.b16 %v2755, %v2747
    %v2948 = vpack.c.b16 %v2756, %v2748
    %v2949 = vpack.c.b16 %v2757, %v2749
    %v2950 = vpack.c.b16 %v2758, %v2750
    %v2951 = vpack.c.b16 %v2759, %v2751
    %v2952 = vpack.c.b16 %v2760, %v2752
    %v2953 = vpack.c.b16 %v2769, %v2761
    %v2954 = vpack.c.b16 %v2770, %v2762
    %v2955 = vpack.c.b16 %v2771, %v2763
    %v2956 = vpack.c.b16 %v2772, %v2764
    %v2957 = vpack.c.b16 %v2773, %v2765
    %v2958 = vpack.c.b16 %v2774, %v2766
    %v2959 = vpack.c.b16 %v2775, %v2767
    %v2960 = vpack.c.b16 %v2776, %v2768
    %v2961 = vpack.c.b16 %v2785, %v2777
    %v2962 = vpack.c.b16 %v2786, %v2778
    %v2963 = vpack.c.b16 %v2787, %v2779
    %v2964 = vpack.c.b16 %v2788, %v2780
    %v2965 = vpack.c.b16 %v2789, %v2781
    %v2966 = vpack.c.b16 %v2790, %v2782
    %v2967 = vpack.c.b16 %v2791, %v2783
    %v2968 = vpack.c.b16 %v2792, %v2784
    %v2969 = vpack.c.b16 %v2801, %v2793
    %v2970 = vpack.c.b16 %v2802, %v2794
    %v2971 = vpack.c.b16 %v2803, %v2795
    %v2972 = vpack.c.b16 %v2804, %v2796
    %v2973 = vpack.c.b16 %v2805, %v2797
    %v2974 = vpack.c.b16 %v2806, %v2798
    %v2975 = vpack.c.b16 %v2807, %v2799
    %v2976 = vpack.c.b16 %v2808, %v2800
    %v2977 = vpack.c.b16 %v2817, %v2809
    %v2978 = vpack.c.b16 %v2818, %v2810
    %v2979 = vpack.c.b16 %v2819, %v2811
    %v2980 = vpack.c.b16 %v2820, %v2812
    %v2981 = vpack.c.b16 %v2821, %v2813
    %v2982 = vpack.c.b16 %v2822, %v2814
    %v2983 = vpack.c.b16 %v2823, %v2815
    %v2984 = vpack.c.b16 %v2824, %v2816
    %v2985 = vpack.c.b16 %v2833, %v2825
    %v2986 = vpack.c.b16 %v2834, %v2826
    %v2987 = vpack.c.b16 %v2835, %v2827
    %v2988 = vpack.c.b16 %v2836, %v2828
    %v2989 = vpack.c.b16 %v2837, %v2829
    %v2990 = vpack.c.b16 %v2838, %v2830
    %v2991 = vpack.c.b16 %v2839, %v2831
    %v2992 = vpack.c.b16 %v2840, %v2832
    %v2993 = vpack.c.b16 %v2849, %v2841
    %v2994 = vpack.c.b16 %v2850, %v2842
    %v2995 = vpack.c.b16 %v2851, %v2843
    %v2996 = vpack.c.b16 %v2852, %v2844
    %v2997 = vpack.c.b16 %v2853, %v2845
    %v2998 = vpack.c.b16 %v2854, %v2846
    %v2999 = vpack.c.b16 %v2855, %v2847
    %v3000 = vpack.c.b16 %v2856, %v2848
    %v3001 = vpack.c.b16 %v2865, %v2857
    %v3002 = vpack.c.b16 %v2866, %v2858
    %v3003 = vpack.c.b16 %v2867, %v2859
    %v3004 = vpack.c.b16 %v2868, %v2860
    %v3005 = vpack.c.b16 %v2869, %v2861
    %v3006 = vpack.c.b16 %v2870, %v2862
    %v3007 = vpack.c.b16 %v2871, %v2863
    %v3008 = vpack.c.b16 %v2872, %v2864
    %v3009 = vpack.c.b16 %v2881, %v2873
    %v3010 = vpack.c.b16 %v2882, %v2874
    %v3011 = vpack.c.b16 %v2883, %v2875
    %v3012 = vpack.c.b16 %v2884, %v2876
    %v3013 = vpack.c.b16 %v2885, %v2877
    %v3014 = vpack.c.b16 %v2886, %v2878
    %v3015 = vpack.c.b16 %v2887, %v2879
    %v3016 = vpack.c.b16 %v2888, %v2880
    %3145 = vmatprep.subr.bf16.mxu0 %v2890
    %3146 = vmatpush1.bf16.msra.mxu0 %v2889
    %3147 = vmatprep.subr.bf16.mxu0 %v2898
    %3148 = vmatpush1.bf16.msra.mxu0 %v2897
    %3149 = vmatprep.subr.bf16.mxu0 %v2906
    %3150 = vmatpush1.bf16.msra.mxu0 %v2905
    %3151 = vmatprep.subr.bf16.mxu0 %v2914
    %3152 = vmatpush1.bf16.msra.mxu0 %v2913
    %3153 = vmatprep.subr.bf16.mxu0 %v2922
    %3154 = vmatpush1.bf16.msra.mxu0 %v2921
    %3155 = vmatprep.subr.bf16.mxu0 %v2930
    %3156 = vmatpush1.bf16.msra.mxu0 %v2929
    %3157 = vmatprep.subr.bf16.mxu0 %v2938
    %3158 = vmatpush1.bf16.msra.mxu0 %v2937
    %3159 = vmatprep.subr.bf16.mxu0 %v2946
    %3160 = vmatpush1.bf16.msra.mxu0 %v2945
    %3161 = vmatprep.subr.bf16.mxu0 %v2954
    %3162 = vmatpush1.bf16.msra.mxu0 %v2953
    %3163 = vmatprep.subr.bf16.mxu0 %v2962
    %3164 = vmatpush1.bf16.msra.mxu0 %v2961
    %3165 = vmatprep.subr.bf16.mxu0 %v2970
    %3166 = vmatpush1.bf16.msra.mxu0 %v2969
    %3167 = vmatprep.subr.bf16.mxu0 %v2978
    %3168 = vmatpush1.bf16.msra.mxu0 %v2977
    %3169 = vmatprep.subr.bf16.mxu0 %v2986
    %3170 = vmatpush1.bf16.msra.mxu0 %v2985
    %3171 = vmatprep.subr.bf16.mxu0 %v2994
    %3172 = vmatpush1.bf16.msra.mxu0 %v2993
    %3173 = vmatprep.subr.bf16.mxu0 %v3002
    %3174 = vmatpush1.bf16.msra.mxu0 %v3001
    %3175 = vmatprep.subr.bf16.mxu0 %v3010
    %3176 = vmatpush1.bf16.msra.mxu0 %v3009
    %3177 = vmatprep.mubr.bf16.mxu0 0
    %3178 = vmatmul.mubr.bf16.gmra.mrb[0].mxu0 0
    %v3179 = vpop.f32.mrb[0].mxu0
    %v3180 = vadd.f32 0.0, %v3179
    %v3181 = vpop.f32.mrb[0].mxu0
    %v3182 = vadd.f32 0.0, %v3181
    %v3183 = vpop.f32.mrb[0].mxu0
    %v3184 = vpop.f32.mrb[0].mxu0
    %3185 = vdwg.mxu0
    %3186 = vmatprep.subr.bf16.mxu0 %v2892
    %3187 = vmatpush1.bf16.msra.mxu0 %v2891
    %3188 = vmatprep.subr.bf16.mxu0 %v2900
    %3189 = vmatpush1.bf16.msra.mxu0 %v2899
    %3190 = vmatprep.subr.bf16.mxu0 %v2908
    %3191 = vmatpush1.bf16.msra.mxu0 %v2907
    %3192 = vmatprep.subr.bf16.mxu0 %v2916
    %3193 = vmatpush1.bf16.msra.mxu0 %v2915
    %3194 = vmatprep.subr.bf16.mxu0 %v2924
    %3195 = vmatpush1.bf16.msra.mxu0 %v2923
    %3196 = vmatprep.subr.bf16.mxu0 %v2932
    %3197 = vmatpush1.bf16.msra.mxu0 %v2931
    %3198 = vmatprep.subr.bf16.mxu0 %v2940
    %3199 = vmatpush1.bf16.msra.mxu0 %v2939
    %3200 = vmatprep.subr.bf16.mxu0 %v2948
    %3201 = vmatpush1.bf16.msra.mxu0 %v2947
    %3202 = vmatprep.subr.bf16.mxu0 %v2956
    %3203 = vmatpush1.bf16.msra.mxu0 %v2955
    %3204 = vmatprep.subr.bf16.mxu0 %v2964
    %3205 = vmatpush1.bf16.msra.mxu0 %v2963
    %3206 = vmatprep.subr.bf16.mxu0 %v2972
    %3207 = vmatpush1.bf16.msra.mxu0 %v2971
    %3208 = vmatprep.subr.bf16.mxu0 %v2980
    %3209 = vmatpush1.bf16.msra.mxu0 %v2979
    %3210 = vmatprep.subr.bf16.mxu0 %v2988
    %3211 = vmatpush1.bf16.msra.mxu0 %v2987
    %3212 = vmatprep.subr.bf16.mxu0 %v2996
    %3213 = vmatpush1.bf16.msra.mxu0 %v2995
    %3214 = vmatprep.subr.bf16.mxu0 %v3004
    %3215 = vmatpush1.bf16.msra.mxu0 %v3003
    %3216 = vmatprep.subr.bf16.mxu0 %v3012
    %3217 = vmatpush1.bf16.msra.mxu0 %v3011
    %3218 = vmatprep.mubr.bf16.mxu0 0
    %3219 = vmatmul.mubr.bf16.gmra.mrb[0].mxu0 0
    %v3220 = vpop.f32.mrb[0].mxu0
    %v3221 = vadd.f32 0.0, %v3220
    %v3222 = vpop.f32.mrb[0].mxu0
    %v3223 = vadd.f32 0.0, %v3222
    %v3224 = vpop.f32.mrb[0].mxu0
    %v3225 = vpop.f32.mrb[0].mxu0
    %3226 = vdwg.mxu0
    %3227 = vmatprep.subr.bf16.mxu0 %v2894
    %3228 = vmatpush1.bf16.msra.mxu0 %v2893
    %3229 = vmatprep.subr.bf16.mxu0 %v2902
    %3230 = vmatpush1.bf16.msra.mxu0 %v2901
    %3231 = vmatprep.subr.bf16.mxu0 %v2910
    %3232 = vmatpush1.bf16.msra.mxu0 %v2909
    %3233 = vmatprep.subr.bf16.mxu0 %v2918
    %3234 = vmatpush1.bf16.msra.mxu0 %v2917
    %3235 = vmatprep.subr.bf16.mxu0 %v2926
    %3236 = vmatpush1.bf16.msra.mxu0 %v2925
    %3237 = vmatprep.subr.bf16.mxu0 %v2934
    %3238 = vmatpush1.bf16.msra.mxu0 %v2933
    %3239 = vmatprep.subr.bf16.mxu0 %v2942
    %3240 = vmatpush1.bf16.msra.mxu0 %v2941
    %3241 = vmatprep.subr.bf16.mxu0 %v2950
    %3242 = vmatpush1.bf16.msra.mxu0 %v2949
    %3243 = vmatprep.subr.bf16.mxu0 %v2958
    %3244 = vmatpush1.bf16.msra.mxu0 %v2957
    %3245 = vmatprep.subr.bf16.mxu0 %v2966
    %3246 = vmatpush1.bf16.msra.mxu0 %v2965
    %3247 = vmatprep.subr.bf16.mxu0 %v2974
    %3248 = vmatpush1.bf16.msra.mxu0 %v2973
    %3249 = vmatprep.subr.bf16.mxu0 %v2982
    %3250 = vmatpush1.bf16.msra.mxu0 %v2981
    %3251 = vmatprep.subr.bf16.mxu0 %v2990
    %3252 = vmatpush1.bf16.msra.mxu0 %v2989
    %3253 = vmatprep.subr.bf16.mxu0 %v2998
    %3254 = vmatpush1.bf16.msra.mxu0 %v2997
    %3255 = vmatprep.subr.bf16.mxu0 %v3006
    %3256 = vmatpush1.bf16.msra.mxu0 %v3005
    %3257 = vmatprep.subr.bf16.mxu0 %v3014
    %3258 = vmatpush1.bf16.msra.mxu0 %v3013
    %3259 = vmatprep.mubr.bf16.mxu0 0
    %3260 = vmatmul.mubr.bf16.gmra.mrb[0].mxu0 0
    %v3261 = vpop.f32.mrb[0].mxu0
    %v3262 = vadd.f32 0.0, %v3261
    %v3263 = vpop.f32.mrb[0].mxu0
    %v3264 = vadd.f32 0.0, %v3263
    %v3265 = vpop.f32.mrb[0].mxu0
    %v3266 = vpop.f32.mrb[0].mxu0
    %3267 = vdwg.mxu0
    %3268 = vmatprep.subr.bf16.mxu0 %v2896
    %3269 = vmatpush1.bf16.msra.mxu0 %v2895
    %3270 = vmatprep.subr.bf16.mxu0 %v2904
    %3271 = vmatpush1.bf16.msra.mxu0 %v2903
    %3272 = vmatprep.subr.bf16.mxu0 %v2912
    %3273 = vmatpush1.bf16.msra.mxu0 %v2911
    %3274 = vmatprep.subr.bf16.mxu0 %v2920
    %3275 = vmatpush1.bf16.msra.mxu0 %v2919
    %3276 = vmatprep.subr.bf16.mxu0 %v2928
    %3277 = vmatpush1.bf16.msra.mxu0 %v2927
    %3278 = vmatprep.subr.bf16.mxu0 %v2936
    %3279 = vmatpush1.bf16.msra.mxu0 %v2935
    %3280 = vmatprep.subr.bf16.mxu0 %v2944
    %3281 = vmatpush1.bf16.msra.mxu0 %v2943
    %3282 = vmatprep.subr.bf16.mxu0 %v2952
    %3283 = vmatpush1.bf16.msra.mxu0 %v2951
    %3284 = vmatprep.subr.bf16.mxu0 %v2960
    %3285 = vmatpush1.bf16.msra.mxu0 %v2959
    %3286 = vmatprep.subr.bf16.mxu0 %v2968
    %3287 = vmatpush1.bf16.msra.mxu0 %v2967
    %3288 = vmatprep.subr.bf16.mxu0 %v2976
    %3289 = vmatpush1.bf16.msra.mxu0 %v2975
    %3290 = vmatprep.subr.bf16.mxu0 %v2984
    %3291 = vmatpush1.bf16.msra.mxu0 %v2983
    %3292 = vmatprep.subr.bf16.mxu0 %v2992
    %3293 = vmatpush1.bf16.msra.mxu0 %v2991
    %3294 = vmatprep.subr.bf16.mxu0 %v3000
    %3295 = vmatpush1.bf16.msra.mxu0 %v2999
    %3296 = vmatprep.subr.bf16.mxu0 %v3008
    %3297 = vmatpush1.bf16.msra.mxu0 %v3007
    %3298 = vmatprep.subr.bf16.mxu0 %v3016
    %3299 = vmatpush1.bf16.msra.mxu0 %v3015
    %3300 = vmatprep.mubr.bf16.mxu0 0
    %3301 = vmatmul.mubr.bf16.gmra.mrb[0].mxu0 0
    %v3302 = vpop.f32.mrb[0].mxu0
    %v3303 = vadd.f32 0.0, %v3302
    %v3304 = vpop.f32.mrb[0].mxu0
    %v3305 = vadd.f32 0.0, %v3304
    %v3306 = vpop.f32.mrb[0].mxu0
    %v3307 = vpop.f32.mrb[0].mxu0
    %3308 = vdwg.mxu0
    %v3309 = vadd.f32 %v2369, %v3180
    %v3310 = vadd.f32 %v2370, %v3182
    %v3311 = vadd.f32 %v2371, %v3221
    %v3312 = vadd.f32 %v2372, %v3223
    %v3313 = vadd.f32 %v2373, %v3262
    %v3314 = vadd.f32 %v2374, %v3264
    %v3315 = vadd.f32 %v2375, %v3303
    %v3316 = vadd.f32 %v2376, %v3305
    %v3317 = vmul.f32 %v3309, 0.5
    %v3318 = vmul.f32 %v3310, 0.5
    %v3319 = vmul.f32 %v3311, 0.5
    %v3320 = vmul.f32 %v3312, 0.5
    %v3321 = vmul.f32 %v3313, 0.5
    %v3322 = vmul.f32 %v3314, 0.5
    %v3323 = vtanh.pop %v3317
    %v3324 = vtanh.pop %v3318
    %v3325 = vtanh.pop %v3319
    %v3326 = vtanh.pop %v3320
    %v3327 = vtanh.pop %v3321
    %v3328 = vtanh.pop %v3322
    %v3329 = vmul.f32 %v3323, 0.5
    %v3330 = vmul.f32 %v3324, 0.5
    %v3331 = vmul.f32 %v3325, 0.5
    %v3332 = vmul.f32 %v3326, 0.5
    %v3333 = vmul.f32 %v3327, 0.5
    %v3334 = vmul.f32 %v3328, 0.5
    %v3335 = vadd.f32 %v3329, 0.5
    %v3336 = vadd.f32 %v3330, 0.5
    %v3337 = vadd.f32 %v3331, 0.5
    %v3338 = vadd.f32 %v3332, 0.5
    %v3339 = vadd.f32 %v3333, 0.5
    %v3340 = vadd.f32 %v3334, 0.5
    %v3341 = vtanh.pop %v3315
    %v3342 = vtanh.pop %v3316
    %v3343 = vmul.f32 %v3337, 0.0
    %v3344 = vmul.f32 %v3338, 0.0
    %v3345 = vmul.f32 %v3335, %v3341
    %v3346 = vmul.f32 %v3336, %v3342
    %v3347 = vadd.f32 %v3343, %v3345
    %v3348 = vadd.f32 %v3344, %v3346
    %v3349 = vtanh.pop %v3347
    %v3350 = vtanh.pop %v3348
    %v3351 = vmul.f32 %v3339, %v3349
    %v3352 = vmul.f32 %v3340, %v3350
    %v3353 = vpack.c.bf16 %v3351, %v3351
    %v3354 = vpack.c.bf16 %v3352, %v3352
    %v3355 = vld [vmem:[#allocation2 + $0x40] sm:$0xff]
    %v3356 = vld [vmem:[#allocation2 + $0x48] sm:$0xff]
    %v3357 = vld [vmem:[#allocation2 + $0x50] sm:$0xff]
    %v3358 = vld [vmem:[#allocation2 + $0x58] sm:$0xff]
    %v3359 = vld [vmem:[#allocation2 + $0x60] sm:$0xff]
    %v3360 = vld [vmem:[#allocation2 + $0x68] sm:$0xff]
    %v3361 = vld [vmem:[#allocation2 + $0x70] sm:$0xff]
    %v3362 = vld [vmem:[#allocation2 + $0x78] sm:$0xff]
    %3363 = vmatprep.subr.bf16.mxu0 %v2890
    %3364 = vmatpush1.bf16.msra.mxu0 %v2889
    %3365 = vmatprep.subr.bf16.mxu0 %v2898
    %3366 = vmatpush1.bf16.msra.mxu0 %v2897
    %3367 = vmatprep.subr.bf16.mxu0 %v2906
    %3368 = vmatpush1.bf16.msra.mxu0 %v2905
    %3369 = vmatprep.subr.bf16.mxu0 %v2914
    %3370 = vmatpush1.bf16.msra.mxu0 %v2913
    %3371 = vmatprep.subr.bf16.mxu0 %v2922
    %3372 = vmatpush1.bf16.msra.mxu0 %v2921
    %3373 = vmatprep.subr.bf16.mxu0 %v2930
    %3374 = vmatpush1.bf16.msra.mxu0 %v2929
    %3375 = vmatprep.subr.bf16.mxu0 %v2938
    %3376 = vmatpush1.bf16.msra.mxu0 %v2937
    %3377 = vmatprep.subr.bf16.mxu0 %v2946
    %3378 = vmatpush1.bf16.msra.mxu0 %v2945
    %3379 = vmatprep.subr.bf16.mxu0 %v2954
    %3380 = vmatpush1.bf16.msra.mxu0 %v2953
    %3381 = vmatprep.subr.bf16.mxu0 %v2962
    %3382 = vmatpush1.bf16.msra.mxu0 %v2961
    %3383 = vmatprep.subr.bf16.mxu0 %v2970
    %3384 = vmatpush1.bf16.msra.mxu0 %v2969
    %3385 = vmatprep.subr.bf16.mxu0 %v2978
    %3386 = vmatpush1.bf16.msra.mxu0 %v2977
    %3387 = vmatprep.subr.bf16.mxu0 %v2986
    %3388 = vmatpush1.bf16.msra.mxu0 %v2985
    %3389 = vmatprep.subr.bf16.mxu0 %v2994
    %3390 = vmatpush1.bf16.msra.mxu0 %v2993
    %3391 = vmatprep.subr.bf16.mxu0 %v3002
    %3392 = vmatpush1.bf16.msra.mxu0 %v3001
    %3393 = vmatprep.subr.bf16.mxu0 %v3010
    %3394 = vmatpush1.bf16.msra.mxu0 %v3009
    %3395 = vmatprep.mubr.bf16.mxu0 %v3354
    %3396 = vmatmul.mubr.bf16.gmra.mrb[0].mxu0 %v3353
    %v3397 = vpop.f32.mrb[0].mxu0
    %v3398 = vadd.f32 0.0, %v3397
    %v3399 = vpop.f32.mrb[0].mxu0
    %v3400 = vadd.f32 0.0, %v3399
    %v3401 = vpop.f32.mrb[0].mxu0
    %v3402 = vpop.f32.mrb[0].mxu0
    %3403 = vdwg.mxu0
    %3404 = vmatprep.subr.bf16.mxu0 %v2892
    %3405 = vmatpush1.bf16.msra.mxu0 %v2891
    %3406 = vmatprep.subr.bf16.mxu0 %v2900
    %3407 = vmatpush1.bf16.msra.mxu0 %v2899
    %3408 = vmatprep.subr.bf16.mxu0 %v2908
    %3409 = vmatpush1.bf16.msra.mxu0 %v2907
    %3410 = vmatprep.subr.bf16.mxu0 %v2916
    %3411 = vmatpush1.bf16.msra.mxu0 %v2915
    %3412 = vmatprep.subr.bf16.mxu0 %v2924
    %3413 = vmatpush1.bf16.msra.mxu0 %v2923
    %3414 = vmatprep.subr.bf16.mxu0 %v2932
    %3415 = vmatpush1.bf16.msra.mxu0 %v2931
    %3416 = vmatprep.subr.bf16.mxu0 %v2940
    %3417 = vmatpush1.bf16.msra.mxu0 %v2939
    %3418 = vmatprep.subr.bf16.mxu0 %v2948
    %3419 = vmatpush1.bf16.msra.mxu0 %v2947
    %3420 = vmatprep.subr.bf16.mxu0 %v2956
    %3421 = vmatpush1.bf16.msra.mxu0 %v2955
    %3422 = vmatprep.subr.bf16.mxu0 %v2964
    %3423 = vmatpush1.bf16.msra.mxu0 %v2963
    %3424 = vmatprep.subr.bf16.mxu0 %v2972
    %3425 = vmatpush1.bf16.msra.mxu0 %v2971
    %3426 = vmatprep.subr.bf16.mxu0 %v2980
    %3427 = vmatpush1.bf16.msra.mxu0 %v2979
    %3428 = vmatprep.subr.bf16.mxu0 %v2988
    %3429 = vmatpush1.bf16.msra.mxu0 %v2987
    %3430 = vmatprep.subr.bf16.mxu0 %v2996
    %3431 = vmatpush1.bf16.msra.mxu0 %v2995
    %3432 = vmatprep.subr.bf16.mxu0 %v3004
    %3433 = vmatpush1.bf16.msra.mxu0 %v3003
    %3434 = vmatprep.subr.bf16.mxu0 %v3012
    %3435 = vmatpush1.bf16.msra.mxu0 %v3011
    %3436 = vmatprep.mubr.bf16.mxu0 %v3354
    %3437 = vmatmul.mubr.bf16.gmra.mrb[0].mxu0 %v3353
    %v3438 = vpop.f32.mrb[0].mxu0
    %v3439 = vadd.f32 0.0, %v3438
    %v3440 = vpop.f32.mrb[0].mxu0
    %v3441 = vadd.f32 0.0, %v3440
    %v3442 = vpop.f32.mrb[0].mxu0
    %v3443 = vpop.f32.mrb[0].mxu0
    %3444 = vdwg.mxu0
    %3445 = vmatprep.subr.bf16.mxu0 %v2894
    %3446 = vmatpush1.bf16.msra.mxu0 %v2893
    %3447 = vmatprep.subr.bf16.mxu0 %v2902
    %3448 = vmatpush1.bf16.msra.mxu0 %v2901
    %3449 = vmatprep.subr.bf16.mxu0 %v2910
    %3450 = vmatpush1.bf16.msra.mxu0 %v2909
    %3451 = vmatprep.subr.bf16.mxu0 %v2918
    %3452 = vmatpush1.bf16.msra.mxu0 %v2917
    %3453 = vmatprep.subr.bf16.mxu0 %v2926
    %3454 = vmatpush1.bf16.msra.mxu0 %v2925
    %3455 = vmatprep.subr.bf16.mxu0 %v2934
    %3456 = vmatpush1.bf16.msra.mxu0 %v2933
    %3457 = vmatprep.subr.bf16.mxu0 %v2942
    %3458 = vmatpush1.bf16.msra.mxu0 %v2941
    %3459 = vmatprep.subr.bf16.mxu0 %v2950
    %3460 = vmatpush1.bf16.msra.mxu0 %v2949
    %3461 = vmatprep.subr.bf16.mxu0 %v2958
    %3462 = vmatpush1.bf16.msra.mxu0 %v2957
    %3463 = vmatprep.subr.bf16.mxu0 %v2966
    %3464 = vmatpush1.bf16.msra.mxu0 %v2965
    %3465 = vmatprep.subr.bf16.mxu0 %v2974
    %3466 = vmatpush1.bf16.msra.mxu0 %v2973
    %3467 = vmatprep.subr.bf16.mxu0 %v2982
    %3468 = vmatpush1.bf16.msra.mxu0 %v2981
    %3469 = vmatprep.subr.bf16.mxu0 %v2990
    %3470 = vmatpush1.bf16.msra.mxu0 %v2989
    %3471 = vmatprep.subr.bf16.mxu0 %v2998
    %3472 = vmatpush1.bf16.msra.mxu0 %v2997
    %3473 = vmatprep.subr.bf16.mxu0 %v3006
    %3474 = vmatpush1.bf16.msra.mxu0 %v3005
    %3475 = vmatprep.subr.bf16.mxu0 %v3014
    %3476 = vmatpush1.bf16.msra.mxu0 %v3013
    %3477 = vmatprep.mubr.bf16.mxu0 %v3354
    %3478 = vmatmul.mubr.bf16.gmra.mrb[0].mxu0 %v3353
    %v3479 = vpop.f32.mrb[0].mxu0
    %v3480 = vadd.f32 0.0, %v3479
    %v3481 = vpop.f32.mrb[0].mxu0
    %v3482 = vadd.f32 0.0, %v3481
    %v3483 = vpop.f32.mrb[0].mxu0
    %v3484 = vpop.f32.mrb[0].mxu0
    %3485 = vdwg.mxu0
    %3486 = vmatprep.subr.bf16.mxu0 %v2896
    %3487 = vmatpush1.bf16.msra.mxu0 %v2895
    %3488 = vmatprep.subr.bf16.mxu0 %v2904
    %3489 = vmatpush1.bf16.msra.mxu0 %v2903
    %3490 = vmatprep.subr.bf16.mxu0 %v2912
    %3491 = vmatpush1.bf16.msra.mxu0 %v2911
    %3492 = vmatprep.subr.bf16.mxu0 %v2920
    %3493 = vmatpush1.bf16.msra.mxu0 %v2919
    %3494 = vmatprep.subr.bf16.mxu0 %v2928
    %3495 = vmatpush1.bf16.msra.mxu0 %v2927
    %3496 = vmatprep.subr.bf16.mxu0 %v2936
    %3497 = vmatpush1.bf16.msra.mxu0 %v2935
    %3498 = vmatprep.subr.bf16.mxu0 %v2944
    %3499 = vmatpush1.bf16.msra.mxu0 %v2943
    %3500 = vmatprep.subr.bf16.mxu0 %v2952
    %3501 = vmatpush1.bf16.msra.mxu0 %v2951
    %3502 = vmatprep.subr.bf16.mxu0 %v2960
    %3503 = vmatpush1.bf16.msra.mxu0 %v2959
    %3504 = vmatprep.subr.bf16.mxu0 %v2968
    %3505 = vmatpush1.bf16.msra.mxu0 %v2967
    %3506 = vmatprep.subr.bf16.mxu0 %v2976
    %3507 = vmatpush1.bf16.msra.mxu0 %v2975
    %3508 = vmatprep.subr.bf16.mxu0 %v2984
    %3509 = vmatpush1.bf16.msra.mxu0 %v2983
    %3510 = vmatprep.subr.bf16.mxu0 %v2992
    %3511 = vmatpush1.bf16.msra.mxu0 %v2991
    %3512 = vmatprep.subr.bf16.mxu0 %v3000
    %3513 = vmatpush1.bf16.msra.mxu0 %v2999
    %3514 = vmatprep.subr.bf16.mxu0 %v3008
    %3515 = vmatpush1.bf16.msra.mxu0 %v3007
    %3516 = vmatprep.subr.bf16.mxu0 %v3016
    %3517 = vmatpush1.bf16.msra.mxu0 %v3015
    %3518 = vmatprep.mubr.bf16.mxu0 %v3354
    %3519 = vmatmul.mubr.bf16.gmra.mrb[0].mxu0 %v3353
    %v3520 = vpop.f32.mrb[0].mxu0
    %v3521 = vadd.f32 0.0, %v3520
    %v3522 = vpop.f32.mrb[0].mxu0
    %v3523 = vadd.f32 0.0, %v3522
    %v3524 = vpop.f32.mrb[0].mxu0
    %v3525 = vpop.f32.mrb[0].mxu0
    %3526 = vdwg.mxu0
    %v3527 = vadd.f32 %v3355, %v3398
    %v3528 = vadd.f32 %v3356, %v3400
    %v3529 = vadd.f32 %v3357, %v3439
    %v3530 = vadd.f32 %v3358, %v3441
    %v3531 = vadd.f32 %v3359, %v3480
    %v3532 = vadd.f32 %v3360, %v3482
    %v3533 = vadd.f32 %v3361, %v3521
    %v3534 = vadd.f32 %v3362, %v3523
    %v3535 = vmul.f32 %v3527, 0.5
    %v3536 = vmul.f32 %v3528, 0.5
    %v3537 = vmul.f32 %v3529, 0.5
    %v3538 = vmul.f32 %v3530, 0.5
    %v3539 = vmul.f32 %v3531, 0.5
    %v3540 = vmul.f32 %v3532, 0.5
    %v3541 = vtanh.pop %v3535
    %v3542 = vtanh.pop %v3536
    %v3543 = vtanh.pop %v3537
    %v3544 = vtanh.pop %v3538
    %v3545 = vtanh.pop %v3539
    %v3546 = vtanh.pop %v3540
    %v3547 = vmul.f32 %v3541, 0.5
    %v3548 = vmul.f32 %v3542, 0.5
    %v3549 = vmul.f32 %v3543, 0.5
    %v3550 = vmul.f32 %v3544, 0.5
    %v3551 = vmul.f32 %v3545, 0.5
    %v3552 = vmul.f32 %v3546, 0.5
    %v3553 = vadd.f32 %v3547, 0.5
    %v3554 = vadd.f32 %v3548, 0.5
    %v3555 = vadd.f32 %v3549, 0.5
    %v3556 = vadd.f32 %v3550, 0.5
    %v3557 = vadd.f32 %v3551, 0.5
    %v3558 = vadd.f32 %v3552, 0.5
    %v3559 = vtanh.pop %v3533
    %v3560 = vtanh.pop %v3534
    %v3561 = vmul.f32 %v3555, %v3347
    %v3562 = vmul.f32 %v3556, %v3348
    %v3563 = vmul.f32 %v3553, %v3559
    %v3564 = vmul.f32 %v3554, %v3560
    %v3565 = vadd.f32 %v3561, %v3563
    %v3566 = vadd.f32 %v3562, %v3564
    %v3567 = vtanh.pop %v3565
    %v3568 = vtanh.pop %v3566
    %v3569 = vmul.f32 %v3557, %v3567
    %v3570 = vmul.f32 %v3558, %v3568
    %v3571 = vpack.c.bf16 %v3569, %v3569
    %v3572 = vpack.c.bf16 %v3570, %v3570
    %v3573 = vld [vmem:[#allocation2 + $0x80] sm:$0xff]
    %v3574 = vld [vmem:[#allocation2 + $0x88] sm:$0xff]
    %v3575 = vld [vmem:[#allocation2 + $0x90] sm:$0xff]
    %v3576 = vld [vmem:[#allocation2 + $0x98] sm:$0xff]
    %v3577 = vld [vmem:[#allocation2 + $0xa0] sm:$0xff]
    %v3578 = vld [vmem:[#allocation2 + $0xa8] sm:$0xff]
    %v3579 = vld [vmem:[#allocation2 + $0xb0] sm:$0xff]
    %v3580 = vld [vmem:[#allocation2 + $0xb8] sm:$0xff]
    %3581 = vmatprep.subr.bf16.mxu0 %v2890
    %3582 = vmatpush1.bf16.msra.mxu0 %v2889
    %3583 = vmatprep.subr.bf16.mxu0 %v2898
    %3584 = vmatpush1.bf16.msra.mxu0 %v2897
    %3585 = vmatprep.subr.bf16.mxu0 %v2906
    %3586 = vmatpush1.bf16.msra.mxu0 %v2905
    %3587 = vmatprep.subr.bf16.mxu0 %v2914
    %3588 = vmatpush1.bf16.msra.mxu0 %v2913
    %3589 = vmatprep.subr.bf16.mxu0 %v2922
    %3590 = vmatpush1.bf16.msra.mxu0 %v2921
    %3591 = vmatprep.subr.bf16.mxu0 %v2930
    %3592 = vmatpush1.bf16.msra.mxu0 %v2929
    %3593 = vmatprep.subr.bf16.mxu0 %v2938
    %3594 = vmatpush1.bf16.msra.mxu0 %v2937
    %3595 = vmatprep.subr.bf16.mxu0 %v2946
    %3596 = vmatpush1.bf16.msra.mxu0 %v2945
    %3597 = vmatprep.subr.bf16.mxu0 %v2954
    %3598 = vmatpush1.bf16.msra.mxu0 %v2953
    %3599 = vmatprep.subr.bf16.mxu0 %v2962
    %3600 = vmatpush1.bf16.msra.mxu0 %v2961
    %3601 = vmatprep.subr.bf16.mxu0 %v2970
    %3602 = vmatpush1.bf16.msra.mxu0 %v2969
    %3603 = vmatprep.subr.bf16.mxu0 %v2978
    %3604 = vmatpush1.bf16.msra.mxu0 %v2977
    %3605 = vmatprep.subr.bf16.mxu0 %v2986
    %3606 = vmatpush1.bf16.msra.mxu0 %v2985
    %3607 = vmatprep.subr.bf16.mxu0 %v2994
    %3608 = vmatpush1.bf16.msra.mxu0 %v2993
    %3609 = vmatprep.subr.bf16.mxu0 %v3002
    %3610 = vmatpush1.bf16.msra.mxu0 %v3001
    %3611 = vmatprep.subr.bf16.mxu0 %v3010
    %3612 = vmatpush1.bf16.msra.mxu0 %v3009
    %3613 = vmatprep.mubr.bf16.mxu0 %v3572
    %3614 = vmatmul.mubr.bf16.gmra.mrb[0].mxu0 %v3571
    %v3615 = vpop.f32.mrb[0].mxu0
    %v3616 = vadd.f32 0.0, %v3615
    %v3617 = vpop.f32.mrb[0].mxu0
    %v3618 = vadd.f32 0.0, %v3617
    %v3619 = vpop.f32.mrb[0].mxu0
    %v3620 = vpop.f32.mrb[0].mxu0
    %3621 = vdwg.mxu0
    %3622 = vmatprep.subr.bf16.mxu0 %v2892
    %3623 = vmatpush1.bf16.msra.mxu0 %v2891
    %3624 = vmatprep.subr.bf16.mxu0 %v2900
    %3625 = vmatpush1.bf16.msra.mxu0 %v2899
    %3626 = vmatprep.subr.bf16.mxu0 %v2908
    %3627 = vmatpush1.bf16.msra.mxu0 %v2907
    %3628 = vmatprep.subr.bf16.mxu0 %v2916
    %3629 = vmatpush1.bf16.msra.mxu0 %v2915
    %3630 = vmatprep.subr.bf16.mxu0 %v2924
    %3631 = vmatpush1.bf16.msra.mxu0 %v2923
    %3632 = vmatprep.subr.bf16.mxu0 %v2932
    %3633 = vmatpush1.bf16.msra.mxu0 %v2931
    %3634 = vmatprep.subr.bf16.mxu0 %v2940
    %3635 = vmatpush1.bf16.msra.mxu0 %v2939
    %3636 = vmatprep.subr.bf16.mxu0 %v2948
    %3637 = vmatpush1.bf16.msra.mxu0 %v2947
    %3638 = vmatprep.subr.bf16.mxu0 %v2956
    %3639 = vmatpush1.bf16.msra.mxu0 %v2955
    %3640 = vmatprep.subr.bf16.mxu0 %v2964
    %3641 = vmatpush1.bf16.msra.mxu0 %v2963
    %3642 = vmatprep.subr.bf16.mxu0 %v2972
    %3643 = vmatpush1.bf16.msra.mxu0 %v2971
    %3644 = vmatprep.subr.bf16.mxu0 %v2980
    %3645 = vmatpush1.bf16.msra.mxu0 %v2979
    %3646 = vmatprep.subr.bf16.mxu0 %v2988
    %3647 = vmatpush1.bf16.msra.mxu0 %v2987
    %3648 = vmatprep.subr.bf16.mxu0 %v2996
    %3649 = vmatpush1.bf16.msra.mxu0 %v2995
    %3650 = vmatprep.subr.bf16.mxu0 %v3004
    %3651 = vmatpush1.bf16.msra.mxu0 %v3003
    %3652 = vmatprep.subr.bf16.mxu0 %v3012
    %3653 = vmatpush1.bf16.msra.mxu0 %v3011
    %3654 = vmatprep.mubr.bf16.mxu0 %v3572
    %3655 = vmatmul.mubr.bf16.gmra.mrb[0].mxu0 %v3571
    %v3656 = vpop.f32.mrb[0].mxu0
    %v3657 = vadd.f32 0.0, %v3656
    %v3658 = vpop.f32.mrb[0].mxu0
    %v3659 = vadd.f32 0.0, %v3658
    %v3660 = vpop.f32.mrb[0].mxu0
    %v3661 = vpop.f32.mrb[0].mxu0
    %3662 = vdwg.mxu0
    %3663 = vmatprep.subr.bf16.mxu0 %v2894
    %3664 = vmatpush1.bf16.msra.mxu0 %v2893
    %3665 = vmatprep.subr.bf16.mxu0 %v2902
    %3666 = vmatpush1.bf16.msra.mxu0 %v2901
    %3667 = vmatprep.subr.bf16.mxu0 %v2910
    %3668 = vmatpush1.bf16.msra.mxu0 %v2909
    %3669 = vmatprep.subr.bf16.mxu0 %v2918
    %3670 = vmatpush1.bf16.msra.mxu0 %v2917
    %3671 = vmatprep.subr.bf16.mxu0 %v2926
    %3672 = vmatpush1.bf16.msra.mxu0 %v2925
    %3673 = vmatprep.subr.bf16.mxu0 %v2934
    %3674 = vmatpush1.bf16.msra.mxu0 %v2933
    %3675 = vmatprep.subr.bf16.mxu0 %v2942
    %3676 = vmatpush1.bf16.msra.mxu0 %v2941
    %3677 = vmatprep.subr.bf16.mxu0 %v2950
    %3678 = vmatpush1.bf16.msra.mxu0 %v2949
    %3679 = vmatprep.subr.bf16.mxu0 %v2958
    %3680 = vmatpush1.bf16.msra.mxu0 %v2957
    %3681 = vmatprep.subr.bf16.mxu0 %v2966
    %3682 = vmatpush1.bf16.msra.mxu0 %v2965
    %3683 = vmatprep.subr.bf16.mxu0 %v2974
    %3684 = vmatpush1.bf16.msra.mxu0 %v2973
    %3685 = vmatprep.subr.bf16.mxu0 %v2982
    %3686 = vmatpush1.bf16.msra.mxu0 %v2981
    %3687 = vmatprep.subr.bf16.mxu0 %v2990
    %3688 = vmatpush1.bf16.msra.mxu0 %v2989
    %3689 = vmatprep.subr.bf16.mxu0 %v2998
    %3690 = vmatpush1.bf16.msra.mxu0 %v2997
    %3691 = vmatprep.subr.bf16.mxu0 %v3006
    %3692 = vmatpush1.bf16.msra.mxu0 %v3005
    %3693 = vmatprep.subr.bf16.mxu0 %v3014
    %3694 = vmatpush1.bf16.msra.mxu0 %v3013
    %3695 = vmatprep.mubr.bf16.mxu0 %v3572
    %3696 = vmatmul.mubr.bf16.gmra.mrb[0].mxu0 %v3571
    %v3697 = vpop.f32.mrb[0].mxu0
    %v3698 = vadd.f32 0.0, %v3697
    %v3699 = vpop.f32.mrb[0].mxu0
    %v3700 = vadd.f32 0.0, %v3699
    %v3701 = vpop.f32.mrb[0].mxu0
    %v3702 = vpop.f32.mrb[0].mxu0
    %3703 = vdwg.mxu0
    %3704 = vmatprep.subr.bf16.mxu0 %v2896
    %3705 = vmatpush1.bf16.msra.mxu0 %v2895
    %3706 = vmatprep.subr.bf16.mxu0 %v2904
    %3707 = vmatpush1.bf16.msra.mxu0 %v2903
    %3708 = vmatprep.subr.bf16.mxu0 %v2912
    %3709 = vmatpush1.bf16.msra.mxu0 %v2911
    %3710 = vmatprep.subr.bf16.mxu0 %v2920
    %3711 = vmatpush1.bf16.msra.mxu0 %v2919
    %3712 = vmatprep.subr.bf16.mxu0 %v2928
    %3713 = vmatpush1.bf16.msra.mxu0 %v2927
    %3714 = vmatprep.subr.bf16.mxu0 %v2936
    %3715 = vmatpush1.bf16.msra.mxu0 %v2935
    %3716 = vmatprep.subr.bf16.mxu0 %v2944
    %3717 = vmatpush1.bf16.msra.mxu0 %v2943
    %3718 = vmatprep.subr.bf16.mxu0 %v2952
    %3719 = vmatpush1.bf16.msra.mxu0 %v2951
    %3720 = vmatprep.subr.bf16.mxu0 %v2960
    %3721 = vmatpush1.bf16.msra.mxu0 %v2959
    %3722 = vmatprep.subr.bf16.mxu0 %v2968
    %3723 = vmatpush1.bf16.msra.mxu0 %v2967
    %3724 = vmatprep.subr.bf16.mxu0 %v2976
    %3725 = vmatpush1.bf16.msra.mxu0 %v2975
    %3726 = vmatprep.subr.bf16.mxu0 %v2984
    %3727 = vmatpush1.bf16.msra.mxu0 %v2983
    %3728 = vmatprep.subr.bf16.mxu0 %v2992
    %3729 = vmatpush1.bf16.msra.mxu0 %v2991
    %3730 = vmatprep.subr.bf16.mxu0 %v3000
    %3731 = vmatpush1.bf16.msra.mxu0 %v2999
    %3732 = vmatprep.subr.bf16.mxu0 %v3008
    %3733 = vmatpush1.bf16.msra.mxu0 %v3007
    %3734 = vmatprep.subr.bf16.mxu0 %v3016
    %3735 = vmatpush1.bf16.msra.mxu0 %v3015
    %3736 = vmatprep.mubr.bf16.mxu0 %v3572
    %3737 = vmatmul.mubr.bf16.gmra.mrb[0].mxu0 %v3571
    %v3738 = vpop.f32.mrb[0].mxu0
    %v3739 = vadd.f32 0.0, %v3738
    %v3740 = vpop.f32.mrb[0].mxu0
    %v3741 = vadd.f32 0.0, %v3740
    %v3742 = vpop.f32.mrb[0].mxu0
    %v3743 = vpop.f32.mrb[0].mxu0
    %3744 = vdwg.mxu0
    %v3745 = vadd.f32 %v3573, %v3616
    %v3746 = vadd.f32 %v3574, %v3618
    %v3747 = vadd.f32 %v3575, %v3657
    %v3748 = vadd.f32 %v3576, %v3659
    %v3749 = vadd.f32 %v3577, %v3698
    %v3750 = vadd.f32 %v3578, %v3700
    %v3751 = vadd.f32 %v3579, %v3739
    %v3752 = vadd.f32 %v3580, %v3741
    %v3753 = vmul.f32 %v3745, 0.5
    %v3754 = vmul.f32 %v3746, 0.5
    %v3755 = vmul.f32 %v3747, 0.5
    %v3756 = vmul.f32 %v3748, 0.5
    %v3757 = vmul.f32 %v3749, 0.5
    %v3758 = vmul.f32 %v3750, 0.5
    %v3759 = vtanh.pop %v3753
    %v3760 = vtanh.pop %v3754
    %v3761 = vtanh.pop %v3755
    %v3762 = vtanh.pop %v3756
    %v3763 = vtanh.pop %v3757
    %v3764 = vtanh.pop %v3758
    %v3765 = vmul.f32 %v3759, 0.5
    %v3766 = vmul.f32 %v3760, 0.5
    %v3767 = vmul.f32 %v3761, 0.5
    %v3768 = vmul.f32 %v3762, 0.5
    %v3769 = vmul.f32 %v3763, 0.5
    %v3770 = vmul.f32 %v3764, 0.5
    %v3771 = vadd.f32 %v3765, 0.5
    %v3772 = vadd.f32 %v3766, 0.5
    %v3773 = vadd.f32 %v3767, 0.5
    %v3774 = vadd.f32 %v3768, 0.5
    %v3775 = vadd.f32 %v3769, 0.5
    %v3776 = vadd.f32 %v3770, 0.5
    %v3777 = vtanh.pop %v3751
    %v3778 = vtanh.pop %v3752
    %v3779 = vmul.f32 %v3773, %v3565
    %v3780 = vmul.f32 %v3774, %v3566
    %v3781 = vmul.f32 %v3771, %v3777
    %v3782 = vmul.f32 %v3772, %v3778
    %v3783 = vadd.f32 %v3779, %v3781
    %v3784 = vadd.f32 %v3780, %v3782
    %v3785 = vtanh.pop %v3783
    %v3786 = vtanh.pop %v3784
    %v3787 = vmul.f32 %v3775, %v3785
    %v3788 = vmul.f32 %v3776, %v3786
    %v3789 = vpack.c.bf16 %v3787, %v3787
    %v3790 = vpack.c.bf16 %v3788, %v3788
    %v3791 = vld [vmem:[#allocation2 + $0xc0] sm:$0xff]
    %v3792 = vld [vmem:[#allocation2 + $0xc8] sm:$0xff]
    %v3793 = vld [vmem:[#allocation2 + $0xd0] sm:$0xff]
    %v3794 = vld [vmem:[#allocation2 + $0xd8] sm:$0xff]
    %v3795 = vld [vmem:[#allocation2 + $0xe0] sm:$0xff]
    %v3796 = vld [vmem:[#allocation2 + $0xe8] sm:$0xff]
    %v3797 = vld [vmem:[#allocation2 + $0xf0] sm:$0xff]
    %v3798 = vld [vmem:[#allocation2 + $0xf8] sm:$0xff]
    %3799 = vmatprep.subr.bf16.mxu0 %v2890
    %3800 = vmatpush1.bf16.msra.mxu0 %v2889
    %3801 = vmatprep.subr.bf16.mxu0 %v2898
    %3802 = vmatpush1.bf16.msra.mxu0 %v2897
    %3803 = vmatprep.subr.bf16.mxu0 %v2906
    %3804 = vmatpush1.bf16.msra.mxu0 %v2905
    %3805 = vmatprep.subr.bf16.mxu0 %v2914
    %3806 = vmatpush1.bf16.msra.mxu0 %v2913
    %3807 = vmatprep.subr.bf16.mxu0 %v2922
    %3808 = vmatpush1.bf16.msra.mxu0 %v2921
    %3809 = vmatprep.subr.bf16.mxu0 %v2930
    %3810 = vmatpush1.bf16.msra.mxu0 %v2929
    %3811 = vmatprep.subr.bf16.mxu0 %v2938
    %3812 = vmatpush1.bf16.msra.mxu0 %v2937
    %3813 = vmatprep.subr.bf16.mxu0 %v2946
    %3814 = vmatpush1.bf16.msra.mxu0 %v2945
    %3815 = vmatprep.subr.bf16.mxu0 %v2954
    %3816 = vmatpush1.bf16.msra.mxu0 %v2953
    %3817 = vmatprep.subr.bf16.mxu0 %v2962
    %3818 = vmatpush1.bf16.msra.mxu0 %v2961
    %3819 = vmatprep.subr.bf16.mxu0 %v2970
    %3820 = vmatpush1.bf16.msra.mxu0 %v2969
    %3821 = vmatprep.subr.bf16.mxu0 %v2978
    %3822 = vmatpush1.bf16.msra.mxu0 %v2977
    %3823 = vmatprep.subr.bf16.mxu0 %v2986
    %3824 = vmatpush1.bf16.msra.mxu0 %v2985
    %3825 = vmatprep.subr.bf16.mxu0 %v2994
    %3826 = vmatpush1.bf16.msra.mxu0 %v2993
    %3827 = vmatprep.subr.bf16.mxu0 %v3002
    %3828 = vmatpush1.bf16.msra.mxu0 %v3001
    %3829 = vmatprep.subr.bf16.mxu0 %v3010
    %3830 = vmatpush1.bf16.msra.mxu0 %v3009
    %3831 = vmatprep.mubr.bf16.mxu0 %v3790
    %3832 = vmatmul.mubr.bf16.gmra.mrb[0].mxu0 %v3789
    %v3833 = vpop.f32.mrb[0].mxu0
    %v3834 = vadd.f32 0.0, %v3833
    %v3835 = vpop.f32.mrb[0].mxu0
    %v3836 = vadd.f32 0.0, %v3835
    %v3837 = vpop.f32.mrb[0].mxu0
    %v3838 = vpop.f32.mrb[0].mxu0
    %3839 = vdwg.mxu0
    %3840 = vmatprep.subr.bf16.mxu0 %v2892
    %3841 = vmatpush1.bf16.msra.mxu0 %v2891
    %3842 = vmatprep.subr.bf16.mxu0 %v2900
    %3843 = vmatpush1.bf16.msra.mxu0 %v2899
    %3844 = vmatprep.subr.bf16.mxu0 %v2908
    %3845 = vmatpush1.bf16.msra.mxu0 %v2907
    %3846 = vmatprep.subr.bf16.mxu0 %v2916
    %3847 = vmatpush1.bf16.msra.mxu0 %v2915
    %3848 = vmatprep.subr.bf16.mxu0 %v2924
    %3849 = vmatpush1.bf16.msra.mxu0 %v2923
    %3850 = vmatprep.subr.bf16.mxu0 %v2932
    %3851 = vmatpush1.bf16.msra.mxu0 %v2931
    %3852 = vmatprep.subr.bf16.mxu0 %v2940
    %3853 = vmatpush1.bf16.msra.mxu0 %v2939
    %3854 = vmatprep.subr.bf16.mxu0 %v2948
    %3855 = vmatpush1.bf16.msra.mxu0 %v2947
    %3856 = vmatprep.subr.bf16.mxu0 %v2956
    %3857 = vmatpush1.bf16.msra.mxu0 %v2955
    %3858 = vmatprep.subr.bf16.mxu0 %v2964
    %3859 = vmatpush1.bf16.msra.mxu0 %v2963
    %3860 = vmatprep.subr.bf16.mxu0 %v2972
    %3861 = vmatpush1.bf16.msra.mxu0 %v2971
    %3862 = vmatprep.subr.bf16.mxu0 %v2980
    %3863 = vmatpush1.bf16.msra.mxu0 %v2979
    %3864 = vmatprep.subr.bf16.mxu0 %v2988
    %3865 = vmatpush1.bf16.msra.mxu0 %v2987
    %3866 = vmatprep.subr.bf16.mxu0 %v2996
    %3867 = vmatpush1.bf16.msra.mxu0 %v2995
    %3868 = vmatprep.subr.bf16.mxu0 %v3004
    %3869 = vmatpush1.bf16.msra.mxu0 %v3003
    %3870 = vmatprep.subr.bf16.mxu0 %v3012
    %3871 = vmatpush1.bf16.msra.mxu0 %v3011
    %3872 = vmatprep.mubr.bf16.mxu0 %v3790
    %3873 = vmatmul.mubr.bf16.gmra.mrb[0].mxu0 %v3789
    %v3874 = vpop.f32.mrb[0].mxu0
    %v3875 = vadd.f32 0.0, %v3874
    %v3876 = vpop.f32.mrb[0].mxu0
    %v3877 = vadd.f32 0.0, %v3876
    %v3878 = vpop.f32.mrb[0].mxu0
    %v3879 = vpop.f32.mrb[0].mxu0
    %3880 = vdwg.mxu0
    %3881 = vmatprep.subr.bf16.mxu0 %v2894
    %3882 = vmatpush1.bf16.msra.mxu0 %v2893
    %3883 = vmatprep.subr.bf16.mxu0 %v2902
    %3884 = vmatpush1.bf16.msra.mxu0 %v2901
    %3885 = vmatprep.subr.bf16.mxu0 %v2910
    %3886 = vmatpush1.bf16.msra.mxu0 %v2909
    %3887 = vmatprep.subr.bf16.mxu0 %v2918
    %3888 = vmatpush1.bf16.msra.mxu0 %v2917
    %3889 = vmatprep.subr.bf16.mxu0 %v2926
    %3890 = vmatpush1.bf16.msra.mxu0 %v2925
    %3891 = vmatprep.subr.bf16.mxu0 %v2934
    %3892 = vmatpush1.bf16.msra.mxu0 %v2933
    %3893 = vmatprep.subr.bf16.mxu0 %v2942
    %3894 = vmatpush1.bf16.msra.mxu0 %v2941
    %3895 = vmatprep.subr.bf16.mxu0 %v2950
    %3896 = vmatpush1.bf16.msra.mxu0 %v2949
    %3897 = vmatprep.subr.bf16.mxu0 %v2958
    %3898 = vmatpush1.bf16.msra.mxu0 %v2957
    %3899 = vmatprep.subr.bf16.mxu0 %v2966
    %3900 = vmatpush1.bf16.msra.mxu0 %v2965
    %3901 = vmatprep.subr.bf16.mxu0 %v2974
    %3902 = vmatpush1.bf16.msra.mxu0 %v2973
    %3903 = vmatprep.subr.bf16.mxu0 %v2982
    %3904 = vmatpush1.bf16.msra.mxu0 %v2981
    %3905 = vmatprep.subr.bf16.mxu0 %v2990
    %3906 = vmatpush1.bf16.msra.mxu0 %v2989
    %3907 = vmatprep.subr.bf16.mxu0 %v2998
    %3908 = vmatpush1.bf16.msra.mxu0 %v2997
    %3909 = vmatprep.subr.bf16.mxu0 %v3006
    %3910 = vmatpush1.bf16.msra.mxu0 %v3005
    %3911 = vmatprep.subr.bf16.mxu0 %v3014
    %3912 = vmatpush1.bf16.msra.mxu0 %v3013
    %3913 = vmatprep.mubr.bf16.mxu0 %v3790
    %3914 = vmatmul.mubr.bf16.gmra.mrb[0].mxu0 %v3789
    %v3915 = vpop.f32.mrb[0].mxu0
    %v3916 = vadd.f32 0.0, %v3915
    %v3917 = vpop.f32.mrb[0].mxu0
    %v3918 = vadd.f32 0.0, %v3917
    %v3919 = vpop.f32.mrb[0].mxu0
    %v3920 = vpop.f32.mrb[0].mxu0
    %3921 = vdwg.mxu0
    %3922 = vmatprep.subr.bf16.mxu0 %v2896
    %3923 = vmatpush1.bf16.msra.mxu0 %v2895
    %3924 = vmatprep.subr.bf16.mxu0 %v2904
    %3925 = vmatpush1.bf16.msra.mxu0 %v2903
    %3926 = vmatprep.subr.bf16.mxu0 %v2912
    %3927 = vmatpush1.bf16.msra.mxu0 %v2911
    %3928 = vmatprep.subr.bf16.mxu0 %v2920
    %3929 = vmatpush1.bf16.msra.mxu0 %v2919
    %3930 = vmatprep.subr.bf16.mxu0 %v2928
    %3931 = vmatpush1.bf16.msra.mxu0 %v2927
    %3932 = vmatprep.subr.bf16.mxu0 %v2936
    %3933 = vmatpush1.bf16.msra.mxu0 %v2935
    %3934 = vmatprep.subr.bf16.mxu0 %v2944
    %3935 = vmatpush1.bf16.msra.mxu0 %v2943
    %3936 = vmatprep.subr.bf16.mxu0 %v2952
    %3937 = vmatpush1.bf16.msra.mxu0 %v2951
    %3938 = vmatprep.subr.bf16.mxu0 %v2960
    %3939 = vmatpush1.bf16.msra.mxu0 %v2959
    %3940 = vmatprep.subr.bf16.mxu0 %v2968
    %3941 = vmatpush1.bf16.msra.mxu0 %v2967
    %3942 = vmatprep.subr.bf16.mxu0 %v2976
    %3943 = vmatpush1.bf16.msra.mxu0 %v2975
    %3944 = vmatprep.subr.bf16.mxu0 %v2984
    %3945 = vmatpush1.bf16.msra.mxu0 %v2983
    %3946 = vmatprep.subr.bf16.mxu0 %v2992
    %3947 = vmatpush1.bf16.msra.mxu0 %v2991
    %3948 = vmatprep.subr.bf16.mxu0 %v3000
    %3949 = vmatpush1.bf16.msra.mxu0 %v2999
    %3950 = vmatprep.subr.bf16.mxu0 %v3008
    %3951 = vmatpush1.bf16.msra.mxu0 %v3007
    %3952 = vmatprep.subr.bf16.mxu0 %v3016
    %3953 = vmatpush1.bf16.msra.mxu0 %v3015
    %3954 = vmatprep.mubr.bf16.mxu0 %v3790
    %3955 = vmatmul.mubr.bf16.gmra.mrb[0].mxu0 %v3789
    %v3956 = vpop.f32.mrb[0].mxu0
    %v3957 = vadd.f32 0.0, %v3956
    %v3958 = vpop.f32.mrb[0].mxu0
    %v3959 = vadd.f32 0.0, %v3958
    %v3960 = vpop.f32.mrb[0].mxu0
    %v3961 = vpop.f32.mrb[0].mxu0
    %3962 = vdwg.mxu0
    %v3963 = vadd.f32 %v3791, %v3834
    %v3964 = vadd.f32 %v3792, %v3836
    %v3965 = vadd.f32 %v3793, %v3875
    %v3966 = vadd.f32 %v3794, %v3877
    %v3967 = vadd.f32 %v3795, %v3916
    %v3968 = vadd.f32 %v3796, %v3918
    %v3969 = vadd.f32 %v3797, %v3957
    %v3970 = vadd.f32 %v3798, %v3959
    %v3971 = vmul.f32 %v3963, 0.5
    %v3972 = vmul.f32 %v3964, 0.5
    %v3973 = vmul.f32 %v3965, 0.5
    %v3974 = vmul.f32 %v3966, 0.5
    %v3975 = vmul.f32 %v3967, 0.5
    %v3976 = vmul.f32 %v3968, 0.5
    %v3977 = vtanh.pop %v3971
    %v3978 = vtanh.pop %v3972
    %v3979 = vtanh.pop %v3973
    %v3980 = vtanh.pop %v3974
    %v3981 = vtanh.pop %v3975
    %v3982 = vtanh.pop %v3976
    %v3983 = vmul.f32 %v3977, 0.5
    %v3984 = vmul.f32 %v3978, 0.5
    %v3985 = vmul.f32 %v3979, 0.5
    %v3986 = vmul.f32 %v3980, 0.5
    %v3987 = vmul.f32 %v3981, 0.5
    %v3988 = vmul.f32 %v3982, 0.5
    %v3989 = vadd.f32 %v3983, 0.5
    %v3990 = vadd.f32 %v3984, 0.5
    %v3991 = vadd.f32 %v3985, 0.5
    %v3992 = vadd.f32 %v3986, 0.5
    %v3993 = vadd.f32 %v3987, 0.5
    %v3994 = vadd.f32 %v3988, 0.5
    %v3995 = vtanh.pop %v3969
    %v3996 = vtanh.pop %v3970
    %v3997 = vmul.f32 %v3991, %v3783
    %v3998 = vmul.f32 %v3992, %v3784
    %v3999 = vmul.f32 %v3989, %v3995
    %v4000 = vmul.f32 %v3990, %v3996
    %v4001 = vadd.f32 %v3997, %v3999
    %v4002 = vadd.f32 %v3998, %v4000
    %v4003 = vtanh.pop %v4001
    %v4004 = vtanh.pop %v4002
    %v4005 = vmul.f32 %v3993, %v4003
    %v4006 = vmul.f32 %v3994, %v4004
    %v4007 = vpack.c.bf16 %v4005, %v4005
    %v4008 = vpack.c.bf16 %v4006, %v4006
    %v4009 = vld [vmem:[#allocation2 + $0x100] sm:$0xff]
    %v4010 = vld [vmem:[#allocation2 + $0x108] sm:$0xff]
    %v4011 = vld [vmem:[#allocation2 + $0x110] sm:$0xff]
    %v4012 = vld [vmem:[#allocation2 + $0x118] sm:$0xff]
    %v4013 = vld [vmem:[#allocation2 + $0x120] sm:$0xff]
    %v4014 = vld [vmem:[#allocation2 + $0x128] sm:$0xff]
    %v4015 = vld [vmem:[#allocation2 + $0x130] sm:$0xff]
    %v4016 = vld [vmem:[#allocation2 + $0x138] sm:$0xff]
    %4017 = vmatprep.subr.bf16.mxu0 %v2890
    %4018 = vmatpush1.bf16.msra.mxu0 %v2889
    %4019 = vmatprep.subr.bf16.mxu0 %v2898
    %4020 = vmatpush1.bf16.msra.mxu0 %v2897
    %4021 = vmatprep.subr.bf16.mxu0 %v2906
    %4022 = vmatpush1.bf16.msra.mxu0 %v2905
    %4023 = vmatprep.subr.bf16.mxu0 %v2914
    %4024 = vmatpush1.bf16.msra.mxu0 %v2913
    %4025 = vmatprep.subr.bf16.mxu0 %v2922
    %4026 = vmatpush1.bf16.msra.mxu0 %v2921
    %4027 = vmatprep.subr.bf16.mxu0 %v2930
    %4028 = vmatpush1.bf16.msra.mxu0 %v2929
    %4029 = vmatprep.subr.bf16.mxu0 %v2938
    %4030 = vmatpush1.bf16.msra.mxu0 %v2937
    %4031 = vmatprep.subr.bf16.mxu0 %v2946
    %4032 = vmatpush1.bf16.msra.mxu0 %v2945
    %4033 = vmatprep.subr.bf16.mxu0 %v2954
    %4034 = vmatpush1.bf16.msra.mxu0 %v2953
    %4035 = vmatprep.subr.bf16.mxu0 %v2962
    %4036 = vmatpush1.bf16.msra.mxu0 %v2961
    %4037 = vmatprep.subr.bf16.mxu0 %v2970
    %4038 = vmatpush1.bf16.msra.mxu0 %v2969
    %4039 = vmatprep.subr.bf16.mxu0 %v2978
    %4040 = vmatpush1.bf16.msra.mxu0 %v2977
    %4041 = vmatprep.subr.bf16.mxu0 %v2986
    %4042 = vmatpush1.bf16.msra.mxu0 %v2985
    %4043 = vmatprep.subr.bf16.mxu0 %v2994
    %4044 = vmatpush1.bf16.msra.mxu0 %v2993
    %4045 = vmatprep.subr.bf16.mxu0 %v3002
    %4046 = vmatpush1.bf16.msra.mxu0 %v3001
    %4047 = vmatprep.subr.bf16.mxu0 %v3010
    %4048 = vmatpush1.bf16.msra.mxu0 %v3009
    %4049 = vmatprep.mubr.bf16.mxu0 %v4008
    %4050 = vmatmul.mubr.bf16.gmra.mrb[0].mxu0 %v4007
    %v4051 = vpop.f32.mrb[0].mxu0
    %v4052 = vadd.f32 0.0, %v4051
    %v4053 = vpop.f32.mrb[0].mxu0
    %v4054 = vadd.f32 0.0, %v4053
    %v4055 = vpop.f32.mrb[0].mxu0
    %v4056 = vpop.f32.mrb[0].mxu0
    %4057 = vdwg.mxu0
    %4058 = vmatprep.subr.bf16.mxu0 %v2892
    %4059 = vmatpush1.bf16.msra.mxu0 %v2891
    %4060 = vmatprep.subr.bf16.mxu0 %v2900
    %4061 = vmatpush1.bf16.msra.mxu0 %v2899
    %4062 = vmatprep.subr.bf16.mxu0 %v2908
    %4063 = vmatpush1.bf16.msra.mxu0 %v2907
    %4064 = vmatprep.subr.bf16.mxu0 %v2916
    %4065 = vmatpush1.bf16.msra.mxu0 %v2915
    %4066 = vmatprep.subr.bf16.mxu0 %v2924
    %4067 = vmatpush1.bf16.msra.mxu0 %v2923
    %4068 = vmatprep.subr.bf16.mxu0 %v2932
    %4069 = vmatpush1.bf16.msra.mxu0 %v2931
    %4070 = vmatprep.subr.bf16.mxu0 %v2940
    %4071 = vmatpush1.bf16.msra.mxu0 %v2939
    %4072 = vmatprep.subr.bf16.mxu0 %v2948
    %4073 = vmatpush1.bf16.msra.mxu0 %v2947
    %4074 = vmatprep.subr.bf16.mxu0 %v2956
    %4075 = vmatpush1.bf16.msra.mxu0 %v2955
    %4076 = vmatprep.subr.bf16.mxu0 %v2964
    %4077 = vmatpush1.bf16.msra.mxu0 %v2963
    %4078 = vmatprep.subr.bf16.mxu0 %v2972
    %4079 = vmatpush1.bf16.msra.mxu0 %v2971
    %4080 = vmatprep.subr.bf16.mxu0 %v2980
    %4081 = vmatpush1.bf16.msra.mxu0 %v2979
    %4082 = vmatprep.subr.bf16.mxu0 %v2988
    %4083 = vmatpush1.bf16.msra.mxu0 %v2987
    %4084 = vmatprep.subr.bf16.mxu0 %v2996
    %4085 = vmatpush1.bf16.msra.mxu0 %v2995
    %4086 = vmatprep.subr.bf16.mxu0 %v3004
    %4087 = vmatpush1.bf16.msra.mxu0 %v3003
    %4088 = vmatprep.subr.bf16.mxu0 %v3012
    %4089 = vmatpush1.bf16.msra.mxu0 %v3011
    %4090 = vmatprep.mubr.bf16.mxu0 %v4008
    %4091 = vmatmul.mubr.bf16.gmra.mrb[0].mxu0 %v4007
    %v4092 = vpop.f32.mrb[0].mxu0
    %v4093 = vadd.f32 0.0, %v4092
    %v4094 = vpop.f32.mrb[0].mxu0
    %v4095 = vadd.f32 0.0, %v4094
    %v4096 = vpop.f32.mrb[0].mxu0
    %v4097 = vpop.f32.mrb[0].mxu0
    %4098 = vdwg.mxu0
    %4099 = vmatprep.subr.bf16.mxu0 %v2894
    %4100 = vmatpush1.bf16.msra.mxu0 %v2893
    %4101 = vmatprep.subr.bf16.mxu0 %v2902
    %4102 = vmatpush1.bf16.msra.mxu0 %v2901
    %4103 = vmatprep.subr.bf16.mxu0 %v2910
    %4104 = vmatpush1.bf16.msra.mxu0 %v2909
    %4105 = vmatprep.subr.bf16.mxu0 %v2918
    %4106 = vmatpush1.bf16.msra.mxu0 %v2917
    %4107 = vmatprep.subr.bf16.mxu0 %v2926
    %4108 = vmatpush1.bf16.msra.mxu0 %v2925
    %4109 = vmatprep.subr.bf16.mxu0 %v2934
    %4110 = vmatpush1.bf16.msra.mxu0 %v2933
    %4111 = vmatprep.subr.bf16.mxu0 %v2942
    %4112 = vmatpush1.bf16.msra.mxu0 %v2941
    %4113 = vmatprep.subr.bf16.mxu0 %v2950
    %4114 = vmatpush1.bf16.msra.mxu0 %v2949
    %4115 = vmatprep.subr.bf16.mxu0 %v2958
    %4116 = vmatpush1.bf16.msra.mxu0 %v2957
    %4117 = vmatprep.subr.bf16.mxu0 %v2966
    %4118 = vmatpush1.bf16.msra.mxu0 %v2965
    %4119 = vmatprep.subr.bf16.mxu0 %v2974
    %4120 = vmatpush1.bf16.msra.mxu0 %v2973
    %4121 = vmatprep.subr.bf16.mxu0 %v2982
    %4122 = vmatpush1.bf16.msra.mxu0 %v2981
    %4123 = vmatprep.subr.bf16.mxu0 %v2990
    %4124 = vmatpush1.bf16.msra.mxu0 %v2989
    %4125 = vmatprep.subr.bf16.mxu0 %v2998
    %4126 = vmatpush1.bf16.msra.mxu0 %v2997
    %4127 = vmatprep.subr.bf16.mxu0 %v3006
    %4128 = vmatpush1.bf16.msra.mxu0 %v3005
    %4129 = vmatprep.subr.bf16.mxu0 %v3014
    %4130 = vmatpush1.bf16.msra.mxu0 %v3013
    %4131 = vmatprep.mubr.bf16.mxu0 %v4008
    %4132 = vmatmul.mubr.bf16.gmra.mrb[0].mxu0 %v4007
    %v4133 = vpop.f32.mrb[0].mxu0
    %v4134 = vadd.f32 0.0, %v4133
    %v4135 = vpop.f32.mrb[0].mxu0
    %v4136 = vadd.f32 0.0, %v4135
    %v4137 = vpop.f32.mrb[0].mxu0
    %v4138 = vpop.f32.mrb[0].mxu0
    %4139 = vdwg.mxu0
    %4140 = vmatprep.subr.bf16.mxu0 %v2896
    %4141 = vmatpush1.bf16.msra.mxu0 %v2895
    %4142 = vmatprep.subr.bf16.mxu0 %v2904
    %4143 = vmatpush1.bf16.msra.mxu0 %v2903
    %4144 = vmatprep.subr.bf16.mxu0 %v2912
    %4145 = vmatpush1.bf16.msra.mxu0 %v2911
    %4146 = vmatprep.subr.bf16.mxu0 %v2920
    %4147 = vmatpush1.bf16.msra.mxu0 %v2919
    %4148 = vmatprep.subr.bf16.mxu0 %v2928
    %4149 = vmatpush1.bf16.msra.mxu0 %v2927
    %4150 = vmatprep.subr.bf16.mxu0 %v2936
    %4151 = vmatpush1.bf16.msra.mxu0 %v2935
    %4152 = vmatprep.subr.bf16.mxu0 %v2944
    %4153 = vmatpush1.bf16.msra.mxu0 %v2943
    %4154 = vmatprep.subr.bf16.mxu0 %v2952
    %4155 = vmatpush1.bf16.msra.mxu0 %v2951
    %4156 = vmatprep.subr.bf16.mxu0 %v2960
    %4157 = vmatpush1.bf16.msra.mxu0 %v2959
    %4158 = vmatprep.subr.bf16.mxu0 %v2968
    %4159 = vmatpush1.bf16.msra.mxu0 %v2967
    %4160 = vmatprep.subr.bf16.mxu0 %v2976
    %4161 = vmatpush1.bf16.msra.mxu0 %v2975
    %4162 = vmatprep.subr.bf16.mxu0 %v2984
    %4163 = vmatpush1.bf16.msra.mxu0 %v2983
    %4164 = vmatprep.subr.bf16.mxu0 %v2992
    %4165 = vmatpush1.bf16.msra.mxu0 %v2991
    %4166 = vmatprep.subr.bf16.mxu0 %v3000
    %4167 = vmatpush1.bf16.msra.mxu0 %v2999
    %4168 = vmatprep.subr.bf16.mxu0 %v3008
    %4169 = vmatpush1.bf16.msra.mxu0 %v3007
    %4170 = vmatprep.subr.bf16.mxu0 %v3016
    %4171 = vmatpush1.bf16.msra.mxu0 %v3015
    %4172 = vmatprep.mubr.bf16.mxu0 %v4008
    %4173 = vmatmul.mubr.bf16.gmra.mrb[0].mxu0 %v4007
    %v4174 = vpop.f32.mrb[0].mxu0
    %v4175 = vadd.f32 0.0, %v4174
    %v4176 = vpop.f32.mrb[0].mxu0
    %v4177 = vadd.f32 0.0, %v4176
    %v4178 = vpop.f32.mrb[0].mxu0
    %v4179 = vpop.f32.mrb[0].mxu0
    %4180 = vdwg.mxu0
    %v4181 = vadd.f32 %v4009, %v4052
    %v4182 = vadd.f32 %v4010, %v4054
    %v4183 = vadd.f32 %v4011, %v4093
    %v4184 = vadd.f32 %v4012, %v4095
    %v4185 = vadd.f32 %v4013, %v4134
    %v4186 = vadd.f32 %v4014, %v4136
    %v4187 = vadd.f32 %v4015, %v4175
    %v4188 = vadd.f32 %v4016, %v4177
    %v4189 = vmul.f32 %v4181, 0.5
    %v4190 = vmul.f32 %v4182, 0.5
    %v4191 = vmul.f32 %v4183, 0.5
    %v4192 = vmul.f32 %v4184, 0.5
    %v4193 = vmul.f32 %v4185, 0.5
    %v4194 = vmul.f32 %v4186, 0.5
    %v4195 = vtanh.pop %v4189
    %v4196 = vtanh.pop %v4190
    %v4197 = vtanh.pop %v4191
    %v4198 = vtanh.pop %v4192
    %v4199 = vtanh.pop %v4193
    %v4200 = vtanh.pop %v4194
    %v4201 = vmul.f32 %v4195, 0.5
    %v4202 = vmul.f32 %v4196, 0.5
    %v4203 = vmul.f32 %v4197, 0.5
    %v4204 = vmul.f32 %v4198, 0.5
    %v4205 = vmul.f32 %v4199, 0.5
    %v4206 = vmul.f32 %v4200, 0.5
    %v4207 = vadd.f32 %v4201, 0.5
    %v4208 = vadd.f32 %v4202, 0.5
    %v4209 = vadd.f32 %v4203, 0.5
    %v4210 = vadd.f32 %v4204, 0.5
    %v4211 = vadd.f32 %v4205, 0.5
    %v4212 = vadd.f32 %v4206, 0.5
    %v4213 = vtanh.pop %v4187
    %v4214 = vtanh.pop %v4188
    %v4215 = vmul.f32 %v4209, %v4001
    %v4216 = vmul.f32 %v4210, %v4002
    %v4217 = vmul.f32 %v4207, %v4213
    %v4218 = vmul.f32 %v4208, %v4214
    %v4219 = vadd.f32 %v4215, %v4217
    %v4220 = vadd.f32 %v4216, %v4218
    %v4221 = vtanh.pop %v4219
    %v4222 = vtanh.pop %v4220
    %v4223 = vmul.f32 %v4211, %v4221
    %v4224 = vmul.f32 %v4212, %v4222
    %v4225 = vpack.c.bf16 %v4223, %v4223
    %v4226 = vpack.c.bf16 %v4224, %v4224
    %v4227 = vld [vmem:[#allocation2 + $0x140] sm:$0xff]
    %v4228 = vld [vmem:[#allocation2 + $0x148] sm:$0xff]
    %v4229 = vld [vmem:[#allocation2 + $0x150] sm:$0xff]
    %v4230 = vld [vmem:[#allocation2 + $0x158] sm:$0xff]
    %v4231 = vld [vmem:[#allocation2 + $0x160] sm:$0xff]
    %v4232 = vld [vmem:[#allocation2 + $0x168] sm:$0xff]
    %v4233 = vld [vmem:[#allocation2 + $0x170] sm:$0xff]
    %v4234 = vld [vmem:[#allocation2 + $0x178] sm:$0xff]
    %4235 = vmatprep.subr.bf16.mxu0 %v2890
    %4236 = vmatpush1.bf16.msra.mxu0 %v2889
    %4237 = vmatprep.subr.bf16.mxu0 %v2898
    %4238 = vmatpush1.bf16.msra.mxu0 %v2897
    %4239 = vmatprep.subr.bf16.mxu0 %v2906
    %4240 = vmatpush1.bf16.msra.mxu0 %v2905
    %4241 = vmatprep.subr.bf16.mxu0 %v2914
    %4242 = vmatpush1.bf16.msra.mxu0 %v2913
    %4243 = vmatprep.subr.bf16.mxu0 %v2922
    %4244 = vmatpush1.bf16.msra.mxu0 %v2921
    %4245 = vmatprep.subr.bf16.mxu0 %v2930
    %4246 = vmatpush1.bf16.msra.mxu0 %v2929
    %4247 = vmatprep.subr.bf16.mxu0 %v2938
    %4248 = vmatpush1.bf16.msra.mxu0 %v2937
    %4249 = vmatprep.subr.bf16.mxu0 %v2946
    %4250 = vmatpush1.bf16.msra.mxu0 %v2945
    %4251 = vmatprep.subr.bf16.mxu0 %v2954
    %4252 = vmatpush1.bf16.msra.mxu0 %v2953
    %4253 = vmatprep.subr.bf16.mxu0 %v2962
    %4254 = vmatpush1.bf16.msra.mxu0 %v2961
    %4255 = vmatprep.subr.bf16.mxu0 %v2970
    %4256 = vmatpush1.bf16.msra.mxu0 %v2969
    %4257 = vmatprep.subr.bf16.mxu0 %v2978
    %4258 = vmatpush1.bf16.msra.mxu0 %v2977
    %4259 = vmatprep.subr.bf16.mxu0 %v2986
    %4260 = vmatpush1.bf16.msra.mxu0 %v2985
    %4261 = vmatprep.subr.bf16.mxu0 %v2994
    %4262 = vmatpush1.bf16.msra.mxu0 %v2993
    %4263 = vmatprep.subr.bf16.mxu0 %v3002
    %4264 = vmatpush1.bf16.msra.mxu0 %v3001
    %4265 = vmatprep.subr.bf16.mxu0 %v3010
    %4266 = vmatpush1.bf16.msra.mxu0 %v3009
    %4267 = vmatprep.mubr.bf16.mxu0 %v4226
    %4268 = vmatmul.mubr.bf16.gmra.mrb[0].mxu0 %v4225
    %v4269 = vpop.f32.mrb[0].mxu0
    %v4270 = vadd.f32 0.0, %v4269
    %v4271 = vpop.f32.mrb[0].mxu0
    %v4272 = vadd.f32 0.0, %v4271
    %v4273 = vpop.f32.mrb[0].mxu0
    %v4274 = vpop.f32.mrb[0].mxu0
    %4275 = vdwg.mxu0
    %4276 = vmatprep.subr.bf16.mxu0 %v2892
    %4277 = vmatpush1.bf16.msra.mxu0 %v2891
    %4278 = vmatprep.subr.bf16.mxu0 %v2900
    %4279 = vmatpush1.bf16.msra.mxu0 %v2899
    %4280 = vmatprep.subr.bf16.mxu0 %v2908
    %4281 = vmatpush1.bf16.msra.mxu0 %v2907
    %4282 = vmatprep.subr.bf16.mxu0 %v2916
    %4283 = vmatpush1.bf16.msra.mxu0 %v2915
    %4284 = vmatprep.subr.bf16.mxu0 %v2924
    %4285 = vmatpush1.bf16.msra.mxu0 %v2923
    %4286 = vmatprep.subr.bf16.mxu0 %v2932
    %4287 = vmatpush1.bf16.msra.mxu0 %v2931
    %4288 = vmatprep.subr.bf16.mxu0 %v2940
    %4289 = vmatpush1.bf16.msra.mxu0 %v2939
    %4290 = vmatprep.subr.bf16.mxu0 %v2948
    %4291 = vmatpush1.bf16.msra.mxu0 %v2947
    %4292 = vmatprep.subr.bf16.mxu0 %v2956
    %4293 = vmatpush1.bf16.msra.mxu0 %v2955
    %4294 = vmatprep.subr.bf16.mxu0 %v2964
    %4295 = vmatpush1.bf16.msra.mxu0 %v2963
    %4296 = vmatprep.subr.bf16.mxu0 %v2972
    %4297 = vmatpush1.bf16.msra.mxu0 %v2971
    %4298 = vmatprep.subr.bf16.mxu0 %v2980
    %4299 = vmatpush1.bf16.msra.mxu0 %v2979
    %4300 = vmatprep.subr.bf16.mxu0 %v2988
    %4301 = vmatpush1.bf16.msra.mxu0 %v2987
    %4302 = vmatprep.subr.bf16.mxu0 %v2996
    %4303 = vmatpush1.bf16.msra.mxu0 %v2995
    %4304 = vmatprep.subr.bf16.mxu0 %v3004
    %4305 = vmatpush1.bf16.msra.mxu0 %v3003
    %4306 = vmatprep.subr.bf16.mxu0 %v3012
    %4307 = vmatpush1.bf16.msra.mxu0 %v3011
    %4308 = vmatprep.mubr.bf16.mxu0 %v4226
    %4309 = vmatmul.mubr.bf16.gmra.mrb[0].mxu0 %v4225
    %v4310 = vpop.f32.mrb[0].mxu0
    %v4311 = vadd.f32 0.0, %v4310
    %v4312 = vpop.f32.mrb[0].mxu0
    %v4313 = vadd.f32 0.0, %v4312
    %v4314 = vpop.f32.mrb[0].mxu0
    %v4315 = vpop.f32.mrb[0].mxu0
    %4316 = vdwg.mxu0
    %4317 = vmatprep.subr.bf16.mxu0 %v2894
    %4318 = vmatpush1.bf16.msra.mxu0 %v2893
    %4319 = vmatprep.subr.bf16.mxu0 %v2902
    %4320 = vmatpush1.bf16.msra.mxu0 %v2901
    %4321 = vmatprep.subr.bf16.mxu0 %v2910
    %4322 = vmatpush1.bf16.msra.mxu0 %v2909
    %4323 = vmatprep.subr.bf16.mxu0 %v2918
    %4324 = vmatpush1.bf16.msra.mxu0 %v2917
    %4325 = vmatprep.subr.bf16.mxu0 %v2926
    %4326 = vmatpush1.bf16.msra.mxu0 %v2925
    %4327 = vmatprep.subr.bf16.mxu0 %v2934
    %4328 = vmatpush1.bf16.msra.mxu0 %v2933
    %4329 = vmatprep.subr.bf16.mxu0 %v2942
    %4330 = vmatpush1.bf16.msra.mxu0 %v2941
    %4331 = vmatprep.subr.bf16.mxu0 %v2950
    %4332 = vmatpush1.bf16.msra.mxu0 %v2949
    %4333 = vmatprep.subr.bf16.mxu0 %v2958
    %4334 = vmatpush1.bf16.msra.mxu0 %v2957
    %4335 = vmatprep.subr.bf16.mxu0 %v2966
    %4336 = vmatpush1.bf16.msra.mxu0 %v2965
    %4337 = vmatprep.subr.bf16.mxu0 %v2974
    %4338 = vmatpush1.bf16.msra.mxu0 %v2973
    %4339 = vmatprep.subr.bf16.mxu0 %v2982
    %4340 = vmatpush1.bf16.msra.mxu0 %v2981
    %4341 = vmatprep.subr.bf16.mxu0 %v2990
    %4342 = vmatpush1.bf16.msra.mxu0 %v2989
    %4343 = vmatprep.subr.bf16.mxu0 %v2998
    %4344 = vmatpush1.bf16.msra.mxu0 %v2997
    %4345 = vmatprep.subr.bf16.mxu0 %v3006
    %4346 = vmatpush1.bf16.msra.mxu0 %v3005
    %4347 = vmatprep.subr.bf16.mxu0 %v3014
    %4348 = vmatpush1.bf16.msra.mxu0 %v3013
    %4349 = vmatprep.mubr.bf16.mxu0 %v4226
    %4350 = vmatmul.mubr.bf16.gmra.mrb[0].mxu0 %v4225
    %v4351 = vpop.f32.mrb[0].mxu0
    %v4352 = vadd.f32 0.0, %v4351
    %v4353 = vpop.f32.mrb[0].mxu0
    %v4354 = vadd.f32 0.0, %v4353
    %v4355 = vpop.f32.mrb[0].mxu0
    %v4356 = vpop.f32.mrb[0].mxu0
    %4357 = vdwg.mxu0
    %4358 = vmatprep.subr.bf16.mxu0 %v2896
    %4359 = vmatpush1.bf16.msra.mxu0 %v2895
    %4360 = vmatprep.subr.bf16.mxu0 %v2904
    %4361 = vmatpush1.bf16.msra.mxu0 %v2903
    %4362 = vmatprep.subr.bf16.mxu0 %v2912
    %4363 = vmatpush1.bf16.msra.mxu0 %v2911
    %4364 = vmatprep.subr.bf16.mxu0 %v2920
    %4365 = vmatpush1.bf16.msra.mxu0 %v2919
    %4366 = vmatprep.subr.bf16.mxu0 %v2928
    %4367 = vmatpush1.bf16.msra.mxu0 %v2927
    %4368 = vmatprep.subr.bf16.mxu0 %v2936
    %4369 = vmatpush1.bf16.msra.mxu0 %v2935
    %4370 = vmatprep.subr.bf16.mxu0 %v2944
    %4371 = vmatpush1.bf16.msra.mxu0 %v2943
    %4372 = vmatprep.subr.bf16.mxu0 %v2952
    %4373 = vmatpush1.bf16.msra.mxu0 %v2951
    %4374 = vmatprep.subr.bf16.mxu0 %v2960
    %4375 = vmatpush1.bf16.msra.mxu0 %v2959
    %4376 = vmatprep.subr.bf16.mxu0 %v2968
    %4377 = vmatpush1.bf16.msra.mxu0 %v2967
    %4378 = vmatprep.subr.bf16.mxu0 %v2976
    %4379 = vmatpush1.bf16.msra.mxu0 %v2975
    %4380 = vmatprep.subr.bf16.mxu0 %v2984
    %4381 = vmatpush1.bf16.msra.mxu0 %v2983
    %4382 = vmatprep.subr.bf16.mxu0 %v2992
    %4383 = vmatpush1.bf16.msra.mxu0 %v2991
    %4384 = vmatprep.subr.bf16.mxu0 %v3000
    %4385 = vmatpush1.bf16.msra.mxu0 %v2999
    %4386 = vmatprep.subr.bf16.mxu0 %v3008
    %4387 = vmatpush1.bf16.msra.mxu0 %v3007
    %4388 = vmatprep.subr.bf16.mxu0 %v3016
    %4389 = vmatpush1.bf16.msra.mxu0 %v3015
    %4390 = vmatprep.mubr.bf16.mxu0 %v4226
    %4391 = vmatmul.mubr.bf16.gmra.mrb[0].mxu0 %v4225
    %v4392 = vpop.f32.mrb[0].mxu0
    %v4393 = vadd.f32 0.0, %v4392
    %v4394 = vpop.f32.mrb[0].mxu0
    %v4395 = vadd.f32 0.0, %v4394
    %v4396 = vpop.f32.mrb[0].mxu0
    %v4397 = vpop.f32.mrb[0].mxu0
    %4398 = vdwg.mxu0
    %v4399 = vadd.f32 %v4227, %v4270
    %v4400 = vadd.f32 %v4228, %v4272
    %v4401 = vadd.f32 %v4229, %v4311
    %v4402 = vadd.f32 %v4230, %v4313
    %v4403 = vadd.f32 %v4231, %v4352
    %v4404 = vadd.f32 %v4232, %v4354
    %v4405 = vadd.f32 %v4233, %v4393
    %v4406 = vadd.f32 %v4234, %v4395
    %v4407 = vmul.f32 %v4399, 0.5
    %v4408 = vmul.f32 %v4400, 0.5
    %v4409 = vmul.f32 %v4401, 0.5
    %v4410 = vmul.f32 %v4402, 0.5
    %v4411 = vmul.f32 %v4403, 0.5
    %v4412 = vmul.f32 %v4404, 0.5
    %v4413 = vtanh.pop %v4407
    %v4414 = vtanh.pop %v4408
    %v4415 = vtanh.pop %v4409
    %v4416 = vtanh.pop %v4410
    %v4417 = vtanh.pop %v4411
    %v4418 = vtanh.pop %v4412
    %v4419 = vmul.f32 %v4413, 0.5
    %v4420 = vmul.f32 %v4414, 0.5
    %v4421 = vmul.f32 %v4415, 0.5
    %v4422 = vmul.f32 %v4416, 0.5
    %v4423 = vmul.f32 %v4417, 0.5
    %v4424 = vmul.f32 %v4418, 0.5
    %v4425 = vadd.f32 %v4419, 0.5
    %v4426 = vadd.f32 %v4420, 0.5
    %v4427 = vadd.f32 %v4421, 0.5
    %v4428 = vadd.f32 %v4422, 0.5
    %v4429 = vadd.f32 %v4423, 0.5
    %v4430 = vadd.f32 %v4424, 0.5
    %v4431 = vtanh.pop %v4405
    %v4432 = vtanh.pop %v4406
    %v4433 = vmul.f32 %v4427, %v4219
    %v4434 = vmul.f32 %v4428, %v4220
    %v4435 = vmul.f32 %v4425, %v4431
    %v4436 = vmul.f32 %v4426, %v4432
    %v4437 = vadd.f32 %v4433, %v4435
    %v4438 = vadd.f32 %v4434, %v4436
    %v4439 = vtanh.pop %v4437
    %v4440 = vtanh.pop %v4438
    %v4441 = vmul.f32 %v4429, %v4439
    %v4442 = vmul.f32 %v4430, %v4440
    %v4443 = vpack.c.bf16 %v4441, %v4441
    %v4444 = vpack.c.bf16 %v4442, %v4442
    %v4445 = vld [vmem:[#allocation2 + $0x180] sm:$0xff]
    %v4446 = vld [vmem:[#allocation2 + $0x188] sm:$0xff]
    %v4447 = vld [vmem:[#allocation2 + $0x190] sm:$0xff]
    %v4448 = vld [vmem:[#allocation2 + $0x198] sm:$0xff]
    %v4449 = vld [vmem:[#allocation2 + $0x1a0] sm:$0xff]
    %v4450 = vld [vmem:[#allocation2 + $0x1a8] sm:$0xff]
    %v4451 = vld [vmem:[#allocation2 + $0x1b0] sm:$0xff]
    %v4452 = vld [vmem:[#allocation2 + $0x1b8] sm:$0xff]
    %4453 = vmatprep.subr.bf16.mxu0 %v2890
    %4454 = vmatpush1.bf16.msra.mxu0 %v2889
    %4455 = vmatprep.subr.bf16.mxu0 %v2898
    %4456 = vmatpush1.bf16.msra.mxu0 %v2897
    %4457 = vmatprep.subr.bf16.mxu0 %v2906
    %4458 = vmatpush1.bf16.msra.mxu0 %v2905
    %4459 = vmatprep.subr.bf16.mxu0 %v2914
    %4460 = vmatpush1.bf16.msra.mxu0 %v2913
    %4461 = vmatprep.subr.bf16.mxu0 %v2922
    %4462 = vmatpush1.bf16.msra.mxu0 %v2921
    %4463 = vmatprep.subr.bf16.mxu0 %v2930
    %4464 = vmatpush1.bf16.msra.mxu0 %v2929
    %4465 = vmatprep.subr.bf16.mxu0 %v2938
    %4466 = vmatpush1.bf16.msra.mxu0 %v2937
    %4467 = vmatprep.subr.bf16.mxu0 %v2946
    %4468 = vmatpush1.bf16.msra.mxu0 %v2945
    %4469 = vmatprep.subr.bf16.mxu0 %v2954
    %4470 = vmatpush1.bf16.msra.mxu0 %v2953
    %4471 = vmatprep.subr.bf16.mxu0 %v2962
    %4472 = vmatpush1.bf16.msra.mxu0 %v2961
    %4473 = vmatprep.subr.bf16.mxu0 %v2970
    %4474 = vmatpush1.bf16.msra.mxu0 %v2969
    %4475 = vmatprep.subr.bf16.mxu0 %v2978
    %4476 = vmatpush1.bf16.msra.mxu0 %v2977
    %4477 = vmatprep.subr.bf16.mxu0 %v2986
    %4478 = vmatpush1.bf16.msra.mxu0 %v2985
    %4479 = vmatprep.subr.bf16.mxu0 %v2994
    %4480 = vmatpush1.bf16.msra.mxu0 %v2993
    %4481 = vmatprep.subr.bf16.mxu0 %v3002
    %4482 = vmatpush1.bf16.msra.mxu0 %v3001
    %4483 = vmatprep.subr.bf16.mxu0 %v3010
    %4484 = vmatpush1.bf16.msra.mxu0 %v3009
    %4485 = vmatprep.mubr.bf16.mxu0 %v4444
    %4486 = vmatmul.mubr.bf16.gmra.mrb[0].mxu0 %v4443
    %v4487 = vpop.f32.mrb[0].mxu0
    %v4488 = vadd.f32 0.0, %v4487
    %v4489 = vpop.f32.mrb[0].mxu0
    %v4490 = vadd.f32 0.0, %v4489
    %v4491 = vpop.f32.mrb[0].mxu0
    %v4492 = vpop.f32.mrb[0].mxu0
    %4493 = vdwg.mxu0
    %4494 = vmatprep.subr.bf16.mxu0 %v2892
    %4495 = vmatpush1.bf16.msra.mxu0 %v2891
    %4496 = vmatprep.subr.bf16.mxu0 %v2900
    %4497 = vmatpush1.bf16.msra.mxu0 %v2899
    %4498 = vmatprep.subr.bf16.mxu0 %v2908
    %4499 = vmatpush1.bf16.msra.mxu0 %v2907
    %4500 = vmatprep.subr.bf16.mxu0 %v2916
    %4501 = vmatpush1.bf16.msra.mxu0 %v2915
    %4502 = vmatprep.subr.bf16.mxu0 %v2924
    %4503 = vmatpush1.bf16.msra.mxu0 %v2923
    %4504 = vmatprep.subr.bf16.mxu0 %v2932
    %4505 = vmatpush1.bf16.msra.mxu0 %v2931
    %4506 = vmatprep.subr.bf16.mxu0 %v2940
    %4507 = vmatpush1.bf16.msra.mxu0 %v2939
    %4508 = vmatprep.subr.bf16.mxu0 %v2948
    %4509 = vmatpush1.bf16.msra.mxu0 %v2947
    %4510 = vmatprep.subr.bf16.mxu0 %v2956
    %4511 = vmatpush1.bf16.msra.mxu0 %v2955
    %4512 = vmatprep.subr.bf16.mxu0 %v2964
    %4513 = vmatpush1.bf16.msra.mxu0 %v2963
    %4514 = vmatprep.subr.bf16.mxu0 %v2972
    %4515 = vmatpush1.bf16.msra.mxu0 %v2971
    %4516 = vmatprep.subr.bf16.mxu0 %v2980
    %4517 = vmatpush1.bf16.msra.mxu0 %v2979
    %4518 = vmatprep.subr.bf16.mxu0 %v2988
    %4519 = vmatpush1.bf16.msra.mxu0 %v2987
    %4520 = vmatprep.subr.bf16.mxu0 %v2996
    %4521 = vmatpush1.bf16.msra.mxu0 %v2995
    %4522 = vmatprep.subr.bf16.mxu0 %v3004
    %4523 = vmatpush1.bf16.msra.mxu0 %v3003
    %4524 = vmatprep.subr.bf16.mxu0 %v3012
    %4525 = vmatpush1.bf16.msra.mxu0 %v3011
    %4526 = vmatprep.mubr.bf16.mxu0 %v4444
    %4527 = vmatmul.mubr.bf16.gmra.mrb[0].mxu0 %v4443
    %v4528 = vpop.f32.mrb[0].mxu0
    %v4529 = vadd.f32 0.0, %v4528
    %v4530 = vpop.f32.mrb[0].mxu0
    %v4531 = vadd.f32 0.0, %v4530
    %v4532 = vpop.f32.mrb[0].mxu0
    %v4533 = vpop.f32.mrb[0].mxu0
    %4534 = vdwg.mxu0
    %4535 = vmatprep.subr.bf16.mxu0 %v2894
    %4536 = vmatpush1.bf16.msra.mxu0 %v2893
    %4537 = vmatprep.subr.bf16.mxu0 %v2902
    %4538 = vmatpush1.bf16.msra.mxu0 %v2901
    %4539 = vmatprep.subr.bf16.mxu0 %v2910
    %4540 = vmatpush1.bf16.msra.mxu0 %v2909
    %4541 = vmatprep.subr.bf16.mxu0 %v2918
    %4542 = vmatpush1.bf16.msra.mxu0 %v2917
    %4543 = vmatprep.subr.bf16.mxu0 %v2926
    %4544 = vmatpush1.bf16.msra.mxu0 %v2925
    %4545 = vmatprep.subr.bf16.mxu0 %v2934
    %4546 = vmatpush1.bf16.msra.mxu0 %v2933
    %4547 = vmatprep.subr.bf16.mxu0 %v2942
    %4548 = vmatpush1.bf16.msra.mxu0 %v2941
    %4549 = vmatprep.subr.bf16.mxu0 %v2950
    %4550 = vmatpush1.bf16.msra.mxu0 %v2949
    %4551 = vmatprep.subr.bf16.mxu0 %v2958
    %4552 = vmatpush1.bf16.msra.mxu0 %v2957
    %4553 = vmatprep.subr.bf16.mxu0 %v2966
    %4554 = vmatpush1.bf16.msra.mxu0 %v2965
    %4555 = vmatprep.subr.bf16.mxu0 %v2974
    %4556 = vmatpush1.bf16.msra.mxu0 %v2973
    %4557 = vmatprep.subr.bf16.mxu0 %v2982
    %4558 = vmatpush1.bf16.msra.mxu0 %v2981
    %4559 = vmatprep.subr.bf16.mxu0 %v2990
    %4560 = vmatpush1.bf16.msra.mxu0 %v2989
    %4561 = vmatprep.subr.bf16.mxu0 %v2998
    %4562 = vmatpush1.bf16.msra.mxu0 %v2997
    %4563 = vmatprep.subr.bf16.mxu0 %v3006
    %4564 = vmatpush1.bf16.msra.mxu0 %v3005
    %4565 = vmatprep.subr.bf16.mxu0 %v3014
    %4566 = vmatpush1.bf16.msra.mxu0 %v3013
    %4567 = vmatprep.mubr.bf16.mxu0 %v4444
    %4568 = vmatmul.mubr.bf16.gmra.mrb[0].mxu0 %v4443
    %v4569 = vpop.f32.mrb[0].mxu0
    %v4570 = vadd.f32 0.0, %v4569
    %v4571 = vpop.f32.mrb[0].mxu0
    %v4572 = vadd.f32 0.0, %v4571
    %v4573 = vpop.f32.mrb[0].mxu0
    %v4574 = vpop.f32.mrb[0].mxu0
    %4575 = vdwg.mxu0
    %4576 = vmatprep.subr.bf16.mxu0 %v2896
    %4577 = vmatpush1.bf16.msra.mxu0 %v2895
    %4578 = vmatprep.subr.bf16.mxu0 %v2904
    %4579 = vmatpush1.bf16.msra.mxu0 %v2903
    %4580 = vmatprep.subr.bf16.mxu0 %v2912
    %4581 = vmatpush1.bf16.msra.mxu0 %v2911
    %4582 = vmatprep.subr.bf16.mxu0 %v2920
    %4583 = vmatpush1.bf16.msra.mxu0 %v2919
    %4584 = vmatprep.subr.bf16.mxu0 %v2928
    %4585 = vmatpush1.bf16.msra.mxu0 %v2927
    %4586 = vmatprep.subr.bf16.mxu0 %v2936
    %4587 = vmatpush1.bf16.msra.mxu0 %v2935
    %4588 = vmatprep.subr.bf16.mxu0 %v2944
    %4589 = vmatpush1.bf16.msra.mxu0 %v2943
    %4590 = vmatprep.subr.bf16.mxu0 %v2952
    %4591 = vmatpush1.bf16.msra.mxu0 %v2951
    %4592 = vmatprep.subr.bf16.mxu0 %v2960
    %4593 = vmatpush1.bf16.msra.mxu0 %v2959
    %4594 = vmatprep.subr.bf16.mxu0 %v2968
    %4595 = vmatpush1.bf16.msra.mxu0 %v2967
    %4596 = vmatprep.subr.bf16.mxu0 %v2976
    %4597 = vmatpush1.bf16.msra.mxu0 %v2975
    %4598 = vmatprep.subr.bf16.mxu0 %v2984
    %4599 = vmatpush1.bf16.msra.mxu0 %v2983
    %4600 = vmatprep.subr.bf16.mxu0 %v2992
    %4601 = vmatpush1.bf16.msra.mxu0 %v2991
    %4602 = vmatprep.subr.bf16.mxu0 %v3000
    %4603 = vmatpush1.bf16.msra.mxu0 %v2999
    %4604 = vmatprep.subr.bf16.mxu0 %v3008
    %4605 = vmatpush1.bf16.msra.mxu0 %v3007
    %4606 = vmatprep.subr.bf16.mxu0 %v3016
    %4607 = vmatpush1.bf16.msra.mxu0 %v3015
    %4608 = vmatprep.mubr.bf16.mxu0 %v4444
    %4609 = vmatmul.mubr.bf16.gmra.mrb[0].mxu0 %v4443
    %v4610 = vpop.f32.mrb[0].mxu0
    %v4611 = vadd.f32 0.0, %v4610
    %v4612 = vpop.f32.mrb[0].mxu0
    %v4613 = vadd.f32 0.0, %v4612
    %v4614 = vpop.f32.mrb[0].mxu0
    %v4615 = vpop.f32.mrb[0].mxu0
    %4616 = vdwg.mxu0
    %v4617 = vadd.f32 %v4445, %v4488
    %v4618 = vadd.f32 %v4446, %v4490
    %v4619 = vadd.f32 %v4447, %v4529
    %v4620 = vadd.f32 %v4448, %v4531
    %v4621 = vadd.f32 %v4449, %v4570
    %v4622 = vadd.f32 %v4450, %v4572
    %v4623 = vadd.f32 %v4451, %v4611
    %v4624 = vadd.f32 %v4452, %v4613
    %v4625 = vmul.f32 %v4617, 0.5
    %v4626 = vmul.f32 %v4618, 0.5
    %v4627 = vmul.f32 %v4619, 0.5
    %v4628 = vmul.f32 %v4620, 0.5
    %v4629 = vmul.f32 %v4621, 0.5
    %v4630 = vmul.f32 %v4622, 0.5
    %v4631 = vtanh.pop %v4625
    %v4632 = vtanh.pop %v4626
    %v4633 = vtanh.pop %v4627
    %v4634 = vtanh.pop %v4628
    %v4635 = vtanh.pop %v4629
    %v4636 = vtanh.pop %v4630
    %v4637 = vmul.f32 %v4631, 0.5
    %v4638 = vmul.f32 %v4632, 0.5
    %v4639 = vmul.f32 %v4633, 0.5
    %v4640 = vmul.f32 %v4634, 0.5
    %v4641 = vmul.f32 %v4635, 0.5
    %v4642 = vmul.f32 %v4636, 0.5
    %v4643 = vadd.f32 %v4637, 0.5
    %v4644 = vadd.f32 %v4638, 0.5
    %v4645 = vadd.f32 %v4639, 0.5
    %v4646 = vadd.f32 %v4640, 0.5
    %v4647 = vadd.f32 %v4641, 0.5
    %v4648 = vadd.f32 %v4642, 0.5
    %v4649 = vtanh.pop %v4623
    %v4650 = vtanh.pop %v4624
    %v4651 = vmul.f32 %v4645, %v4437
    %v4652 = vmul.f32 %v4646, %v4438
    %v4653 = vmul.f32 %v4643, %v4649
    %v4654 = vmul.f32 %v4644, %v4650
    %v4655 = vadd.f32 %v4651, %v4653
    %v4656 = vadd.f32 %v4652, %v4654
    %v4657 = vtanh.pop %v4655
    %v4658 = vtanh.pop %v4656
    %v4659 = vmul.f32 %v4647, %v4657
    %v4660 = vmul.f32 %v4648, %v4658
    %v4661 = vpack.c.bf16 %v4659, %v4659
    %v4662 = vpack.c.bf16 %v4660, %v4660
    %v4663 = vld [vmem:[#allocation2 + $0x1c0] sm:$0xff]
    %v4664 = vld [vmem:[#allocation2 + $0x1c8] sm:$0xff]
    %v4665 = vld [vmem:[#allocation2 + $0x1d0] sm:$0xff]
    %v4666 = vld [vmem:[#allocation2 + $0x1d8] sm:$0xff]
    %v4667 = vld [vmem:[#allocation2 + $0x1e0] sm:$0xff]
    %v4668 = vld [vmem:[#allocation2 + $0x1e8] sm:$0xff]
    %v4669 = vld [vmem:[#allocation2 + $0x1f0] sm:$0xff]
    %v4670 = vld [vmem:[#allocation2 + $0x1f8] sm:$0xff]
    %4671 = vmatprep.subr.bf16.mxu0 %v2890
    %4672 = vmatpush1.bf16.msra.mxu0 %v2889
    %4673 = vmatprep.subr.bf16.mxu0 %v2898
    %4674 = vmatpush1.bf16.msra.mxu0 %v2897
    %4675 = vmatprep.subr.bf16.mxu0 %v2906
    %4676 = vmatpush1.bf16.msra.mxu0 %v2905
    %4677 = vmatprep.subr.bf16.mxu0 %v2914
    %4678 = vmatpush1.bf16.msra.mxu0 %v2913
    %4679 = vmatprep.subr.bf16.mxu0 %v2922
    %4680 = vmatpush1.bf16.msra.mxu0 %v2921
    %4681 = vmatprep.subr.bf16.mxu0 %v2930
    %4682 = vmatpush1.bf16.msra.mxu0 %v2929
    %4683 = vmatprep.subr.bf16.mxu0 %v2938
    %4684 = vmatpush1.bf16.msra.mxu0 %v2937
    %4685 = vmatprep.subr.bf16.mxu0 %v2946
    %4686 = vmatpush1.bf16.msra.mxu0 %v2945
    %4687 = vmatprep.subr.bf16.mxu0 %v2954
    %4688 = vmatpush1.bf16.msra.mxu0 %v2953
    %4689 = vmatprep.subr.bf16.mxu0 %v2962
    %4690 = vmatpush1.bf16.msra.mxu0 %v2961
    %4691 = vmatprep.subr.bf16.mxu0 %v2970
    %4692 = vmatpush1.bf16.msra.mxu0 %v2969
    %4693 = vmatprep.subr.bf16.mxu0 %v2978
    %4694 = vmatpush1.bf16.msra.mxu0 %v2977
    %4695 = vmatprep.subr.bf16.mxu0 %v2986
    %4696 = vmatpush1.bf16.msra.mxu0 %v2985
    %4697 = vmatprep.subr.bf16.mxu0 %v2994
    %4698 = vmatpush1.bf16.msra.mxu0 %v2993
    %4699 = vmatprep.subr.bf16.mxu0 %v3002
    %4700 = vmatpush1.bf16.msra.mxu0 %v3001
    %4701 = vmatprep.subr.bf16.mxu0 %v3010
    %4702 = vmatpush1.bf16.msra.mxu0 %v3009
    %4703 = vmatprep.mubr.bf16.mxu0 %v4662
    %4704 = vmatmul.mubr.bf16.gmra.mrb[0].mxu0 %v4661
    %v4705 = vpop.f32.mrb[0].mxu0
    %v4706 = vadd.f32 0.0, %v4705
    %v4707 = vpop.f32.mrb[0].mxu0
    %v4708 = vadd.f32 0.0, %v4707
    %v4709 = vpop.f32.mrb[0].mxu0
    %v4710 = vpop.f32.mrb[0].mxu0
    %4711 = vdwg.mxu0
    %4712 = vmatprep.subr.bf16.mxu0 %v2892
    %4713 = vmatpush1.bf16.msra.mxu0 %v2891
    %4714 = vmatprep.subr.bf16.mxu0 %v2900
    %4715 = vmatpush1.bf16.msra.mxu0 %v2899
    %4716 = vmatprep.subr.bf16.mxu0 %v2908
    %4717 = vmatpush1.bf16.msra.mxu0 %v2907
    %4718 = vmatprep.subr.bf16.mxu0 %v2916
    %4719 = vmatpush1.bf16.msra.mxu0 %v2915
    %4720 = vmatprep.subr.bf16.mxu0 %v2924
    %4721 = vmatpush1.bf16.msra.mxu0 %v2923
    %4722 = vmatprep.subr.bf16.mxu0 %v2932
    %4723 = vmatpush1.bf16.msra.mxu0 %v2931
    %4724 = vmatprep.subr.bf16.mxu0 %v2940
    %4725 = vmatpush1.bf16.msra.mxu0 %v2939
    %4726 = vmatprep.subr.bf16.mxu0 %v2948
    %4727 = vmatpush1.bf16.msra.mxu0 %v2947
    %4728 = vmatprep.subr.bf16.mxu0 %v2956
    %4729 = vmatpush1.bf16.msra.mxu0 %v2955
    %4730 = vmatprep.subr.bf16.mxu0 %v2964
    %4731 = vmatpush1.bf16.msra.mxu0 %v2963
    %4732 = vmatprep.subr.bf16.mxu0 %v2972
    %4733 = vmatpush1.bf16.msra.mxu0 %v2971
    %4734 = vmatprep.subr.bf16.mxu0 %v2980
    %4735 = vmatpush1.bf16.msra.mxu0 %v2979
    %4736 = vmatprep.subr.bf16.mxu0 %v2988
    %4737 = vmatpush1.bf16.msra.mxu0 %v2987
    %4738 = vmatprep.subr.bf16.mxu0 %v2996
    %4739 = vmatpush1.bf16.msra.mxu0 %v2995
    %4740 = vmatprep.subr.bf16.mxu0 %v3004
    %4741 = vmatpush1.bf16.msra.mxu0 %v3003
    %4742 = vmatprep.subr.bf16.mxu0 %v3012
    %4743 = vmatpush1.bf16.msra.mxu0 %v3011
    %4744 = vmatprep.mubr.bf16.mxu0 %v4662
    %4745 = vmatmul.mubr.bf16.gmra.mrb[0].mxu0 %v4661
    %v4746 = vpop.f32.mrb[0].mxu0
    %v4747 = vadd.f32 0.0, %v4746
    %v4748 = vpop.f32.mrb[0].mxu0
    %v4749 = vadd.f32 0.0, %v4748
    %v4750 = vpop.f32.mrb[0].mxu0
    %v4751 = vpop.f32.mrb[0].mxu0
    %4752 = vdwg.mxu0
    %4753 = vmatprep.subr.bf16.mxu0 %v2894
    %4754 = vmatpush1.bf16.msra.mxu0 %v2893
    %4755 = vmatprep.subr.bf16.mxu0 %v2902
    %4756 = vmatpush1.bf16.msra.mxu0 %v2901
    %4757 = vmatprep.subr.bf16.mxu0 %v2910
    %4758 = vmatpush1.bf16.msra.mxu0 %v2909
    %4759 = vmatprep.subr.bf16.mxu0 %v2918
    %4760 = vmatpush1.bf16.msra.mxu0 %v2917
    %4761 = vmatprep.subr.bf16.mxu0 %v2926
    %4762 = vmatpush1.bf16.msra.mxu0 %v2925
    %4763 = vmatprep.subr.bf16.mxu0 %v2934
    %4764 = vmatpush1.bf16.msra.mxu0 %v2933
    %4765 = vmatprep.subr.bf16.mxu0 %v2942
    %4766 = vmatpush1.bf16.msra.mxu0 %v2941
    %4767 = vmatprep.subr.bf16.mxu0 %v2950
    %4768 = vmatpush1.bf16.msra.mxu0 %v2949
    %4769 = vmatprep.subr.bf16.mxu0 %v2958
    %4770 = vmatpush1.bf16.msra.mxu0 %v2957
    %4771 = vmatprep.subr.bf16.mxu0 %v2966
    %4772 = vmatpush1.bf16.msra.mxu0 %v2965
    %4773 = vmatprep.subr.bf16.mxu0 %v2974
    %4774 = vmatpush1.bf16.msra.mxu0 %v2973
    %4775 = vmatprep.subr.bf16.mxu0 %v2982
    %4776 = vmatpush1.bf16.msra.mxu0 %v2981
    %4777 = vmatprep.subr.bf16.mxu0 %v2990
    %4778 = vmatpush1.bf16.msra.mxu0 %v2989
    %4779 = vmatprep.subr.bf16.mxu0 %v2998
    %4780 = vmatpush1.bf16.msra.mxu0 %v2997
    %4781 = vmatprep.subr.bf16.mxu0 %v3006
    %4782 = vmatpush1.bf16.msra.mxu0 %v3005
    %4783 = vmatprep.subr.bf16.mxu0 %v3014
    %4784 = vmatpush1.bf16.msra.mxu0 %v3013
    %4785 = vmatprep.mubr.bf16.mxu0 %v4662
    %4786 = vmatmul.mubr.bf16.gmra.mrb[0].mxu0 %v4661
    %v4787 = vpop.f32.mrb[0].mxu0
    %v4788 = vadd.f32 0.0, %v4787
    %v4789 = vpop.f32.mrb[0].mxu0
    %v4790 = vadd.f32 0.0, %v4789
    %v4791 = vpop.f32.mrb[0].mxu0
    %v4792 = vpop.f32.mrb[0].mxu0
    %4793 = vdwg.mxu0
    %4794 = vmatprep.subr.bf16.mxu0 %v2896
    %4795 = vmatpush1.bf16.msra.mxu0 %v2895
    %4796 = vmatprep.subr.bf16.mxu0 %v2904
    %4797 = vmatpush1.bf16.msra.mxu0 %v2903
    %4798 = vmatprep.subr.bf16.mxu0 %v2912
    %4799 = vmatpush1.bf16.msra.mxu0 %v2911
    %4800 = vmatprep.subr.bf16.mxu0 %v2920
    %4801 = vmatpush1.bf16.msra.mxu0 %v2919
    %4802 = vmatprep.subr.bf16.mxu0 %v2928
    %4803 = vmatpush1.bf16.msra.mxu0 %v2927
    %4804 = vmatprep.subr.bf16.mxu0 %v2936
    %4805 = vmatpush1.bf16.msra.mxu0 %v2935
    %4806 = vmatprep.subr.bf16.mxu0 %v2944
    %4807 = vmatpush1.bf16.msra.mxu0 %v2943
    %4808 = vmatprep.subr.bf16.mxu0 %v2952
    %4809 = vmatpush1.bf16.msra.mxu0 %v2951
    %4810 = vmatprep.subr.bf16.mxu0 %v2960
    %4811 = vmatpush1.bf16.msra.mxu0 %v2959
    %4812 = vmatprep.subr.bf16.mxu0 %v2968
    %4813 = vmatpush1.bf16.msra.mxu0 %v2967
    %4814 = vmatprep.subr.bf16.mxu0 %v2976
    %4815 = vmatpush1.bf16.msra.mxu0 %v2975
    %4816 = vmatprep.subr.bf16.mxu0 %v2984
    %4817 = vmatpush1.bf16.msra.mxu0 %v2983
    %4818 = vmatprep.subr.bf16.mxu0 %v2992
    %4819 = vmatpush1.bf16.msra.mxu0 %v2991
    %4820 = vmatprep.subr.bf16.mxu0 %v3000
    %4821 = vmatpush1.bf16.msra.mxu0 %v2999
    %4822 = vmatprep.subr.bf16.mxu0 %v3008
    %4823 = vmatpush1.bf16.msra.mxu0 %v3007
    %4824 = vmatprep.subr.bf16.mxu0 %v3016
    %4825 = vmatpush1.bf16.msra.mxu0 %v3015
    %4826 = vmatprep.mubr.bf16.mxu0 %v4662
    %4827 = vmatmul.mubr.bf16.gmra.mrb[0].mxu0 %v4661
    %v4828 = vpop.f32.mrb[0].mxu0
    %v4829 = vadd.f32 0.0, %v4828
    %v4830 = vpop.f32.mrb[0].mxu0
    %v4831 = vadd.f32 0.0, %v4830
    %v4832 = vpop.f32.mrb[0].mxu0
    %v4833 = vpop.f32.mrb[0].mxu0
    %4834 = vdwg.mxu0
    %v4835 = vadd.f32 %v4663, %v4706
    %v4836 = vadd.f32 %v4664, %v4708
    %v4837 = vadd.f32 %v4665, %v4747
    %v4838 = vadd.f32 %v4666, %v4749
    %v4839 = vadd.f32 %v4667, %v4788
    %v4840 = vadd.f32 %v4668, %v4790
    %v4841 = vadd.f32 %v4669, %v4829
    %v4842 = vadd.f32 %v4670, %v4831
    %v4843 = vmul.f32 %v4835, 0.5
    %v4844 = vmul.f32 %v4836, 0.5
    %v4845 = vmul.f32 %v4837, 0.5
    %v4846 = vmul.f32 %v4838, 0.5
    %v4847 = vmul.f32 %v4839, 0.5
    %v4848 = vmul.f32 %v4840, 0.5
    %v4849 = vtanh.pop %v4843
    %v4850 = vtanh.pop %v4844
    %v4851 = vtanh.pop %v4845
    %v4852 = vtanh.pop %v4846
    %v4853 = vtanh.pop %v4847
    %v4854 = vtanh.pop %v4848
    %v4855 = vmul.f32 %v4849, 0.5
    %v4856 = vmul.f32 %v4850, 0.5
    %v4857 = vmul.f32 %v4851, 0.5
    %v4858 = vmul.f32 %v4852, 0.5
    %v4859 = vmul.f32 %v4853, 0.5
    %v4860 = vmul.f32 %v4854, 0.5
    %v4861 = vadd.f32 %v4855, 0.5
    %v4862 = vadd.f32 %v4856, 0.5
    %v4863 = vadd.f32 %v4857, 0.5
    %v4864 = vadd.f32 %v4858, 0.5
    %v4865 = vadd.f32 %v4859, 0.5
    %v4866 = vadd.f32 %v4860, 0.5
    %v4867 = vtanh.pop %v4841
    %v4868 = vtanh.pop %v4842
    %v4869 = vmul.f32 %v4863, %v4655
    %v4870 = vmul.f32 %v4864, %v4656
    %v4871 = vmul.f32 %v4861, %v4867
    %v4872 = vmul.f32 %v4862, %v4868
    %v4873 = vadd.f32 %v4869, %v4871
    %v4874 = vadd.f32 %v4870, %v4872
    %v4875 = vtanh.pop %v4873
    %v4876 = vtanh.pop %v4874
    %v4877 = vmul.f32 %v4865, %v4875
    %v4878 = vmul.f32 %v4866, %v4876
    %v4881 = vcombine.low %v4877, %v4878
    %v4883 = vunpack.c.l.s4 1983009808
    %v4884 = vunpack.c.0.s8 %v4883
    %v4885 = vlaneseq
    %v4886 = vshrl.u32 %v4885, 7
    %v4887 = vsub.s32 %v4884, %v4886
    %v4888 = vrot.slane %v4881, %v4887
    %4890 = vst [vmem:[#allocation8] sm:$0xf] %v4888
    // Predicated region
    $region26: #{lstm_forward.1} parent=1 // pred_check
      _
    $region27: #{lstm_forward.1} parent=1 // pred_check_branch
      %4892 = sbr.rel (0) target = $region29
    $region28: #{lstm_forward.1} parent=1 // pred_region
      %s4894 = ssub.s32 64, 64
      %4895 = vsyncadd [#allocation5], %s4894
      %s4897 = sshll.u32 [#allocation8], 4
      %s4898 = int_to_ptr.vmem [resolvable:$true] %s4897
      %4900 = dma.vmem_to_hbm [thread:$0]  %s4898, 64, %s4, [#allocation5]
    $region29: #{lstm_forward.1} parent=1 // pred_fallthru
      _
    // Predicated region
    $region30: #{lstm_forward.1} parent=1 // pred_check
      _
    $region31: #{lstm_forward.1} parent=1 // pred_check_branch
      %4902 = sbr.rel (0) target = $region33
    $region32: #{lstm_forward.1} parent=1 // pred_region
      %4903 = dma.done [#allocation5], 64
    $region33: #{lstm_forward.1} parent=1 // pred_fallthru
      _
    %4904 = vsyncpa [#allocation4], 1
    %4905 = vsyncpa [#allocation7], 1
    %4906 = vsyncpa [#allocation5], 1

</llo_original>
